<compile_context>
chip_gen: v7x
topology: tpu7x:2x2x1
jax: 0.10.0
libtpu: 0.0.40
codegen_flags: <defaults>
</compile_context>

<pallas_src>
from functools import partial

import jax
import jax.numpy as jnp
from jax.experimental import pallas as pl
from jax.experimental.pallas import tpu as pltpu


def _pcb_kernel(x_ref, w_ref, b_ref, p_ref, o_ref):
    # x_ref : (Bt*HW, Cin)        bf16  flattened NHWC activations for Bt images
    # w_ref : (Cin, Cout)         bf16  1x1 conv weight (grid-invariant)
    # b_ref : (1, Cout)           f32   bias (grid-invariant)
    # p_ref : (Bt*part, Bt*HW)    f32   block-diagonal avg-pool matrix (grid-invariant)
    # o_ref : (Bt*part, Cout)     f32   pooled features for this block of images
    h = jnp.dot(x_ref[...], w_ref[...], preferred_element_type=jnp.float32)  # MXU, bf16 in / f32 acc
    h = h + b_ref[...]
    h = h * jax.nn.sigmoid(h)                       # swish in f32 (EUP slot, co-issues)
    # AdaptiveAvgPool2d((part, 1)) as a tiny MXU matmul: each pool-matrix row holds
    # 1/bin_rows over the contiguous flattened-spatial rows of one (image, part) bin.
    pooled = jnp.dot(p_ref[...], h, preferred_element_type=jnp.float32)
    o_ref[...] = pooled.astype(o_ref.dtype)


def _choose_bt(B, HW, Cin, Cout, budget_bytes=12 << 20):
    """Images per grid step: largest divisor of B whose per-step footprint fits the
    budget while keeping >= 2 grid steps (so v7x's 2 TensorCores both get work)."""
    per_img = 2 * HW * Cin * 2 + HW * Cout * 4      # 2x-buffered bf16 x-block + f32 activations
    cap = max(1, budget_bytes // max(per_img, 1))
    best = 1
    for bt in range(1, B + 1):
        if B % bt == 0 and bt <= cap and (B // bt >= 2 or B == 1):
            best = bt
    return best


@partial(jax.jit, static_argnames=("part", "single_buffer_invariants"))
def _forward(x_nchw, w, b, *, part, single_buffer_invariants):
    B, Cin, H, W = x_nchw.shape
    Cout = w.shape[1]
    HW = H * W
    assert H % part == 0, "H must be divisible by part for exact adaptive pooling"

    # Layout glue, fused into one XLA op under jit: NCHW -> NHWC -> (B*HW, Cin) bf16.
    x_flat = jnp.transpose(x_nchw, (0, 2, 3, 1)).reshape(B * HW, Cin).astype(jnp.bfloat16)
    w_bf = w.astype(jnp.bfloat16)
    b_f32 = b.astype(jnp.float32)

    Bt = _choose_bt(B, HW, Cin, Cout)
    grid = (B // Bt,)

    # Block-diagonal pooling matrix for one Bt-image block.  Flattened row index within
    # the block is bt*HW + h*W + w; bin index = (bt*HW + s) // bin_rows = bt*part + p.
    bin_rows = HW // part
    rows = jnp.arange(Bt * part, dtype=jnp.int32)
    cols = jnp.arange(Bt * HW, dtype=jnp.int32)
    pool = (cols[None, :] // bin_rows == rows[:, None]).astype(jnp.float32) / bin_rows

    # Grid-invariant operands: request single buffering (saves VMEM, index_map constant).
    inv_kwargs = dict(pipeline_mode=pl.Buffered(1)) if single_buffer_invariants else {}
    in_specs = [
        pl.BlockSpec((Bt * HW, Cin), lambda i: (i, 0)),
        pl.BlockSpec((Cin, Cout), lambda i: (0, 0), **inv_kwargs),
        pl.BlockSpec((1, Cout), lambda i: (0, 0), **inv_kwargs),
        pl.BlockSpec((Bt * part, Bt * HW), lambda i: (0, 0), **inv_kwargs),
    ]
    out_specs = pl.BlockSpec((Bt * part, Cout), lambda i: (i, 0))

    # VMEM budget: 2x bf16 x-block + invariants + 2x f32 out-block + f32 intermediate.
    inv_buf = 1 if single_buffer_invariants else 2
    est = (2 * Bt * HW * Cin * 2
           + inv_buf * (Cin * Cout * 2 + Cout * 4 + (Bt * part) * (Bt * HW) * 4)
           + 2 * Bt * part * Cout * 4
           + Bt * HW * Cout * 4)
    vmem_limit = int(min(max(2 * est, 32 << 20), 48 << 20))   # cap: safe on v7x's 64 MiB

    out = pl.pallas_call(
        _pcb_kernel,
        out_shape=jax.ShapeDtypeStruct((B * part, Cout), jnp.float32),
        grid_spec=pltpu.PrefetchScalarGridSpec(
            num_scalar_prefetch=0,
            grid=grid,
            in_specs=in_specs,
            out_specs=out_specs,
        ),
        compiler_params=pltpu.CompilerParams(
            dimension_semantics=("parallel",),
            vmem_limit_bytes=vmem_limit,
        ),
    )(x_flat, w_bf, b_f32, pool)

    # (B*part, Cout) -> (B, Cout, part)  == x.view(B, C, part) in the PyTorch module
    return jnp.transpose(out.reshape(B, part, Cout), (0, 2, 1))


def pcb_effi_test_forward(x_nchw, w, b, part):
    """x_nchw: (B, Cin, H, W) f32. Returns (B, Cout, part) like the PyTorch module."""
    try:
        return jax.block_until_ready(
            _forward(x_nchw, w, b, part=part, single_buffer_invariants=True))
    except Exception:  # pl.Buffered(1) not accepted by this build -> default double-buffering
        return jax.block_until_ready(
            _forward(x_nchw, w, b, part=part, single_buffer_invariants=False))


def _reference(x_nchw, w, b, part):
    """Pure-JAX reference with the same numerics (bf16 matmul inputs, f32 elsewhere)."""
    B, Cin, H, W = x_nchw.shape
    x = jnp.transpose(x_nchw, (0, 2, 3, 1)).astype(jnp.bfloat16)          # (B,H,W,Cin)
    h = jnp.einsum("bhwc,cd->bhwd", x, w.astype(jnp.bfloat16),
                   preferred_element_type=jnp.float32) + b                # 1x1 conv + bias
    h = h * jax.nn.sigmoid(h)                                             # swish (f32)
    feats = jnp.transpose(h, (0, 3, 1, 2))                                # (B,Cout,H,W)
    bin_h = H // part
    pooled = feats.reshape(B, feats.shape[1], part, bin_h, W).mean(axis=(3, 4))
    return pooled                                                         # (B,Cout,part)


if __name__ == "__main__":
    key = jax.random.PRNGKey(0)
    B, Cin, H, W = 8, 4, 16, 16
    Cout, part = 32, 4

    k1, k2, k3 = jax.random.split(key, 3)
    x = jax.random.normal(k1, (B, Cin, H, W), dtype=jnp.float32)
    w = jax.random.normal(k2, (Cin, Cout), dtype=jnp.float32) * 0.1
    b = jax.random.normal(k3, (1, Cout), dtype=jnp.float32) * 0.1

    y = pcb_effi_test_forward(x, w, b, part)
    y = jax.block_until_ready(y)

    y_ref = _reference(x, w, b, part)
    assert y.shape == (B, Cout, part), y.shape
    assert jnp.allclose(y, y_ref, atol=1e-3, rtol=1e-3), "mismatch vs reference"

    print("KERNEL_OK")
</pallas_src>

<mosaic_0001>
module attributes {stable_mosaic.version = 11 : i64} {
  func.func @_pcb_kernel(%arg0: i32, %arg1: memref<1024x4xbf16, #tpu.memory_space<vmem>>, %arg2: memref<4x32xbf16, #tpu.memory_space<vmem>>, %arg3: memref<1x32xf32, #tpu.memory_space<vmem>>, %arg4: memref<16x1024xf32, #tpu.memory_space<vmem>>, %arg5: memref<16x32xf32, #tpu.memory_space<vmem>>) attributes {dimension_semantics = [#tpu.dimension_semantics<parallel>], iteration_bounds = array<i64: 2>, scalar_prefetch = 0 : i64, scratch_operands = 0 : i64, tpu.core_type = #tpu.core_type<tc>, window_params = [{transform_indices = @transform_0, window_bounds = array<i64: 1024, 4>}, {pipeline_mode = #tpu.pipeline_mode<synchronous>, transform_indices = @transform_1, window_bounds = array<i64: 4, 32>}, {pipeline_mode = #tpu.pipeline_mode<synchronous>, transform_indices = @transform_2, window_bounds = array<i64: 1, 32>}, {pipeline_mode = #tpu.pipeline_mode<synchronous>, transform_indices = @transform_3, window_bounds = array<i64: 16, 1024>}, {transform_indices = @transform_4, window_bounds = array<i64: 16, 32>}]} {
    %c0 = arith.constant 0 : index
    %c0_0 = arith.constant 0 : index
    %0 = vector.load %arg1[%c0, %c0_0] : memref<1024x4xbf16, #tpu.memory_space<vmem>>, vector<1024x4xbf16>
    %c0_1 = arith.constant 0 : index
    %c0_2 = arith.constant 0 : index
    %1 = vector.load %arg2[%c0_1, %c0_2] : memref<4x32xbf16, #tpu.memory_space<vmem>>, vector<4x32xbf16>
    %cst = arith.constant dense<0.000000e+00> : vector<1024x32xf32>
    %2 = tpu.matmul %0, %1, %cst {dimension_numbers = #tpu.dot_dimension_numbers<[1], [0], [0], [1], [0, 0, 1, 1], [], []>} : vector<1024x4xbf16>, vector<4x32xbf16>, vector<1024x32xf32> -> vector<1024x32xf32>
    %c0_3 = arith.constant 0 : index
    %c0_4 = arith.constant 0 : index
    %3 = vector.load %arg3[%c0_3, %c0_4] : memref<1x32xf32, #tpu.memory_space<vmem>>, vector<1x32xf32>
    %4 = vector.broadcast %3 : vector<1x32xf32> to vector<1024x32xf32>
    %5 = arith.addf %2, %4 : vector<1024x32xf32>
    %6 = arith.negf %5 : vector<1024x32xf32>
    %7 = math.exp %6 : vector<1024x32xf32>
    %cst_5 = arith.constant 1.000000e+00 : f32
    %8 = vector.broadcast %cst_5 : f32 to vector<1024x32xf32>
    %9 = arith.addf %8, %7 : vector<1024x32xf32>
    %10 = arith.divf %8, %9 : vector<1024x32xf32>
    %11 = arith.mulf %5, %10 : vector<1024x32xf32>
    %c0_6 = arith.constant 0 : index
    %c0_7 = arith.constant 0 : index
    %12 = vector.load %arg4[%c0_6, %c0_7] : memref<16x1024xf32, #tpu.memory_space<vmem>>, vector<16x1024xf32>
    %cst_8 = arith.constant dense<0.000000e+00> : vector<16x32xf32>
    %13 = tpu.matmul %12, %11, %cst_8 {dimension_numbers = #tpu.dot_dimension_numbers<[1], [0], [0], [1], [0, 0, 1, 1], [], []>} : vector<16x1024xf32>, vector<1024x32xf32>, vector<16x32xf32> -> vector<16x32xf32>
    %c0_9 = arith.constant 0 : index
    %c0_10 = arith.constant 0 : index
    %14 = vector.load %arg5[%c0_9, %c0_10] : memref<16x32xf32, #tpu.memory_space<vmem>>, vector<16x32xf32>
    tpu.vector_store %arg5[%c0_9, %c0_10], %13 {strides = array<i32>} : memref<16x32xf32, #tpu.memory_space<vmem>>, vector<16x32xf32>,
    return
  }
  func.func @transform_0(%arg0: i32) -> (i32, i32) {
    %c0_i32 = arith.constant 0 : i32
    %c0_i32_0 = arith.constant 0 : i32
    return %arg0, %c0_i32 : i32, i32
  }
  func.func @transform_1(%arg0: i32) -> (i32, i32) {
    %c0_i32 = arith.constant 0 : i32
    %c0_i32_0 = arith.constant 0 : i32
    %c0_i32_1 = arith.constant 0 : i32
    return %c0_i32, %c0_i32_0 : i32, i32
  }
  func.func @transform_2(%arg0: i32) -> (i32, i32) {
    %c0_i32 = arith.constant 0 : i32
    %c0_i32_0 = arith.constant 0 : i32
    %c0_i32_1 = arith.constant 0 : i32
    return %c0_i32, %c0_i32_0 : i32, i32
  }
  func.func @transform_3(%arg0: i32) -> (i32, i32) {
    %c0_i32 = arith.constant 0 : i32
    %c0_i32_0 = arith.constant 0 : i32
    %c0_i32_1 = arith.constant 0 : i32
    return %c0_i32, %c0_i32_0 : i32, i32
  }
  func.func @transform_4(%arg0: i32) -> (i32, i32) {
    %c0_i32 = arith.constant 0 : i32
    %c0_i32_0 = arith.constant 0 : i32
    return %arg0, %c0_i32 : i32, i32
  }
}

module attributes {stable_mosaic.version = 11 : i64} {
  func.func @_pcb_kernel(%arg0: i32, %arg1: memref<1024x4xbf16, #tpu.memory_space<vmem>>, %arg2: memref<4x32xbf16, #tpu.memory_space<vmem>>, %arg3: memref<1x32xf32, #tpu.memory_space<vmem>>, %arg4: memref<16x1024xf32, #tpu.memory_space<vmem>>, %arg5: memref<16x32xf32, #tpu.memory_space<vmem>>) attributes {dimension_semantics = [#tpu.dimension_semantics<parallel>], iteration_bounds = array<i64: 2>, scalar_prefetch = 0 : i64, scratch_operands = 0 : i64, tpu.core_type = #tpu.core_type<tc>, window_params = [{transform_indices = @transform_0, window_bounds = array<i64: 1024, 4>}, {pipeline_mode = #tpu.pipeline_mode<synchronous>, transform_indices = @transform_1, window_bounds = array<i64: 4, 32>}, {pipeline_mode = #tpu.pipeline_mode<synchronous>, transform_indices = @transform_2, window_bounds = array<i64: 1, 32>}, {pipeline_mode = #tpu.pipeline_mode<synchronous>, transform_indices = @transform_3, window_bounds = array<i64: 16, 1024>}, {transform_indices = @transform_4, window_bounds = array<i64: 16, 32>}]} {
    %c0 = arith.constant 0 : index
    %c0_0 = arith.constant 0 : index
    %0 = vector.load %arg1[%c0, %c0_0] : memref<1024x4xbf16, #tpu.memory_space<vmem>>, vector<1024x4xbf16>
    %c0_1 = arith.constant 0 : index
    %c0_2 = arith.constant 0 : index
    %1 = vector.load %arg2[%c0_1, %c0_2] : memref<4x32xbf16, #tpu.memory_space<vmem>>, vector<4x32xbf16>
    %cst = arith.constant dense<0.000000e+00> : vector<1024x32xf32>
    %2 = tpu.matmul %0, %1, %cst {dimension_numbers = #tpu.dot_dimension_numbers<[1], [0], [0], [1], [0, 0, 1, 1], [], []>} : vector<1024x4xbf16>, vector<4x32xbf16>, vector<1024x32xf32> -> vector<1024x32xf32>
    %c0_3 = arith.constant 0 : index
    %c0_4 = arith.constant 0 : index
    %3 = vector.load %arg3[%c0_3, %c0_4] : memref<1x32xf32, #tpu.memory_space<vmem>>, vector<1x32xf32>
    %4 = vector.broadcast %3 : vector<1x32xf32> to vector<1024x32xf32>
    %5 = arith.addf %2, %4 : vector<1024x32xf32>
    %6 = arith.negf %5 : vector<1024x32xf32>
    %7 = math.exp %6 : vector<1024x32xf32>
    %cst_5 = arith.constant 1.000000e+00 : f32
    %8 = vector.broadcast %cst_5 : f32 to vector<1024x32xf32>
    %9 = arith.addf %8, %7 : vector<1024x32xf32>
    %10 = arith.divf %8, %9 : vector<1024x32xf32>
    %11 = arith.mulf %5, %10 : vector<1024x32xf32>
    %c0_6 = arith.constant 0 : index
    %c0_7 = arith.constant 0 : index
    %12 = vector.load %arg4[%c0_6, %c0_7] : memref<16x1024xf32, #tpu.memory_space<vmem>>, vector<16x1024xf32>
    %cst_8 = arith.constant dense<0.000000e+00> : vector<16x32xf32>
    %13 = tpu.matmul %12, %11, %cst_8 {dimension_numbers = #tpu.dot_dimension_numbers<[1], [0], [0], [1], [0, 0, 1, 1], [], []>} : vector<16x1024xf32>, vector<1024x32xf32>, vector<16x32xf32> -> vector<16x32xf32>
    %c0_9 = arith.constant 0 : index
    %c0_10 = arith.constant 0 : index
    %14 = vector.load %arg5[%c0_9, %c0_10] : memref<16x32xf32, #tpu.memory_space<vmem>>, vector<16x32xf32>
    tpu.vector_store %arg5[%c0_9, %c0_10], %13 {strides = array<i32>} : memref<16x32xf32, #tpu.memory_space<vmem>>, vector<16x32xf32>,
    return
  }
  func.func @transform_0(%arg0: i32) -> (i32, i32) {
    %c0_i32 = arith.constant 0 : i32
    %c0_i32_0 = arith.constant 0 : i32
    return %arg0, %c0_i32 : i32, i32
  }
  func.func @transform_1(%arg0: i32) -> (i32, i32) {
    %c0_i32 = arith.constant 0 : i32
    %c0_i32_0 = arith.constant 0 : i32
    %c0_i32_1 = arith.constant 0 : i32
    return %c0_i32, %c0_i32_0 : i32, i32
  }
  func.func @transform_2(%arg0: i32) -> (i32, i32) {
    %c0_i32 = arith.constant 0 : i32
    %c0_i32_0 = arith.constant 0 : i32
    %c0_i32_1 = arith.constant 0 : i32
    return %c0_i32, %c0_i32_0 : i32, i32
  }
  func.func @transform_3(%arg0: i32) -> (i32, i32) {
    %c0_i32 = arith.constant 0 : i32
    %c0_i32_0 = arith.constant 0 : i32
    %c0_i32_1 = arith.constant 0 : i32
    return %c0_i32, %c0_i32_0 : i32, i32
  }
  func.func @transform_4(%arg0: i32) -> (i32, i32) {
    %c0_i32 = arith.constant 0 : i32
    %c0_i32_0 = arith.constant 0 : i32
    return %arg0, %c0_i32 : i32, i32
  }
}

</mosaic_0001>

<llo_original>
// kernel: _forward.1
$region0: #{_forward.1}
  #allocation0 [shape = 'u32[]', space=smem, size = 0x4, offset = 0x4, fixed_abs, tag = 'smem constant byte address 0x4 - core index']
  #allocation1 [shape = 'u32[144,128]{1,0:T(1,128)}', space=vmem, size = 0x12000, scoped, tag = 'internal scratch']
  %s0 = inlined_call_operand.vmem [shape: bf16[2048,4], index: 0, kind: input, shape index: {}]
  %s1 = inlined_call_operand.vmem [shape: bf16[4,32], index: 1, kind: input, shape index: {}]
  %s2 = inlined_call_operand.vmem [shape: f32[1,32], index: 2, kind: input, shape index: {}]
  %s3 = inlined_call_operand.vmem [shape: f32[16,1024], index: 3, kind: input, shape index: {}]
  %s4 = inlined_call_operand.hbm [shape: f32[32,32], index: 4, kind: output, shape index: {}]
  %s5 = sld [smem:[#allocation0]]
  $region49: #{_forward.1} parent=0
    _
  %s7 = ssub.s32 1, %s5
  %s8 = scalar_select 0, %s7, %s5
  $region1: #{_forward.1} parent=0
    #allocation2 [shape = 'u8[16384]{0}', space=vmem, size = 0x4000, scoped, tag = 'output window, operand 0']
    #allocation3 [shape = 's32[2]{0}', space=sflag, size = 0x8, scoped, tag = 'scoped memory for _forward.1']
    %9 = vsyncpa [#allocation3], 0
    %s10 = scalar_lea.sflag [#allocation3], 1
    %11 = vsyncpa %s10, 0
    loop: start=0, step=1, limit=4
    $region2: #{_forward.1} parent=1 // loop_pre_header
      _
    $region3: #{_forward.1} parent=1 // loop_header
      %s13 = sphi 0, %s17
      %p14 = scmp.ge.s32.totalorder %s13, 4
      %s23 = sphi 0, %s25
      %s26 = sphi 0, %s23
      %s27 = sphi 0, %s26
      %s43 = sphi 0, %s27
      %s47 = sphi 0, %s47
      %s49 = sphi 0, %s47
      %s50 = sphi 0, %s49
      %s64 = sphi 0, %s50
      %s68 = sphi 0, %s68
      %s70 = sphi 0, %s68
      %s71 = sphi 0, %s70
      %s85 = sphi 0, %s71
      %s89 = sphi 0, %s89
      %s91 = sphi 0, %s89
      %s92 = sphi 0, %s91
      %s106 = sphi 0, %s92
      %s112 = sphi 0, %s114
      %s115 = sphi 0, %s112
      %s116 = sphi 0, %s115
      %s132 = sphi 0, %s116
    $region4: #{_forward.1} parent=1 // loop_header_branch
      %16 = sbr.rel (%p14) target = $region8
    $region5: #{_forward.1} parent=1 // loop_body
      %s18 = ssub.s32 %s13, 1
      %s19 = ssub.s32 %s13, 2
      %s20 = sadd.s32 %s13, 1
      %s21 = ssub.s32 %s13, %s20
      %p22 = scmp.eq.s32.totalorder %s21, 0
      %s24 = sadd.s32 %s23, 1
      %s25 = scalar_select %p22, %s23, %s24
      %p28 = pneg %p22
      %p29 = scmp.eq.s32.totalorder %s13, 1
      %p30 = por %p28, %p29
      %p31 = scmp.ne.s32.totalorder %s23, %s26
      %p32 = scmp.eq.s32.totalorder %s13, 0
      %p33 = por %p31, %p32
      %p34 = scmp.ne.s32.totalorder %s23, %s26
      %p35 = scmp.eq.s32.totalorder %s18, 1
      %p36 = por %p34, %p35
      %p37 = scmp.ne.s32.totalorder %s26, %s27
      %p38 = scmp.eq.s32.totalorder %s18, 0
      %p39 = por %p37, %p38
      %p40 = scmp.ne.s32.totalorder %s26, %s27
      %p41 = scmp.eq.s32.totalorder %s19, 1
      %p42 = por %p40, %p41
      %p44 = scmp.ne.s32.totalorder %s27, %s43
      %p45 = scmp.eq.s32.totalorder %s19, 0
      %p46 = por %p44, %p45
      %s48 = sadd.s32 %s47, 1
      %p51 = scmp.eq.s32.totalorder %s13, 1
      %p52 = scmp.ne.s32.totalorder %s47, %s49
      %p53 = scmp.eq.s32.totalorder %s13, 0
      %p54 = por %p52, %p53
      %p55 = scmp.ne.s32.totalorder %s47, %s49
      %p56 = scmp.eq.s32.totalorder %s18, 1
      %p57 = por %p55, %p56
      %p58 = scmp.ne.s32.totalorder %s49, %s50
      %p59 = scmp.eq.s32.totalorder %s18, 0
      %p60 = por %p58, %p59
      %p61 = scmp.ne.s32.totalorder %s49, %s50
      %p62 = scmp.eq.s32.totalorder %s19, 1
      %p63 = por %p61, %p62
      %p65 = scmp.ne.s32.totalorder %s50, %s64
      %p66 = scmp.eq.s32.totalorder %s19, 0
      %p67 = por %p65, %p66
      %s69 = sadd.s32 %s68, 1
      %p72 = scmp.eq.s32.totalorder %s13, 1
      %p73 = scmp.ne.s32.totalorder %s68, %s70
      %p74 = scmp.eq.s32.totalorder %s13, 0
      %p75 = por %p73, %p74
      %p76 = scmp.ne.s32.totalorder %s68, %s70
      %p77 = scmp.eq.s32.totalorder %s18, 1
      %p78 = por %p76, %p77
      %p79 = scmp.ne.s32.totalorder %s70, %s71
      %p80 = scmp.eq.s32.totalorder %s18, 0
      %p81 = por %p79, %p80
      %p82 = scmp.ne.s32.totalorder %s70, %s71
      %p83 = scmp.eq.s32.totalorder %s19, 1
      %p84 = por %p82, %p83
      %p86 = scmp.ne.s32.totalorder %s71, %s85
      %p87 = scmp.eq.s32.totalorder %s19, 0
      %p88 = por %p86, %p87
      %s90 = sadd.s32 %s89, 1
      %p93 = scmp.eq.s32.totalorder %s13, 1
      %p94 = scmp.ne.s32.totalorder %s89, %s91
      %p95 = scmp.eq.s32.totalorder %s13, 0
      %p96 = por %p94, %p95
      %p97 = scmp.ne.s32.totalorder %s89, %s91
      %p98 = scmp.eq.s32.totalorder %s18, 1
      %p99 = por %p97, %p98
      %p100 = scmp.ne.s32.totalorder %s91, %s92
      %p101 = scmp.eq.s32.totalorder %s18, 0
      %p102 = por %p100, %p101
      %p103 = scmp.ne.s32.totalorder %s91, %s92
      %p104 = scmp.eq.s32.totalorder %s19, 1
      %p105 = por %p103, %p104
      %p107 = scmp.ne.s32.totalorder %s92, %s106
      %p108 = scmp.eq.s32.totalorder %s19, 0
      %p109 = por %p107, %p108
      %s110 = ssub.s32 %s13, %s20
      %p111 = scmp.eq.s32.totalorder %s110, 0
      %s113 = sadd.s32 %s112, 1
      %s114 = scalar_select %p111, %s112, %s113
      %p117 = pneg %p111
      %p118 = scmp.eq.s32.totalorder %s13, 1
      %p119 = por %p117, %p118
      %p120 = scmp.ne.s32.totalorder %s112, %s115
      %p121 = scmp.eq.s32.totalorder %s13, 0
      %p122 = por %p120, %p121
      %p123 = scmp.ne.s32.totalorder %s112, %s115
      %p124 = scmp.eq.s32.totalorder %s18, 1
      %p125 = por %p123, %p124
      %p126 = scmp.ne.s32.totalorder %s115, %s116
      %p127 = scmp.eq.s32.totalorder %s18, 0
      %p128 = por %p126, %p127
      %p129 = scmp.ne.s32.totalorder %s115, %s116
      %p130 = scmp.eq.s32.totalorder %s19, 1
      %p131 = por %p129, %p130
      %p133 = scmp.ne.s32.totalorder %s116, %s132
      %p134 = scmp.eq.s32.totalorder %s19, 0
      %p135 = por %p133, %p134
      %p136 = scmp.le.s32.totalorder 1, %s13
      %p137 = scmp.lt.s32.totalorder %s13, 3
      %p138 = pnand %p136, %p137
      %p139 = pneg %p138
      // Predicated region
      $region9: #{_forward.1} parent=5 // pred_check
        _
      $region10: #{_forward.1} parent=5 // pred_check_branch
        %141 = sbr.rel (%p138) target = $region12
      $region11: #{_forward.1} parent=5 // pred_region
        %s142 = ssub.s32 %s13, 1
        // Predicated region
        $region13: #{_forward.1} parent=11 // pred_check
          %p143 = pneg %p60
        $region14: #{_forward.1} parent=11 // pred_check_branch
          %145 = sbr.rel (%p143) target = $region16
        $region15: #{_forward.1} parent=11 // pred_region
          _
        $region16: #{_forward.1} parent=11 // pred_fallthru
          _
        // Predicated region
        $region17: #{_forward.1} parent=11 // pred_check
          %p146 = pneg %p81
        $region18: #{_forward.1} parent=11 // pred_check_branch
          %148 = sbr.rel (%p146) target = $region20
        $region19: #{_forward.1} parent=11 // pred_region
          _
        $region20: #{_forward.1} parent=11 // pred_fallthru
          _
        // Predicated region
        $region21: #{_forward.1} parent=11 // pred_check
          %p149 = pneg %p102
        $region22: #{_forward.1} parent=11 // pred_check_branch
          %151 = sbr.rel (%p149) target = $region24
        $region23: #{_forward.1} parent=11 // pred_region
          _
        $region24: #{_forward.1} parent=11 // pred_fallthru
          _
      $region12: #{_forward.1} parent=5 // pred_fallthru
        _
      %p152 = scmp.lt.s32.totalorder %s13, 2
      // Predicated region
      $region25: #{_forward.1} parent=5 // pred_check
        %p153 = pneg %p152
      $region26: #{_forward.1} parent=5 // pred_check_branch
        %155 = sbr.rel (%p153) target = $region28
      $region27: #{_forward.1} parent=5 // pred_region
        // Predicated region
        $region29: #{_forward.1} parent=27 // pred_check
          %p156 = pneg %p33
        $region30: #{_forward.1} parent=27 // pred_check_branch
          %158 = sbr.rel (%p156) target = $region32
        $region31: #{_forward.1} parent=27 // pred_region
          %s159 = smul.u32 128, %s13
          %p160 = scmp.lt.s32.totalorder %s159, 255
          %s161 = scalar_select %p160, %s159, 255
          %s162 = smul.addr %s161, 4
          %s163 = scalar_lea.vmem %s0, %s162
          %s164 = smul.u32 128, %s13
        $region32: #{_forward.1} parent=27 // pred_fallthru
          _
      $region28: #{_forward.1} parent=5 // pred_fallthru
        _
      %p165 = scmp.le.s32.totalorder 1, %s13
      %p166 = scmp.lt.s32.totalorder %s13, 3
      %p167 = pnand %p165, %p166
      %p168 = pneg %p167
      // Predicated region
      $region33: #{_forward.1} parent=5 // pred_check
        _
      $region34: #{_forward.1} parent=5 // pred_check_branch
        %170 = sbr.rel (%p167) target = $region36
      $region35: #{_forward.1} parent=5 // pred_region
        %s171 = ssub.s32 %s13, 1
        %s172 = smul.u32 128, %s18
        %p173 = scmp.lt.s32.totalorder %s172, 255
        %s174 = scalar_select %p173, %s172, 255
        %s175 = smul.addr %s174, 4
        %s176 = scalar_lea.vmem %s0, %s175
        %p177 = pneg %p39
        %p178 = pneg %p36
        %p179 = pneg %p60
        %p180 = pneg %p57
        %p181 = pneg %p81
        %p182 = pneg %p78
        %p183 = pneg %p102
        %p184 = pneg %p99
        %p185 = pneg %p128
        %p186 = pneg %p125
        %s187 = sand.u32 %s115, 1
        %s188 = scalar_lea.sflag [#allocation3], %s187
        %s189 = sand.u32 %s115, 1
        %s190 = smul.addr %s189, 16
        %s191 = scalar_lea.vmem [#allocation2], %s190
        %s192 = smul.u32 128, %s18
        %p193 = scmp.lt.s32.totalorder %s192, 255
        %s194 = scalar_select %p193, %s192, 255
        %s195 = smul.addr %s194, 4
        %s196 = scalar_lea.vmem %s0, %s195
        %s197 = smul.u32 128, %s18
        %s198 = smul.u32 2, %s18
        %v200 = vld [vmem:[%s196] sm:$0xf]
        %v201 = vld [vmem:[%s196 + $0x4] sm:$0xf]
        %v202 = vld [vmem:[%s196 + $0x8] sm:$0xf]
        %v203 = vld [vmem:[%s196 + $0xc] sm:$0xf]
        %v204 = vld [vmem:[%s196 + $0x10] sm:$0xf]
        %v205 = vld [vmem:[%s196 + $0x14] sm:$0xf]
        %v206 = vld [vmem:[%s196 + $0x18] sm:$0xf]
        %v207 = vld [vmem:[%s196 + $0x1c] sm:$0xf]
        %v208 = vld [vmem:[%s196 + $0x20] sm:$0xf]
        %v209 = vld [vmem:[%s196 + $0x24] sm:$0xf]
        %v210 = vld [vmem:[%s196 + $0x28] sm:$0xf]
        %v211 = vld [vmem:[%s196 + $0x2c] sm:$0xf]
        %v212 = vld [vmem:[%s196 + $0x30] sm:$0xf]
        %v213 = vld [vmem:[%s196 + $0x34] sm:$0xf]
        %v214 = vld [vmem:[%s196 + $0x38] sm:$0xf]
        %v215 = vld [vmem:[%s196 + $0x3c] sm:$0xf]
        %v216 = vld [vmem:[%s196 + $0x40] sm:$0xf]
        %v217 = vld [vmem:[%s196 + $0x44] sm:$0xf]
        %v218 = vld [vmem:[%s196 + $0x48] sm:$0xf]
        %v219 = vld [vmem:[%s196 + $0x4c] sm:$0xf]
        %v220 = vld [vmem:[%s196 + $0x50] sm:$0xf]
        %v221 = vld [vmem:[%s196 + $0x54] sm:$0xf]
        %v222 = vld [vmem:[%s196 + $0x58] sm:$0xf]
        %v223 = vld [vmem:[%s196 + $0x5c] sm:$0xf]
        %v224 = vld [vmem:[%s196 + $0x60] sm:$0xf]
        %v225 = vld [vmem:[%s196 + $0x64] sm:$0xf]
        %v226 = vld [vmem:[%s196 + $0x68] sm:$0xf]
        %v227 = vld [vmem:[%s196 + $0x6c] sm:$0xf]
        %v228 = vld [vmem:[%s196 + $0x70] sm:$0xf]
        %v229 = vld [vmem:[%s196 + $0x74] sm:$0xf]
        %v230 = vld [vmem:[%s196 + $0x78] sm:$0xf]
        %v231 = vld [vmem:[%s196 + $0x7c] sm:$0xf]
        %v232 = vld [vmem:[%s196 + $0x80] sm:$0xf]
        %v233 = vld [vmem:[%s196 + $0x84] sm:$0xf]
        %v234 = vld [vmem:[%s196 + $0x88] sm:$0xf]
        %v235 = vld [vmem:[%s196 + $0x8c] sm:$0xf]
        %v236 = vld [vmem:[%s196 + $0x90] sm:$0xf]
        %v237 = vld [vmem:[%s196 + $0x94] sm:$0xf]
        %v238 = vld [vmem:[%s196 + $0x98] sm:$0xf]
        %v239 = vld [vmem:[%s196 + $0x9c] sm:$0xf]
        %v240 = vld [vmem:[%s196 + $0xa0] sm:$0xf]
        %v241 = vld [vmem:[%s196 + $0xa4] sm:$0xf]
        %v242 = vld [vmem:[%s196 + $0xa8] sm:$0xf]
        %v243 = vld [vmem:[%s196 + $0xac] sm:$0xf]
        %v244 = vld [vmem:[%s196 + $0xb0] sm:$0xf]
        %v245 = vld [vmem:[%s196 + $0xb4] sm:$0xf]
        %v246 = vld [vmem:[%s196 + $0xb8] sm:$0xf]
        %v247 = vld [vmem:[%s196 + $0xbc] sm:$0xf]
        %v248 = vld [vmem:[%s196 + $0xc0] sm:$0xf]
        %v249 = vld [vmem:[%s196 + $0xc4] sm:$0xf]
        %v250 = vld [vmem:[%s196 + $0xc8] sm:$0xf]
        %v251 = vld [vmem:[%s196 + $0xcc] sm:$0xf]
        %v252 = vld [vmem:[%s196 + $0xd0] sm:$0xf]
        %v253 = vld [vmem:[%s196 + $0xd4] sm:$0xf]
        %v254 = vld [vmem:[%s196 + $0xd8] sm:$0xf]
        %v255 = vld [vmem:[%s196 + $0xdc] sm:$0xf]
        %v256 = vld [vmem:[%s196 + $0xe0] sm:$0xf]
        %v257 = vld [vmem:[%s196 + $0xe4] sm:$0xf]
        %v258 = vld [vmem:[%s196 + $0xe8] sm:$0xf]
        %v259 = vld [vmem:[%s196 + $0xec] sm:$0xf]
        %v260 = vld [vmem:[%s196 + $0xf0] sm:$0xf]
        %v261 = vld [vmem:[%s196 + $0xf4] sm:$0xf]
        %v262 = vld [vmem:[%s196 + $0xf8] sm:$0xf]
        %v263 = vld [vmem:[%s196 + $0xfc] sm:$0xf]
        %v264 = vld [vmem:[%s196 + $0x100] sm:$0xf]
        %v265 = vld [vmem:[%s196 + $0x104] sm:$0xf]
        %v266 = vld [vmem:[%s196 + $0x108] sm:$0xf]
        %v267 = vld [vmem:[%s196 + $0x10c] sm:$0xf]
        %v268 = vld [vmem:[%s196 + $0x110] sm:$0xf]
        %v269 = vld [vmem:[%s196 + $0x114] sm:$0xf]
        %v270 = vld [vmem:[%s196 + $0x118] sm:$0xf]
        %v271 = vld [vmem:[%s196 + $0x11c] sm:$0xf]
        %v272 = vld [vmem:[%s196 + $0x120] sm:$0xf]
        %v273 = vld [vmem:[%s196 + $0x124] sm:$0xf]
        %v274 = vld [vmem:[%s196 + $0x128] sm:$0xf]
        %v275 = vld [vmem:[%s196 + $0x12c] sm:$0xf]
        %v276 = vld [vmem:[%s196 + $0x130] sm:$0xf]
        %v277 = vld [vmem:[%s196 + $0x134] sm:$0xf]
        %v278 = vld [vmem:[%s196 + $0x138] sm:$0xf]
        %v279 = vld [vmem:[%s196 + $0x13c] sm:$0xf]
        %v280 = vld [vmem:[%s196 + $0x140] sm:$0xf]
        %v281 = vld [vmem:[%s196 + $0x144] sm:$0xf]
        %v282 = vld [vmem:[%s196 + $0x148] sm:$0xf]
        %v283 = vld [vmem:[%s196 + $0x14c] sm:$0xf]
        %v284 = vld [vmem:[%s196 + $0x150] sm:$0xf]
        %v285 = vld [vmem:[%s196 + $0x154] sm:$0xf]
        %v286 = vld [vmem:[%s196 + $0x158] sm:$0xf]
        %v287 = vld [vmem:[%s196 + $0x15c] sm:$0xf]
        %v288 = vld [vmem:[%s196 + $0x160] sm:$0xf]
        %v289 = vld [vmem:[%s196 + $0x164] sm:$0xf]
        %v290 = vld [vmem:[%s196 + $0x168] sm:$0xf]
        %v291 = vld [vmem:[%s196 + $0x16c] sm:$0xf]
        %v292 = vld [vmem:[%s196 + $0x170] sm:$0xf]
        %v293 = vld [vmem:[%s196 + $0x174] sm:$0xf]
        %v294 = vld [vmem:[%s196 + $0x178] sm:$0xf]
        %v295 = vld [vmem:[%s196 + $0x17c] sm:$0xf]
        %v296 = vld [vmem:[%s196 + $0x180] sm:$0xf]
        %v297 = vld [vmem:[%s196 + $0x184] sm:$0xf]
        %v298 = vld [vmem:[%s196 + $0x188] sm:$0xf]
        %v299 = vld [vmem:[%s196 + $0x18c] sm:$0xf]
        %v300 = vld [vmem:[%s196 + $0x190] sm:$0xf]
        %v301 = vld [vmem:[%s196 + $0x194] sm:$0xf]
        %v302 = vld [vmem:[%s196 + $0x198] sm:$0xf]
        %v303 = vld [vmem:[%s196 + $0x19c] sm:$0xf]
        %v304 = vld [vmem:[%s196 + $0x1a0] sm:$0xf]
        %v305 = vld [vmem:[%s196 + $0x1a4] sm:$0xf]
        %v306 = vld [vmem:[%s196 + $0x1a8] sm:$0xf]
        %v307 = vld [vmem:[%s196 + $0x1ac] sm:$0xf]
        %v308 = vld [vmem:[%s196 + $0x1b0] sm:$0xf]
        %v309 = vld [vmem:[%s196 + $0x1b4] sm:$0xf]
        %v310 = vld [vmem:[%s196 + $0x1b8] sm:$0xf]
        %v311 = vld [vmem:[%s196 + $0x1bc] sm:$0xf]
        %v312 = vld [vmem:[%s196 + $0x1c0] sm:$0xf]
        %v313 = vld [vmem:[%s196 + $0x1c4] sm:$0xf]
        %v314 = vld [vmem:[%s196 + $0x1c8] sm:$0xf]
        %v315 = vld [vmem:[%s196 + $0x1cc] sm:$0xf]
        %v316 = vld [vmem:[%s196 + $0x1d0] sm:$0xf]
        %v317 = vld [vmem:[%s196 + $0x1d4] sm:$0xf]
        %v318 = vld [vmem:[%s196 + $0x1d8] sm:$0xf]
        %v319 = vld [vmem:[%s196 + $0x1dc] sm:$0xf]
        %v320 = vld [vmem:[%s196 + $0x1e0] sm:$0xf]
        %v321 = vld [vmem:[%s196 + $0x1e4] sm:$0xf]
        %v322 = vld [vmem:[%s196 + $0x1e8] sm:$0xf]
        %v323 = vld [vmem:[%s196 + $0x1ec] sm:$0xf]
        %v324 = vld [vmem:[%s196 + $0x1f0] sm:$0xf]
        %v325 = vld [vmem:[%s196 + $0x1f4] sm:$0xf]
        %v326 = vld [vmem:[%s196 + $0x1f8] sm:$0xf]
        %v327 = vld [vmem:[%s196 + $0x1fc] sm:$0xf]
        %v328 = vld [vmem:[%s1] sm:$0x3]
        %v329 = vld [vmem:[%s2] sm:$0x1]
        %v331 = vlaneseq
        %v332 = vshrl.u32 %v331, 7
        %v333 = vsub.s32 0, %v332
        %v334 = vrot.slane %v329, %v333
        %v464 = vunpack.c.l.b16 %v200
        %v465 = vunpack.c.l.b16 %v201
        %v466 = vunpack.c.l.b16 %v202
        %v467 = vunpack.c.l.b16 %v203
        %v468 = vunpack.c.l.b16 %v204
        %v469 = vunpack.c.l.b16 %v205
        %v470 = vunpack.c.l.b16 %v206
        %v471 = vunpack.c.l.b16 %v207
        %v472 = vunpack.c.l.b16 %v208
        %v473 = vunpack.c.l.b16 %v209
        %v474 = vunpack.c.l.b16 %v210
        %v475 = vunpack.c.l.b16 %v211
        %v476 = vunpack.c.l.b16 %v212
        %v477 = vunpack.c.l.b16 %v213
        %v478 = vunpack.c.l.b16 %v214
        %v479 = vunpack.c.l.b16 %v215
        %v480 = vunpack.c.l.b16 %v216
        %v481 = vunpack.c.l.b16 %v217
        %v482 = vunpack.c.l.b16 %v218
        %v483 = vunpack.c.l.b16 %v219
        %v484 = vunpack.c.l.b16 %v220
        %v485 = vunpack.c.l.b16 %v221
        %v486 = vunpack.c.l.b16 %v222
        %v487 = vunpack.c.l.b16 %v223
        %v488 = vunpack.c.l.b16 %v224
        %v489 = vunpack.c.l.b16 %v225
        %v490 = vunpack.c.l.b16 %v226
        %v491 = vunpack.c.l.b16 %v227
        %v492 = vunpack.c.l.b16 %v228
        %v493 = vunpack.c.l.b16 %v229
        %v494 = vunpack.c.l.b16 %v230
        %v495 = vunpack.c.l.b16 %v231
        %v496 = vunpack.c.l.b16 %v232
        %v497 = vunpack.c.l.b16 %v233
        %v498 = vunpack.c.l.b16 %v234
        %v499 = vunpack.c.l.b16 %v235
        %v500 = vunpack.c.l.b16 %v236
        %v501 = vunpack.c.l.b16 %v237
        %v502 = vunpack.c.l.b16 %v238
        %v503 = vunpack.c.l.b16 %v239
        %v504 = vunpack.c.l.b16 %v240
        %v505 = vunpack.c.l.b16 %v241
        %v506 = vunpack.c.l.b16 %v242
        %v507 = vunpack.c.l.b16 %v243
        %v508 = vunpack.c.l.b16 %v244
        %v509 = vunpack.c.l.b16 %v245
        %v510 = vunpack.c.l.b16 %v246
        %v511 = vunpack.c.l.b16 %v247
        %v512 = vunpack.c.l.b16 %v248
        %v513 = vunpack.c.l.b16 %v249
        %v514 = vunpack.c.l.b16 %v250
        %v515 = vunpack.c.l.b16 %v251
        %v516 = vunpack.c.l.b16 %v252
        %v517 = vunpack.c.l.b16 %v253
        %v518 = vunpack.c.l.b16 %v254
        %v519 = vunpack.c.l.b16 %v255
        %v520 = vunpack.c.l.b16 %v256
        %v521 = vunpack.c.l.b16 %v257
        %v522 = vunpack.c.l.b16 %v258
        %v523 = vunpack.c.l.b16 %v259
        %v524 = vunpack.c.l.b16 %v260
        %v525 = vunpack.c.l.b16 %v261
        %v526 = vunpack.c.l.b16 %v262
        %v527 = vunpack.c.l.b16 %v263
        %v528 = vunpack.c.l.b16 %v264
        %v529 = vunpack.c.l.b16 %v265
        %v530 = vunpack.c.l.b16 %v266
        %v531 = vunpack.c.l.b16 %v267
        %v532 = vunpack.c.l.b16 %v268
        %v533 = vunpack.c.l.b16 %v269
        %v534 = vunpack.c.l.b16 %v270
        %v535 = vunpack.c.l.b16 %v271
        %v536 = vunpack.c.l.b16 %v272
        %v537 = vunpack.c.l.b16 %v273
        %v538 = vunpack.c.l.b16 %v274
        %v539 = vunpack.c.l.b16 %v275
        %v540 = vunpack.c.l.b16 %v276
        %v541 = vunpack.c.l.b16 %v277
        %v542 = vunpack.c.l.b16 %v278
        %v543 = vunpack.c.l.b16 %v279
        %v544 = vunpack.c.l.b16 %v280
        %v545 = vunpack.c.l.b16 %v281
        %v546 = vunpack.c.l.b16 %v282
        %v547 = vunpack.c.l.b16 %v283
        %v548 = vunpack.c.l.b16 %v284
        %v549 = vunpack.c.l.b16 %v285
        %v550 = vunpack.c.l.b16 %v286
        %v551 = vunpack.c.l.b16 %v287
        %v552 = vunpack.c.l.b16 %v288
        %v553 = vunpack.c.l.b16 %v289
        %v554 = vunpack.c.l.b16 %v290
        %v555 = vunpack.c.l.b16 %v291
        %v556 = vunpack.c.l.b16 %v292
        %v557 = vunpack.c.l.b16 %v293
        %v558 = vunpack.c.l.b16 %v294
        %v559 = vunpack.c.l.b16 %v295
        %v560 = vunpack.c.l.b16 %v296
        %v561 = vunpack.c.l.b16 %v297
        %v562 = vunpack.c.l.b16 %v298
        %v563 = vunpack.c.l.b16 %v299
        %v564 = vunpack.c.l.b16 %v300
        %v565 = vunpack.c.l.b16 %v301
        %v566 = vunpack.c.l.b16 %v302
        %v567 = vunpack.c.l.b16 %v303
        %v568 = vunpack.c.l.b16 %v304
        %v569 = vunpack.c.l.b16 %v305
        %v570 = vunpack.c.l.b16 %v306
        %v571 = vunpack.c.l.b16 %v307
        %v572 = vunpack.c.l.b16 %v308
        %v573 = vunpack.c.l.b16 %v309
        %v574 = vunpack.c.l.b16 %v310
        %v575 = vunpack.c.l.b16 %v311
        %v576 = vunpack.c.l.b16 %v312
        %v577 = vunpack.c.l.b16 %v313
        %v578 = vunpack.c.l.b16 %v314
        %v579 = vunpack.c.l.b16 %v315
        %v580 = vunpack.c.l.b16 %v316
        %v581 = vunpack.c.l.b16 %v317
        %v582 = vunpack.c.l.b16 %v318
        %v583 = vunpack.c.l.b16 %v319
        %v584 = vunpack.c.l.b16 %v320
        %v585 = vunpack.c.l.b16 %v321
        %v586 = vunpack.c.l.b16 %v322
        %v587 = vunpack.c.l.b16 %v323
        %v588 = vunpack.c.l.b16 %v324
        %v589 = vunpack.c.l.b16 %v325
        %v590 = vunpack.c.l.b16 %v326
        %v591 = vunpack.c.l.b16 %v327
        %v592 = vpack.c.b16 %v465, %v464
        %v593 = vpack.c.b16 %v467, %v466
        %v594 = vpack.c.b16 %v469, %v468
        %v595 = vpack.c.b16 %v471, %v470
        %v596 = vpack.c.b16 %v473, %v472
        %v597 = vpack.c.b16 %v475, %v474
        %v598 = vpack.c.b16 %v477, %v476
        %v599 = vpack.c.b16 %v479, %v478
        %v600 = vpack.c.b16 %v481, %v480
        %v601 = vpack.c.b16 %v483, %v482
        %v602 = vpack.c.b16 %v485, %v484
        %v603 = vpack.c.b16 %v487, %v486
        %v604 = vpack.c.b16 %v489, %v488
        %v605 = vpack.c.b16 %v491, %v490
        %v606 = vpack.c.b16 %v493, %v492
        %v607 = vpack.c.b16 %v495, %v494
        %v608 = vpack.c.b16 %v497, %v496
        %v609 = vpack.c.b16 %v499, %v498
        %v610 = vpack.c.b16 %v501, %v500
        %v611 = vpack.c.b16 %v503, %v502
        %v612 = vpack.c.b16 %v505, %v504
        %v613 = vpack.c.b16 %v507, %v506
        %v614 = vpack.c.b16 %v509, %v508
        %v615 = vpack.c.b16 %v511, %v510
        %v616 = vpack.c.b16 %v513, %v512
        %v617 = vpack.c.b16 %v515, %v514
        %v618 = vpack.c.b16 %v517, %v516
        %v619 = vpack.c.b16 %v519, %v518
        %v620 = vpack.c.b16 %v521, %v520
        %v621 = vpack.c.b16 %v523, %v522
        %v622 = vpack.c.b16 %v525, %v524
        %v623 = vpack.c.b16 %v527, %v526
        %v624 = vpack.c.b16 %v529, %v528
        %v625 = vpack.c.b16 %v531, %v530
        %v626 = vpack.c.b16 %v533, %v532
        %v627 = vpack.c.b16 %v535, %v534
        %v628 = vpack.c.b16 %v537, %v536
        %v629 = vpack.c.b16 %v539, %v538
        %v630 = vpack.c.b16 %v541, %v540
        %v631 = vpack.c.b16 %v543, %v542
        %v632 = vpack.c.b16 %v545, %v544
        %v633 = vpack.c.b16 %v547, %v546
        %v634 = vpack.c.b16 %v549, %v548
        %v635 = vpack.c.b16 %v551, %v550
        %v636 = vpack.c.b16 %v553, %v552
        %v637 = vpack.c.b16 %v555, %v554
        %v638 = vpack.c.b16 %v557, %v556
        %v639 = vpack.c.b16 %v559, %v558
        %v640 = vpack.c.b16 %v561, %v560
        %v641 = vpack.c.b16 %v563, %v562
        %v642 = vpack.c.b16 %v565, %v564
        %v643 = vpack.c.b16 %v567, %v566
        %v644 = vpack.c.b16 %v569, %v568
        %v645 = vpack.c.b16 %v571, %v570
        %v646 = vpack.c.b16 %v573, %v572
        %v647 = vpack.c.b16 %v575, %v574
        %v648 = vpack.c.b16 %v577, %v576
        %v649 = vpack.c.b16 %v579, %v578
        %v650 = vpack.c.b16 %v581, %v580
        %v651 = vpack.c.b16 %v583, %v582
        %v652 = vpack.c.b16 %v585, %v584
        %v653 = vpack.c.b16 %v587, %v586
        %v654 = vpack.c.b16 %v589, %v588
        %v655 = vpack.c.b16 %v591, %v590
        %vm656 = vcmask 31744
        %v658 = vsel %vm656, %v592, 0
        %v661 = vsel %vm656, %v593, 0
        %v664 = vsel %vm656, %v594, 0
        %v667 = vsel %vm656, %v595, 0
        %v670 = vsel %vm656, %v596, 0
        %v673 = vsel %vm656, %v597, 0
        %v676 = vsel %vm656, %v598, 0
        %v679 = vsel %vm656, %v599, 0
        %v682 = vsel %vm656, %v600, 0
        %v685 = vsel %vm656, %v601, 0
        %v688 = vsel %vm656, %v602, 0
        %v691 = vsel %vm656, %v603, 0
        %v694 = vsel %vm656, %v604, 0
        %v697 = vsel %vm656, %v605, 0
        %v700 = vsel %vm656, %v606, 0
        %v703 = vsel %vm656, %v607, 0
        %v706 = vsel %vm656, %v608, 0
        %v709 = vsel %vm656, %v609, 0
        %v712 = vsel %vm656, %v610, 0
        %v715 = vsel %vm656, %v611, 0
        %v718 = vsel %vm656, %v612, 0
        %v721 = vsel %vm656, %v613, 0
        %v724 = vsel %vm656, %v614, 0
        %v727 = vsel %vm656, %v615, 0
        %v730 = vsel %vm656, %v616, 0
        %v733 = vsel %vm656, %v617, 0
        %v736 = vsel %vm656, %v618, 0
        %v739 = vsel %vm656, %v619, 0
        %v742 = vsel %vm656, %v620, 0
        %v745 = vsel %vm656, %v621, 0
        %v748 = vsel %vm656, %v622, 0
        %v751 = vsel %vm656, %v623, 0
        %v754 = vsel %vm656, %v624, 0
        %v757 = vsel %vm656, %v625, 0
        %v760 = vsel %vm656, %v626, 0
        %v763 = vsel %vm656, %v627, 0
        %v766 = vsel %vm656, %v628, 0
        %v769 = vsel %vm656, %v629, 0
        %v772 = vsel %vm656, %v630, 0
        %v775 = vsel %vm656, %v631, 0
        %v778 = vsel %vm656, %v632, 0
        %v781 = vsel %vm656, %v633, 0
        %v784 = vsel %vm656, %v634, 0
        %v787 = vsel %vm656, %v635, 0
        %v790 = vsel %vm656, %v636, 0
        %v793 = vsel %vm656, %v637, 0
        %v796 = vsel %vm656, %v638, 0
        %v799 = vsel %vm656, %v639, 0
        %v802 = vsel %vm656, %v640, 0
        %v805 = vsel %vm656, %v641, 0
        %v808 = vsel %vm656, %v642, 0
        %v811 = vsel %vm656, %v643, 0
        %v814 = vsel %vm656, %v644, 0
        %v817 = vsel %vm656, %v645, 0
        %v820 = vsel %vm656, %v646, 0
        %v823 = vsel %vm656, %v647, 0
        %v826 = vsel %vm656, %v648, 0
        %v829 = vsel %vm656, %v649, 0
        %v832 = vsel %vm656, %v650, 0
        %v835 = vsel %vm656, %v651, 0
        %v838 = vsel %vm656, %v652, 0
        %v841 = vsel %vm656, %v653, 0
        %v844 = vsel %vm656, %v654, 0
        %v847 = vsel %vm656, %v655, 0
        %vm849 = vcmask 1041408
        %v851 = vsel %vm849, %v328, 0
        %853 = vmatprep.subr.bf16.mxu0 0
        %854 = vmatpush1.bf16.msra.mxu0 %v851
        %855 = vmatprep.subr.bf16.mxu0 0
        %856 = vmatpush1.bf16.msra.mxu0 0
        %857 = vmatprep.subr.bf16.mxu0 0
        %858 = vmatpush1.bf16.msra.mxu0 0
        %859 = vmatprep.subr.bf16.mxu0 0
        %860 = vmatpush1.bf16.msra.mxu0 0
        %861 = vmatprep.subr.bf16.mxu0 0
        %862 = vmatpush1.bf16.msra.mxu0 0
        %863 = vmatprep.subr.bf16.mxu0 0
        %864 = vmatpush1.bf16.msra.mxu0 0
        %865 = vmatprep.subr.bf16.mxu0 0
        %866 = vmatpush1.bf16.msra.mxu0 0
        %867 = vmatprep.subr.bf16.mxu0 0
        %868 = vmatpush1.bf16.msra.mxu0 0
        %869 = vmatprep.subr.bf16.mxu0 0
        %870 = vmatpush1.bf16.msra.mxu0 0
        %871 = vmatprep.subr.bf16.mxu0 0
        %872 = vmatpush1.bf16.msra.mxu0 0
        %873 = vmatprep.subr.bf16.mxu0 0
        %874 = vmatpush1.bf16.msra.mxu0 0
        %875 = vmatprep.subr.bf16.mxu0 0
        %876 = vmatpush1.bf16.msra.mxu0 0
        %877 = vmatprep.subr.bf16.mxu0 0
        %878 = vmatpush1.bf16.msra.mxu0 0
        %879 = vmatprep.subr.bf16.mxu0 0
        %880 = vmatpush1.bf16.msra.mxu0 0
        %881 = vmatprep.subr.bf16.mxu0 0
        %882 = vmatpush1.bf16.msra.mxu0 0
        %883 = vmatprep.subr.bf16.mxu0 0
        %884 = vmatpush1.bf16.msra.mxu0 0
        %885 = vmatprep.mubr.bf16.mxu0 0
        %886 = vmatmul.mubr.bf16.gmra.mrb[0].mxu0 %v658
        %v887 = vpop.f32.mrb[0].mxu0
        %v888 = vadd.f32 %v334, %v887
        %v889 = vpop.f32.mrb[0].mxu0
        %v890 = vpop.f32.mrb[0].mxu0
        %v891 = vadd.f32 %v334, %v890
        %v892 = vpop.f32.mrb[0].mxu0
        %893 = vmatprep.mubr.bf16.mxu0 0
        %894 = vmatmul.mubr.bf16.gmra.mrb[0].mxu0 %v661
        %v895 = vpop.f32.mrb[0].mxu0
        %v896 = vadd.f32 %v334, %v895
        %v897 = vpop.f32.mrb[0].mxu0
        %v898 = vpop.f32.mrb[0].mxu0
        %v899 = vadd.f32 %v334, %v898
        %v900 = vpop.f32.mrb[0].mxu0
        %901 = vmatprep.mubr.bf16.mxu0 0
        %902 = vmatmul.mubr.bf16.gmra.mrb[0].mxu0 %v664
        %v903 = vpop.f32.mrb[0].mxu0
        %v904 = vadd.f32 %v334, %v903
        %v905 = vpop.f32.mrb[0].mxu0
        %v906 = vpop.f32.mrb[0].mxu0
        %v907 = vadd.f32 %v334, %v906
        %v908 = vpop.f32.mrb[0].mxu0
        %909 = vmatprep.mubr.bf16.mxu0 0
        %910 = vmatmul.mubr.bf16.gmra.mrb[0].mxu0 %v667
        %v911 = vpop.f32.mrb[0].mxu0
        %v912 = vadd.f32 %v334, %v911
        %v913 = vpop.f32.mrb[0].mxu0
        %v914 = vpop.f32.mrb[0].mxu0
        %v915 = vadd.f32 %v334, %v914
        %v916 = vpop.f32.mrb[0].mxu0
        %917 = vmatprep.mubr.bf16.mxu0 0
        %918 = vmatmul.mubr.bf16.gmra.mrb[0].mxu0 %v670
        %v919 = vpop.f32.mrb[0].mxu0
        %v920 = vadd.f32 %v334, %v919
        %v921 = vpop.f32.mrb[0].mxu0
        %v922 = vpop.f32.mrb[0].mxu0
        %v923 = vadd.f32 %v334, %v922
        %v924 = vpop.f32.mrb[0].mxu0
        %925 = vmatprep.mubr.bf16.mxu0 0
        %926 = vmatmul.mubr.bf16.gmra.mrb[0].mxu0 %v673
        %v927 = vpop.f32.mrb[0].mxu0
        %v928 = vadd.f32 %v334, %v927
        %v929 = vpop.f32.mrb[0].mxu0
        %v930 = vpop.f32.mrb[0].mxu0
        %v931 = vadd.f32 %v334, %v930
        %v932 = vpop.f32.mrb[0].mxu0
        %933 = vmatprep.mubr.bf16.mxu0 0
        %934 = vmatmul.mubr.bf16.gmra.mrb[0].mxu0 %v676
        %v935 = vpop.f32.mrb[0].mxu0
        %v936 = vadd.f32 %v334, %v935
        %v937 = vpop.f32.mrb[0].mxu0
        %v938 = vpop.f32.mrb[0].mxu0
        %v939 = vadd.f32 %v334, %v938
        %v940 = vpop.f32.mrb[0].mxu0
        %941 = vmatprep.mubr.bf16.mxu0 0
        %942 = vmatmul.mubr.bf16.gmra.mrb[0].mxu0 %v679
        %v943 = vpop.f32.mrb[0].mxu0
        %v944 = vadd.f32 %v334, %v943
        %v945 = vpop.f32.mrb[0].mxu0
        %v946 = vpop.f32.mrb[0].mxu0
        %v947 = vadd.f32 %v334, %v946
        %v948 = vpop.f32.mrb[0].mxu0
        %949 = vmatprep.mubr.bf16.mxu0 0
        %950 = vmatmul.mubr.bf16.gmra.mrb[0].mxu0 %v682
        %v951 = vpop.f32.mrb[0].mxu0
        %v952 = vadd.f32 %v334, %v951
        %v953 = vpop.f32.mrb[0].mxu0
        %v954 = vpop.f32.mrb[0].mxu0
        %v955 = vadd.f32 %v334, %v954
        %v956 = vpop.f32.mrb[0].mxu0
        %957 = vmatprep.mubr.bf16.mxu0 0
        %958 = vmatmul.mubr.bf16.gmra.mrb[0].mxu0 %v685
        %v959 = vpop.f32.mrb[0].mxu0
        %v960 = vadd.f32 %v334, %v959
        %v961 = vpop.f32.mrb[0].mxu0
        %v962 = vpop.f32.mrb[0].mxu0
        %v963 = vadd.f32 %v334, %v962
        %v964 = vpop.f32.mrb[0].mxu0
        %965 = vmatprep.mubr.bf16.mxu0 0
        %966 = vmatmul.mubr.bf16.gmra.mrb[0].mxu0 %v688
        %v967 = vpop.f32.mrb[0].mxu0
        %v968 = vadd.f32 %v334, %v967
        %v969 = vpop.f32.mrb[0].mxu0
        %v970 = vpop.f32.mrb[0].mxu0
        %v971 = vadd.f32 %v334, %v970
        %v972 = vpop.f32.mrb[0].mxu0
        %973 = vmatprep.mubr.bf16.mxu0 0
        %974 = vmatmul.mubr.bf16.gmra.mrb[0].mxu0 %v691
        %v975 = vpop.f32.mrb[0].mxu0
        %v976 = vadd.f32 %v334, %v975
        %v977 = vpop.f32.mrb[0].mxu0
        %v978 = vpop.f32.mrb[0].mxu0
        %v979 = vadd.f32 %v334, %v978
        %v980 = vpop.f32.mrb[0].mxu0
        %981 = vmatprep.mubr.bf16.mxu0 0
        %982 = vmatmul.mubr.bf16.gmra.mrb[0].mxu0 %v694
        %v983 = vpop.f32.mrb[0].mxu0
        %v984 = vadd.f32 %v334, %v983
        %v985 = vpop.f32.mrb[0].mxu0
        %v986 = vpop.f32.mrb[0].mxu0
        %v987 = vadd.f32 %v334, %v986
        %v988 = vpop.f32.mrb[0].mxu0
        %989 = vmatprep.mubr.bf16.mxu0 0
        %990 = vmatmul.mubr.bf16.gmra.mrb[0].mxu0 %v697
        %v991 = vpop.f32.mrb[0].mxu0
        %v992 = vadd.f32 %v334, %v991
        %v993 = vpop.f32.mrb[0].mxu0
        %v994 = vpop.f32.mrb[0].mxu0
        %v995 = vadd.f32 %v334, %v994
        %v996 = vpop.f32.mrb[0].mxu0
        %997 = vmatprep.mubr.bf16.mxu0 0
        %998 = vmatmul.mubr.bf16.gmra.mrb[0].mxu0 %v700
        %v999 = vpop.f32.mrb[0].mxu0
        %v1000 = vadd.f32 %v334, %v999
        %v1001 = vpop.f32.mrb[0].mxu0
        %v1002 = vpop.f32.mrb[0].mxu0
        %v1003 = vadd.f32 %v334, %v1002
        %v1004 = vpop.f32.mrb[0].mxu0
        %1005 = vmatprep.mubr.bf16.mxu0 0
        %1006 = vmatmul.mubr.bf16.gmra.mrb[0].mxu0 %v703
        %v1007 = vpop.f32.mrb[0].mxu0
        %v1008 = vadd.f32 %v334, %v1007
        %v1009 = vpop.f32.mrb[0].mxu0
        %v1010 = vpop.f32.mrb[0].mxu0
        %v1011 = vadd.f32 %v334, %v1010
        %v1012 = vpop.f32.mrb[0].mxu0
        %1013 = vmatprep.mubr.bf16.mxu0 0
        %1014 = vmatmul.mubr.bf16.gmra.mrb[0].mxu0 %v706
        %v1015 = vpop.f32.mrb[0].mxu0
        %v1016 = vadd.f32 %v334, %v1015
        %v1017 = vpop.f32.mrb[0].mxu0
        %v1018 = vpop.f32.mrb[0].mxu0
        %v1019 = vadd.f32 %v334, %v1018
        %v1020 = vpop.f32.mrb[0].mxu0
        %1021 = vmatprep.mubr.bf16.mxu0 0
        %1022 = vmatmul.mubr.bf16.gmra.mrb[0].mxu0 %v709
        %v1023 = vpop.f32.mrb[0].mxu0
        %v1024 = vadd.f32 %v334, %v1023
        %v1025 = vpop.f32.mrb[0].mxu0
        %v1026 = vpop.f32.mrb[0].mxu0
        %v1027 = vadd.f32 %v334, %v1026
        %v1028 = vpop.f32.mrb[0].mxu0
        %1029 = vmatprep.mubr.bf16.mxu0 0
        %1030 = vmatmul.mubr.bf16.gmra.mrb[0].mxu0 %v712
        %v1031 = vpop.f32.mrb[0].mxu0
        %v1032 = vadd.f32 %v334, %v1031
        %v1033 = vpop.f32.mrb[0].mxu0
        %v1034 = vpop.f32.mrb[0].mxu0
        %v1035 = vadd.f32 %v334, %v1034
        %v1036 = vpop.f32.mrb[0].mxu0
        %1037 = vmatprep.mubr.bf16.mxu0 0
        %1038 = vmatmul.mubr.bf16.gmra.mrb[0].mxu0 %v715
        %v1039 = vpop.f32.mrb[0].mxu0
        %v1040 = vadd.f32 %v334, %v1039
        %v1041 = vpop.f32.mrb[0].mxu0
        %v1042 = vpop.f32.mrb[0].mxu0
        %v1043 = vadd.f32 %v334, %v1042
        %v1044 = vpop.f32.mrb[0].mxu0
        %1045 = vmatprep.mubr.bf16.mxu0 0
        %1046 = vmatmul.mubr.bf16.gmra.mrb[0].mxu0 %v718
        %v1047 = vpop.f32.mrb[0].mxu0
        %v1048 = vadd.f32 %v334, %v1047
        %v1049 = vpop.f32.mrb[0].mxu0
        %v1050 = vpop.f32.mrb[0].mxu0
        %v1051 = vadd.f32 %v334, %v1050
        %v1052 = vpop.f32.mrb[0].mxu0
        %1053 = vmatprep.mubr.bf16.mxu0 0
        %1054 = vmatmul.mubr.bf16.gmra.mrb[0].mxu0 %v721
        %v1055 = vpop.f32.mrb[0].mxu0
        %v1056 = vadd.f32 %v334, %v1055
        %v1057 = vpop.f32.mrb[0].mxu0
        %v1058 = vpop.f32.mrb[0].mxu0
        %v1059 = vadd.f32 %v334, %v1058
        %v1060 = vpop.f32.mrb[0].mxu0
        %1061 = vmatprep.mubr.bf16.mxu0 0
        %1062 = vmatmul.mubr.bf16.gmra.mrb[0].mxu0 %v724
        %v1063 = vpop.f32.mrb[0].mxu0
        %v1064 = vadd.f32 %v334, %v1063
        %v1065 = vpop.f32.mrb[0].mxu0
        %v1066 = vpop.f32.mrb[0].mxu0
        %v1067 = vadd.f32 %v334, %v1066
        %v1068 = vpop.f32.mrb[0].mxu0
        %1069 = vmatprep.mubr.bf16.mxu0 0
        %1070 = vmatmul.mubr.bf16.gmra.mrb[0].mxu0 %v727
        %v1071 = vpop.f32.mrb[0].mxu0
        %v1072 = vadd.f32 %v334, %v1071
        %v1073 = vpop.f32.mrb[0].mxu0
        %v1074 = vpop.f32.mrb[0].mxu0
        %v1075 = vadd.f32 %v334, %v1074
        %v1076 = vpop.f32.mrb[0].mxu0
        %1077 = vmatprep.mubr.bf16.mxu0 0
        %1078 = vmatmul.mubr.bf16.gmra.mrb[0].mxu0 %v730
        %v1079 = vpop.f32.mrb[0].mxu0
        %v1080 = vadd.f32 %v334, %v1079
        %v1081 = vpop.f32.mrb[0].mxu0
        %v1082 = vpop.f32.mrb[0].mxu0
        %v1083 = vadd.f32 %v334, %v1082
        %v1084 = vpop.f32.mrb[0].mxu0
        %1085 = vmatprep.mubr.bf16.mxu0 0
        %1086 = vmatmul.mubr.bf16.gmra.mrb[0].mxu0 %v733
        %v1087 = vpop.f32.mrb[0].mxu0
        %v1088 = vadd.f32 %v334, %v1087
        %v1089 = vpop.f32.mrb[0].mxu0
        %v1090 = vpop.f32.mrb[0].mxu0
        %v1091 = vadd.f32 %v334, %v1090
        %v1092 = vpop.f32.mrb[0].mxu0
        %1093 = vmatprep.mubr.bf16.mxu0 0
        %1094 = vmatmul.mubr.bf16.gmra.mrb[0].mxu0 %v736
        %v1095 = vpop.f32.mrb[0].mxu0
        %v1096 = vadd.f32 %v334, %v1095
        %v1097 = vpop.f32.mrb[0].mxu0
        %v1098 = vpop.f32.mrb[0].mxu0
        %v1099 = vadd.f32 %v334, %v1098
        %v1100 = vpop.f32.mrb[0].mxu0
        %1101 = vmatprep.mubr.bf16.mxu0 0
        %1102 = vmatmul.mubr.bf16.gmra.mrb[0].mxu0 %v739
        %v1103 = vpop.f32.mrb[0].mxu0
        %v1104 = vadd.f32 %v334, %v1103
        %v1105 = vpop.f32.mrb[0].mxu0
        %v1106 = vpop.f32.mrb[0].mxu0
        %v1107 = vadd.f32 %v334, %v1106
        %v1108 = vpop.f32.mrb[0].mxu0
        %1109 = vmatprep.mubr.bf16.mxu0 0
        %1110 = vmatmul.mubr.bf16.gmra.mrb[0].mxu0 %v742
        %v1111 = vpop.f32.mrb[0].mxu0
        %v1112 = vadd.f32 %v334, %v1111
        %v1113 = vpop.f32.mrb[0].mxu0
        %v1114 = vpop.f32.mrb[0].mxu0
        %v1115 = vadd.f32 %v334, %v1114
        %v1116 = vpop.f32.mrb[0].mxu0
        %1117 = vmatprep.mubr.bf16.mxu0 0
        %1118 = vmatmul.mubr.bf16.gmra.mrb[0].mxu0 %v745
        %v1119 = vpop.f32.mrb[0].mxu0
        %v1120 = vadd.f32 %v334, %v1119
        %v1121 = vpop.f32.mrb[0].mxu0
        %v1122 = vpop.f32.mrb[0].mxu0
        %v1123 = vadd.f32 %v334, %v1122
        %v1124 = vpop.f32.mrb[0].mxu0
        %1125 = vmatprep.mubr.bf16.mxu0 0
        %1126 = vmatmul.mubr.bf16.gmra.mrb[0].mxu0 %v748
        %v1127 = vpop.f32.mrb[0].mxu0
        %v1128 = vadd.f32 %v334, %v1127
        %v1129 = vpop.f32.mrb[0].mxu0
        %v1130 = vpop.f32.mrb[0].mxu0
        %v1131 = vadd.f32 %v334, %v1130
        %v1132 = vpop.f32.mrb[0].mxu0
        %1133 = vmatprep.mubr.bf16.mxu0 0
        %1134 = vmatmul.mubr.bf16.gmra.mrb[0].mxu0 %v751
        %v1135 = vpop.f32.mrb[0].mxu0
        %v1136 = vadd.f32 %v334, %v1135
        %v1137 = vpop.f32.mrb[0].mxu0
        %v1138 = vpop.f32.mrb[0].mxu0
        %v1139 = vadd.f32 %v334, %v1138
        %v1140 = vpop.f32.mrb[0].mxu0
        %1141 = vmatprep.mubr.bf16.mxu0 0
        %1142 = vmatmul.mubr.bf16.gmra.mrb[0].mxu0 %v754
        %v1143 = vpop.f32.mrb[0].mxu0
        %v1144 = vadd.f32 %v334, %v1143
        %v1145 = vpop.f32.mrb[0].mxu0
        %v1146 = vpop.f32.mrb[0].mxu0
        %v1147 = vadd.f32 %v334, %v1146
        %v1148 = vpop.f32.mrb[0].mxu0
        %1149 = vmatprep.mubr.bf16.mxu0 0
        %1150 = vmatmul.mubr.bf16.gmra.mrb[0].mxu0 %v757
        %v1151 = vpop.f32.mrb[0].mxu0
        %v1152 = vadd.f32 %v334, %v1151
        %v1153 = vpop.f32.mrb[0].mxu0
        %v1154 = vpop.f32.mrb[0].mxu0
        %v1155 = vadd.f32 %v334, %v1154
        %v1156 = vpop.f32.mrb[0].mxu0
        %1157 = vmatprep.mubr.bf16.mxu0 0
        %1158 = vmatmul.mubr.bf16.gmra.mrb[0].mxu0 %v760
        %v1159 = vpop.f32.mrb[0].mxu0
        %v1160 = vadd.f32 %v334, %v1159
        %v1161 = vpop.f32.mrb[0].mxu0
        %v1162 = vpop.f32.mrb[0].mxu0
        %v1163 = vadd.f32 %v334, %v1162
        %v1164 = vpop.f32.mrb[0].mxu0
        %1165 = vmatprep.mubr.bf16.mxu0 0
        %1166 = vmatmul.mubr.bf16.gmra.mrb[0].mxu0 %v763
        %v1167 = vpop.f32.mrb[0].mxu0
        %v1168 = vadd.f32 %v334, %v1167
        %v1169 = vpop.f32.mrb[0].mxu0
        %v1170 = vpop.f32.mrb[0].mxu0
        %v1171 = vadd.f32 %v334, %v1170
        %v1172 = vpop.f32.mrb[0].mxu0
        %1173 = vmatprep.mubr.bf16.mxu0 0
        %1174 = vmatmul.mubr.bf16.gmra.mrb[0].mxu0 %v766
        %v1175 = vpop.f32.mrb[0].mxu0
        %v1176 = vadd.f32 %v334, %v1175
        %v1177 = vpop.f32.mrb[0].mxu0
        %v1178 = vpop.f32.mrb[0].mxu0
        %v1179 = vadd.f32 %v334, %v1178
        %v1180 = vpop.f32.mrb[0].mxu0
        %1181 = vmatprep.mubr.bf16.mxu0 0
        %1182 = vmatmul.mubr.bf16.gmra.mrb[0].mxu0 %v769
        %v1183 = vpop.f32.mrb[0].mxu0
        %v1184 = vadd.f32 %v334, %v1183
        %v1185 = vpop.f32.mrb[0].mxu0
        %v1186 = vpop.f32.mrb[0].mxu0
        %v1187 = vadd.f32 %v334, %v1186
        %v1188 = vpop.f32.mrb[0].mxu0
        %1189 = vmatprep.mubr.bf16.mxu0 0
        %1190 = vmatmul.mubr.bf16.gmra.mrb[0].mxu0 %v772
        %v1191 = vpop.f32.mrb[0].mxu0
        %v1192 = vadd.f32 %v334, %v1191
        %v1193 = vpop.f32.mrb[0].mxu0
        %v1194 = vpop.f32.mrb[0].mxu0
        %v1195 = vadd.f32 %v334, %v1194
        %v1196 = vpop.f32.mrb[0].mxu0
        %1197 = vmatprep.mubr.bf16.mxu0 0
        %1198 = vmatmul.mubr.bf16.gmra.mrb[0].mxu0 %v775
        %v1199 = vpop.f32.mrb[0].mxu0
        %v1200 = vadd.f32 %v334, %v1199
        %v1201 = vpop.f32.mrb[0].mxu0
        %v1202 = vpop.f32.mrb[0].mxu0
        %v1203 = vadd.f32 %v334, %v1202
        %v1204 = vpop.f32.mrb[0].mxu0
        %1205 = vmatprep.mubr.bf16.mxu0 0
        %1206 = vmatmul.mubr.bf16.gmra.mrb[0].mxu0 %v778
        %v1207 = vpop.f32.mrb[0].mxu0
        %v1208 = vadd.f32 %v334, %v1207
        %v1209 = vpop.f32.mrb[0].mxu0
        %v1210 = vpop.f32.mrb[0].mxu0
        %v1211 = vadd.f32 %v334, %v1210
        %v1212 = vpop.f32.mrb[0].mxu0
        %1213 = vmatprep.mubr.bf16.mxu0 0
        %1214 = vmatmul.mubr.bf16.gmra.mrb[0].mxu0 %v781
        %v1215 = vpop.f32.mrb[0].mxu0
        %v1216 = vadd.f32 %v334, %v1215
        %v1217 = vpop.f32.mrb[0].mxu0
        %v1218 = vpop.f32.mrb[0].mxu0
        %v1219 = vadd.f32 %v334, %v1218
        %v1220 = vpop.f32.mrb[0].mxu0
        %1221 = vmatprep.mubr.bf16.mxu0 0
        %1222 = vmatmul.mubr.bf16.gmra.mrb[0].mxu0 %v784
        %v1223 = vpop.f32.mrb[0].mxu0
        %v1224 = vadd.f32 %v334, %v1223
        %v1225 = vpop.f32.mrb[0].mxu0
        %v1226 = vpop.f32.mrb[0].mxu0
        %v1227 = vadd.f32 %v334, %v1226
        %v1228 = vpop.f32.mrb[0].mxu0
        %1229 = vmatprep.mubr.bf16.mxu0 0
        %1230 = vmatmul.mubr.bf16.gmra.mrb[0].mxu0 %v787
        %v1231 = vpop.f32.mrb[0].mxu0
        %v1232 = vadd.f32 %v334, %v1231
        %v1233 = vpop.f32.mrb[0].mxu0
        %v1234 = vpop.f32.mrb[0].mxu0
        %v1235 = vadd.f32 %v334, %v1234
        %v1236 = vpop.f32.mrb[0].mxu0
        %1237 = vmatprep.mubr.bf16.mxu0 0
        %1238 = vmatmul.mubr.bf16.gmra.mrb[0].mxu0 %v790
        %v1239 = vpop.f32.mrb[0].mxu0
        %v1240 = vadd.f32 %v334, %v1239
        %v1241 = vpop.f32.mrb[0].mxu0
        %v1242 = vpop.f32.mrb[0].mxu0
        %v1243 = vadd.f32 %v334, %v1242
        %v1244 = vpop.f32.mrb[0].mxu0
        %1245 = vmatprep.mubr.bf16.mxu0 0
        %1246 = vmatmul.mubr.bf16.gmra.mrb[0].mxu0 %v793
        %v1247 = vpop.f32.mrb[0].mxu0
        %v1248 = vadd.f32 %v334, %v1247
        %v1249 = vpop.f32.mrb[0].mxu0
        %v1250 = vpop.f32.mrb[0].mxu0
        %v1251 = vadd.f32 %v334, %v1250
        %v1252 = vpop.f32.mrb[0].mxu0
        %1253 = vmatprep.mubr.bf16.mxu0 0
        %1254 = vmatmul.mubr.bf16.gmra.mrb[0].mxu0 %v796
        %v1255 = vpop.f32.mrb[0].mxu0
        %v1256 = vadd.f32 %v334, %v1255
        %v1257 = vpop.f32.mrb[0].mxu0
        %v1258 = vpop.f32.mrb[0].mxu0
        %v1259 = vadd.f32 %v334, %v1258
        %v1260 = vpop.f32.mrb[0].mxu0
        %1261 = vmatprep.mubr.bf16.mxu0 0
        %1262 = vmatmul.mubr.bf16.gmra.mrb[0].mxu0 %v799
        %v1263 = vpop.f32.mrb[0].mxu0
        %v1264 = vadd.f32 %v334, %v1263
        %v1265 = vpop.f32.mrb[0].mxu0
        %v1266 = vpop.f32.mrb[0].mxu0
        %v1267 = vadd.f32 %v334, %v1266
        %v1268 = vpop.f32.mrb[0].mxu0
        %1269 = vmatprep.mubr.bf16.mxu0 0
        %1270 = vmatmul.mubr.bf16.gmra.mrb[0].mxu0 %v802
        %v1271 = vpop.f32.mrb[0].mxu0
        %v1272 = vadd.f32 %v334, %v1271
        %v1273 = vpop.f32.mrb[0].mxu0
        %v1274 = vpop.f32.mrb[0].mxu0
        %v1275 = vadd.f32 %v334, %v1274
        %v1276 = vpop.f32.mrb[0].mxu0
        %1277 = vmatprep.mubr.bf16.mxu0 0
        %1278 = vmatmul.mubr.bf16.gmra.mrb[0].mxu0 %v805
        %v1279 = vpop.f32.mrb[0].mxu0
        %v1280 = vadd.f32 %v334, %v1279
        %v1281 = vpop.f32.mrb[0].mxu0
        %v1282 = vpop.f32.mrb[0].mxu0
        %v1283 = vadd.f32 %v334, %v1282
        %v1284 = vpop.f32.mrb[0].mxu0
        %1285 = vmatprep.mubr.bf16.mxu0 0
        %1286 = vmatmul.mubr.bf16.gmra.mrb[0].mxu0 %v808
        %v1287 = vpop.f32.mrb[0].mxu0
        %v1288 = vadd.f32 %v334, %v1287
        %v1289 = vpop.f32.mrb[0].mxu0
        %v1290 = vpop.f32.mrb[0].mxu0
        %v1291 = vadd.f32 %v334, %v1290
        %v1292 = vpop.f32.mrb[0].mxu0
        %1293 = vmatprep.mubr.bf16.mxu0 0
        %1294 = vmatmul.mubr.bf16.gmra.mrb[0].mxu0 %v811
        %v1295 = vpop.f32.mrb[0].mxu0
        %v1296 = vadd.f32 %v334, %v1295
        %v1297 = vpop.f32.mrb[0].mxu0
        %v1298 = vpop.f32.mrb[0].mxu0
        %v1299 = vadd.f32 %v334, %v1298
        %v1300 = vpop.f32.mrb[0].mxu0
        %1301 = vmatprep.mubr.bf16.mxu0 0
        %1302 = vmatmul.mubr.bf16.gmra.mrb[0].mxu0 %v814
        %v1303 = vpop.f32.mrb[0].mxu0
        %v1304 = vadd.f32 %v334, %v1303
        %v1305 = vpop.f32.mrb[0].mxu0
        %v1306 = vpop.f32.mrb[0].mxu0
        %v1307 = vadd.f32 %v334, %v1306
        %v1308 = vpop.f32.mrb[0].mxu0
        %1309 = vmatprep.mubr.bf16.mxu0 0
        %1310 = vmatmul.mubr.bf16.gmra.mrb[0].mxu0 %v817
        %v1311 = vpop.f32.mrb[0].mxu0
        %v1312 = vadd.f32 %v334, %v1311
        %v1313 = vpop.f32.mrb[0].mxu0
        %v1314 = vpop.f32.mrb[0].mxu0
        %v1315 = vadd.f32 %v334, %v1314
        %v1316 = vpop.f32.mrb[0].mxu0
        %1317 = vmatprep.mubr.bf16.mxu0 0
        %1318 = vmatmul.mubr.bf16.gmra.mrb[0].mxu0 %v820
        %v1319 = vpop.f32.mrb[0].mxu0
        %v1320 = vadd.f32 %v334, %v1319
        %v1321 = vpop.f32.mrb[0].mxu0
        %v1322 = vpop.f32.mrb[0].mxu0
        %v1323 = vadd.f32 %v334, %v1322
        %v1324 = vpop.f32.mrb[0].mxu0
        %1325 = vmatprep.mubr.bf16.mxu0 0
        %1326 = vmatmul.mubr.bf16.gmra.mrb[0].mxu0 %v823
        %v1327 = vpop.f32.mrb[0].mxu0
        %v1328 = vadd.f32 %v334, %v1327
        %v1329 = vpop.f32.mrb[0].mxu0
        %v1330 = vpop.f32.mrb[0].mxu0
        %v1331 = vadd.f32 %v334, %v1330
        %v1332 = vpop.f32.mrb[0].mxu0
        %1333 = vmatprep.mubr.bf16.mxu0 0
        %1334 = vmatmul.mubr.bf16.gmra.mrb[0].mxu0 %v826
        %v1335 = vpop.f32.mrb[0].mxu0
        %v1336 = vadd.f32 %v334, %v1335
        %v1337 = vpop.f32.mrb[0].mxu0
        %v1338 = vpop.f32.mrb[0].mxu0
        %v1339 = vadd.f32 %v334, %v1338
        %v1340 = vpop.f32.mrb[0].mxu0
        %1341 = vmatprep.mubr.bf16.mxu0 0
        %1342 = vmatmul.mubr.bf16.gmra.mrb[0].mxu0 %v829
        %v1343 = vpop.f32.mrb[0].mxu0
        %v1344 = vadd.f32 %v334, %v1343
        %v1345 = vpop.f32.mrb[0].mxu0
        %v1346 = vpop.f32.mrb[0].mxu0
        %v1347 = vadd.f32 %v334, %v1346
        %v1348 = vpop.f32.mrb[0].mxu0
        %1349 = vmatprep.mubr.bf16.mxu0 0
        %1350 = vmatmul.mubr.bf16.gmra.mrb[0].mxu0 %v832
        %v1351 = vpop.f32.mrb[0].mxu0
        %v1352 = vadd.f32 %v334, %v1351
        %v1353 = vpop.f32.mrb[0].mxu0
        %v1354 = vpop.f32.mrb[0].mxu0
        %v1355 = vadd.f32 %v334, %v1354
        %v1356 = vpop.f32.mrb[0].mxu0
        %1357 = vmatprep.mubr.bf16.mxu0 0
        %1358 = vmatmul.mubr.bf16.gmra.mrb[0].mxu0 %v835
        %v1359 = vpop.f32.mrb[0].mxu0
        %v1360 = vadd.f32 %v334, %v1359
        %v1361 = vpop.f32.mrb[0].mxu0
        %v1362 = vpop.f32.mrb[0].mxu0
        %v1363 = vadd.f32 %v334, %v1362
        %v1364 = vpop.f32.mrb[0].mxu0
        %1365 = vmatprep.mubr.bf16.mxu0 0
        %1366 = vmatmul.mubr.bf16.gmra.mrb[0].mxu0 %v838
        %v1367 = vpop.f32.mrb[0].mxu0
        %v1368 = vadd.f32 %v334, %v1367
        %v1369 = vpop.f32.mrb[0].mxu0
        %v1370 = vpop.f32.mrb[0].mxu0
        %v1371 = vadd.f32 %v334, %v1370
        %v1372 = vpop.f32.mrb[0].mxu0
        %1373 = vmatprep.mubr.bf16.mxu0 0
        %1374 = vmatmul.mubr.bf16.gmra.mrb[0].mxu0 %v841
        %v1375 = vpop.f32.mrb[0].mxu0
        %v1376 = vadd.f32 %v334, %v1375
        %v1377 = vpop.f32.mrb[0].mxu0
        %v1378 = vpop.f32.mrb[0].mxu0
        %v1379 = vadd.f32 %v334, %v1378
        %v1380 = vpop.f32.mrb[0].mxu0
        %1381 = vmatprep.mubr.bf16.mxu0 0
        %1382 = vmatmul.mubr.bf16.gmra.mrb[0].mxu0 %v844
        %v1383 = vpop.f32.mrb[0].mxu0
        %v1384 = vadd.f32 %v334, %v1383
        %v1385 = vpop.f32.mrb[0].mxu0
        %v1386 = vpop.f32.mrb[0].mxu0
        %v1387 = vadd.f32 %v334, %v1386
        %v1388 = vpop.f32.mrb[0].mxu0
        %1389 = vmatprep.mubr.bf16.mxu0 0
        %1390 = vmatmul.mubr.bf16.gmra.mrb[0].mxu0 %v847
        %v1391 = vpop.f32.mrb[0].mxu0
        %v1392 = vadd.f32 %v334, %v1391
        %v1393 = vpop.f32.mrb[0].mxu0
        %v1394 = vpop.f32.mrb[0].mxu0
        %v1395 = vadd.f32 %v334, %v1394
        %v1396 = vpop.f32.mrb[0].mxu0
        %1397 = vdwg.mxu0
        %v1398 = vxor.u32 %v888, 2147483648
        %v1399 = vxor.u32 %v891, 2147483648
        %v1400 = vxor.u32 %v896, 2147483648
        %v1401 = vxor.u32 %v899, 2147483648
        %v1402 = vxor.u32 %v904, 2147483648
        %v1403 = vxor.u32 %v907, 2147483648
        %v1404 = vxor.u32 %v912, 2147483648
        %v1405 = vxor.u32 %v915, 2147483648
        %v1406 = vxor.u32 %v920, 2147483648
        %v1407 = vxor.u32 %v923, 2147483648
        %v1408 = vxor.u32 %v928, 2147483648
        %v1409 = vxor.u32 %v931, 2147483648
        %v1410 = vxor.u32 %v936, 2147483648
        %v1411 = vxor.u32 %v939, 2147483648
        %v1412 = vxor.u32 %v944, 2147483648
        %v1413 = vxor.u32 %v947, 2147483648
        %v1414 = vxor.u32 %v952, 2147483648
        %v1415 = vxor.u32 %v955, 2147483648
        %v1416 = vxor.u32 %v960, 2147483648
        %v1417 = vxor.u32 %v963, 2147483648
        %v1418 = vxor.u32 %v968, 2147483648
        %v1419 = vxor.u32 %v971, 2147483648
        %v1420 = vxor.u32 %v976, 2147483648
        %v1421 = vxor.u32 %v979, 2147483648
        %v1422 = vxor.u32 %v984, 2147483648
        %v1423 = vxor.u32 %v987, 2147483648
        %v1424 = vxor.u32 %v992, 2147483648
        %v1425 = vxor.u32 %v995, 2147483648
        %v1426 = vxor.u32 %v1000, 2147483648
        %v1427 = vxor.u32 %v1003, 2147483648
        %v1428 = vxor.u32 %v1008, 2147483648
        %v1429 = vxor.u32 %v1011, 2147483648
        %v1430 = vxor.u32 %v1016, 2147483648
        %v1431 = vxor.u32 %v1019, 2147483648
        %v1432 = vxor.u32 %v1024, 2147483648
        %v1433 = vxor.u32 %v1027, 2147483648
        %v1434 = vxor.u32 %v1032, 2147483648
        %v1435 = vxor.u32 %v1035, 2147483648
        %v1436 = vxor.u32 %v1040, 2147483648
        %v1437 = vxor.u32 %v1043, 2147483648
        %v1438 = vxor.u32 %v1048, 2147483648
        %v1439 = vxor.u32 %v1051, 2147483648
        %v1440 = vxor.u32 %v1056, 2147483648
        %v1441 = vxor.u32 %v1059, 2147483648
        %v1442 = vxor.u32 %v1064, 2147483648
        %v1443 = vxor.u32 %v1067, 2147483648
        %v1444 = vxor.u32 %v1072, 2147483648
        %v1445 = vxor.u32 %v1075, 2147483648
        %v1446 = vxor.u32 %v1080, 2147483648
        %v1447 = vxor.u32 %v1083, 2147483648
        %v1448 = vxor.u32 %v1088, 2147483648
        %v1449 = vxor.u32 %v1091, 2147483648
        %v1450 = vxor.u32 %v1096, 2147483648
        %v1451 = vxor.u32 %v1099, 2147483648
        %v1452 = vxor.u32 %v1104, 2147483648
        %v1453 = vxor.u32 %v1107, 2147483648
        %v1454 = vxor.u32 %v1112, 2147483648
        %v1455 = vxor.u32 %v1115, 2147483648
        %v1456 = vxor.u32 %v1120, 2147483648
        %v1457 = vxor.u32 %v1123, 2147483648
        %v1458 = vxor.u32 %v1128, 2147483648
        %v1459 = vxor.u32 %v1131, 2147483648
        %v1460 = vxor.u32 %v1136, 2147483648
        %v1461 = vxor.u32 %v1139, 2147483648
        %v1462 = vxor.u32 %v1144, 2147483648
        %v1463 = vxor.u32 %v1147, 2147483648
        %v1464 = vxor.u32 %v1152, 2147483648
        %v1465 = vxor.u32 %v1155, 2147483648
        %v1466 = vxor.u32 %v1160, 2147483648
        %v1467 = vxor.u32 %v1163, 2147483648
        %v1468 = vxor.u32 %v1168, 2147483648
        %v1469 = vxor.u32 %v1171, 2147483648
        %v1470 = vxor.u32 %v1176, 2147483648
        %v1471 = vxor.u32 %v1179, 2147483648
        %v1472 = vxor.u32 %v1184, 2147483648
        %v1473 = vxor.u32 %v1187, 2147483648
        %v1474 = vxor.u32 %v1192, 2147483648
        %v1475 = vxor.u32 %v1195, 2147483648
        %v1476 = vxor.u32 %v1200, 2147483648
        %v1477 = vxor.u32 %v1203, 2147483648
        %v1478 = vxor.u32 %v1208, 2147483648
        %v1479 = vxor.u32 %v1211, 2147483648
        %v1480 = vxor.u32 %v1216, 2147483648
        %v1481 = vxor.u32 %v1219, 2147483648
        %v1482 = vxor.u32 %v1224, 2147483648
        %v1483 = vxor.u32 %v1227, 2147483648
        %v1484 = vxor.u32 %v1232, 2147483648
        %v1485 = vxor.u32 %v1235, 2147483648
        %v1486 = vxor.u32 %v1240, 2147483648
        %v1487 = vxor.u32 %v1243, 2147483648
        %v1488 = vxor.u32 %v1248, 2147483648
        %v1489 = vxor.u32 %v1251, 2147483648
        %v1490 = vxor.u32 %v1256, 2147483648
        %v1491 = vxor.u32 %v1259, 2147483648
        %v1492 = vxor.u32 %v1264, 2147483648
        %v1493 = vxor.u32 %v1267, 2147483648
        %v1494 = vxor.u32 %v1272, 2147483648
        %v1495 = vxor.u32 %v1275, 2147483648
        %v1496 = vxor.u32 %v1280, 2147483648
        %v1497 = vxor.u32 %v1283, 2147483648
        %v1498 = vxor.u32 %v1288, 2147483648
        %v1499 = vxor.u32 %v1291, 2147483648
        %v1500 = vxor.u32 %v1296, 2147483648
        %v1501 = vxor.u32 %v1299, 2147483648
        %v1502 = vxor.u32 %v1304, 2147483648
        %v1503 = vxor.u32 %v1307, 2147483648
        %v1504 = vxor.u32 %v1312, 2147483648
        %v1505 = vxor.u32 %v1315, 2147483648
        %v1506 = vxor.u32 %v1320, 2147483648
        %v1507 = vxor.u32 %v1323, 2147483648
        %v1508 = vxor.u32 %v1328, 2147483648
        %v1509 = vxor.u32 %v1331, 2147483648
        %v1510 = vxor.u32 %v1336, 2147483648
        %v1511 = vxor.u32 %v1339, 2147483648
        %v1512 = vxor.u32 %v1344, 2147483648
        %v1513 = vxor.u32 %v1347, 2147483648
        %v1514 = vxor.u32 %v1352, 2147483648
        %v1515 = vxor.u32 %v1355, 2147483648
        %v1516 = vxor.u32 %v1360, 2147483648
        %v1517 = vxor.u32 %v1363, 2147483648
        %v1518 = vxor.u32 %v1368, 2147483648
        %v1519 = vxor.u32 %v1371, 2147483648
        %v1520 = vxor.u32 %v1376, 2147483648
        %v1521 = vxor.u32 %v1379, 2147483648
        %v1522 = vxor.u32 %v1384, 2147483648
        %v1523 = vxor.u32 %v1387, 2147483648
        %v1524 = vxor.u32 %v1392, 2147483648
        %v1525 = vxor.u32 %v1395, 2147483648
        %v1526 = vmul.f32 %v1398, 1.442695
        %v1527 = vpow.pop %v1526
        %v1528 = vmul.f32 %v1399, 1.442695
        %v1529 = vpow.pop %v1528
        %v1530 = vmul.f32 %v1400, 1.442695
        %v1531 = vpow.pop %v1530
        %v1532 = vmul.f32 %v1401, 1.442695
        %v1533 = vpow.pop %v1532
        %v1534 = vmul.f32 %v1402, 1.442695
        %v1535 = vpow.pop %v1534
        %v1536 = vmul.f32 %v1403, 1.442695
        %v1537 = vpow.pop %v1536
        %v1538 = vmul.f32 %v1404, 1.442695
        %v1539 = vpow.pop %v1538
        %v1540 = vmul.f32 %v1405, 1.442695
        %v1541 = vpow.pop %v1540
        %v1542 = vmul.f32 %v1406, 1.442695
        %v1543 = vpow.pop %v1542
        %v1544 = vmul.f32 %v1407, 1.442695
        %v1545 = vpow.pop %v1544
        %v1546 = vmul.f32 %v1408, 1.442695
        %v1547 = vpow.pop %v1546
        %v1548 = vmul.f32 %v1409, 1.442695
        %v1549 = vpow.pop %v1548
        %v1550 = vmul.f32 %v1410, 1.442695
        %v1551 = vpow.pop %v1550
        %v1552 = vmul.f32 %v1411, 1.442695
        %v1553 = vpow.pop %v1552
        %v1554 = vmul.f32 %v1412, 1.442695
        %v1555 = vpow.pop %v1554
        %v1556 = vmul.f32 %v1413, 1.442695
        %v1557 = vpow.pop %v1556
        %v1558 = vmul.f32 %v1414, 1.442695
        %v1559 = vpow.pop %v1558
        %v1560 = vmul.f32 %v1415, 1.442695
        %v1561 = vpow.pop %v1560
        %v1562 = vmul.f32 %v1416, 1.442695
        %v1563 = vpow.pop %v1562
        %v1564 = vmul.f32 %v1417, 1.442695
        %v1565 = vpow.pop %v1564
        %v1566 = vmul.f32 %v1418, 1.442695
        %v1567 = vpow.pop %v1566
        %v1568 = vmul.f32 %v1419, 1.442695
        %v1569 = vpow.pop %v1568
        %v1570 = vmul.f32 %v1420, 1.442695
        %v1571 = vpow.pop %v1570
        %v1572 = vmul.f32 %v1421, 1.442695
        %v1573 = vpow.pop %v1572
        %v1574 = vmul.f32 %v1422, 1.442695
        %v1575 = vpow.pop %v1574
        %v1576 = vmul.f32 %v1423, 1.442695
        %v1577 = vpow.pop %v1576
        %v1578 = vmul.f32 %v1424, 1.442695
        %v1579 = vpow.pop %v1578
        %v1580 = vmul.f32 %v1425, 1.442695
        %v1581 = vpow.pop %v1580
        %v1582 = vmul.f32 %v1426, 1.442695
        %v1583 = vpow.pop %v1582
        %v1584 = vmul.f32 %v1427, 1.442695
        %v1585 = vpow.pop %v1584
        %v1586 = vmul.f32 %v1428, 1.442695
        %v1587 = vpow.pop %v1586
        %v1588 = vmul.f32 %v1429, 1.442695
        %v1589 = vpow.pop %v1588
        %v1590 = vmul.f32 %v1430, 1.442695
        %v1591 = vpow.pop %v1590
        %v1592 = vmul.f32 %v1431, 1.442695
        %v1593 = vpow.pop %v1592
        %v1594 = vmul.f32 %v1432, 1.442695
        %v1595 = vpow.pop %v1594
        %v1596 = vmul.f32 %v1433, 1.442695
        %v1597 = vpow.pop %v1596
        %v1598 = vmul.f32 %v1434, 1.442695
        %v1599 = vpow.pop %v1598
        %v1600 = vmul.f32 %v1435, 1.442695
        %v1601 = vpow.pop %v1600
        %v1602 = vmul.f32 %v1436, 1.442695
        %v1603 = vpow.pop %v1602
        %v1604 = vmul.f32 %v1437, 1.442695
        %v1605 = vpow.pop %v1604
        %v1606 = vmul.f32 %v1438, 1.442695
        %v1607 = vpow.pop %v1606
        %v1608 = vmul.f32 %v1439, 1.442695
        %v1609 = vpow.pop %v1608
        %v1610 = vmul.f32 %v1440, 1.442695
        %v1611 = vpow.pop %v1610
        %v1612 = vmul.f32 %v1441, 1.442695
        %v1613 = vpow.pop %v1612
        %v1614 = vmul.f32 %v1442, 1.442695
        %v1615 = vpow.pop %v1614
        %v1616 = vmul.f32 %v1443, 1.442695
        %v1617 = vpow.pop %v1616
        %v1618 = vmul.f32 %v1444, 1.442695
        %v1619 = vpow.pop %v1618
        %v1620 = vmul.f32 %v1445, 1.442695
        %v1621 = vpow.pop %v1620
        %v1622 = vmul.f32 %v1446, 1.442695
        %v1623 = vpow.pop %v1622
        %v1624 = vmul.f32 %v1447, 1.442695
        %v1625 = vpow.pop %v1624
        %v1626 = vmul.f32 %v1448, 1.442695
        %v1627 = vpow.pop %v1626
        %v1628 = vmul.f32 %v1449, 1.442695
        %v1629 = vpow.pop %v1628
        %v1630 = vmul.f32 %v1450, 1.442695
        %v1631 = vpow.pop %v1630
        %v1632 = vmul.f32 %v1451, 1.442695
        %v1633 = vpow.pop %v1632
        %v1634 = vmul.f32 %v1452, 1.442695
        %v1635 = vpow.pop %v1634
        %v1636 = vmul.f32 %v1453, 1.442695
        %v1637 = vpow.pop %v1636
        %v1638 = vmul.f32 %v1454, 1.442695
        %v1639 = vpow.pop %v1638
        %v1640 = vmul.f32 %v1455, 1.442695
        %v1641 = vpow.pop %v1640
        %v1642 = vmul.f32 %v1456, 1.442695
        %v1643 = vpow.pop %v1642
        %v1644 = vmul.f32 %v1457, 1.442695
        %v1645 = vpow.pop %v1644
        %v1646 = vmul.f32 %v1458, 1.442695
        %v1647 = vpow.pop %v1646
        %v1648 = vmul.f32 %v1459, 1.442695
        %v1649 = vpow.pop %v1648
        %v1650 = vmul.f32 %v1460, 1.442695
        %v1651 = vpow.pop %v1650
        %v1652 = vmul.f32 %v1461, 1.442695
        %v1653 = vpow.pop %v1652
        %v1654 = vmul.f32 %v1462, 1.442695
        %v1655 = vpow.pop %v1654
        %v1656 = vmul.f32 %v1463, 1.442695
        %v1657 = vpow.pop %v1656
        %v1658 = vmul.f32 %v1464, 1.442695
        %v1659 = vpow.pop %v1658
        %v1660 = vmul.f32 %v1465, 1.442695
        %v1661 = vpow.pop %v1660
        %v1662 = vmul.f32 %v1466, 1.442695
        %v1663 = vpow.pop %v1662
        %v1664 = vmul.f32 %v1467, 1.442695
        %v1665 = vpow.pop %v1664
        %v1666 = vmul.f32 %v1468, 1.442695
        %v1667 = vpow.pop %v1666
        %v1668 = vmul.f32 %v1469, 1.442695
        %v1669 = vpow.pop %v1668
        %v1670 = vmul.f32 %v1470, 1.442695
        %v1671 = vpow.pop %v1670
        %v1672 = vmul.f32 %v1471, 1.442695
        %v1673 = vpow.pop %v1672
        %v1674 = vmul.f32 %v1472, 1.442695
        %v1675 = vpow.pop %v1674
        %v1676 = vmul.f32 %v1473, 1.442695
        %v1677 = vpow.pop %v1676
        %v1678 = vmul.f32 %v1474, 1.442695
        %v1679 = vpow.pop %v1678
        %v1680 = vmul.f32 %v1475, 1.442695
        %v1681 = vpow.pop %v1680
        %v1682 = vmul.f32 %v1476, 1.442695
        %v1683 = vpow.pop %v1682
        %v1684 = vmul.f32 %v1477, 1.442695
        %v1685 = vpow.pop %v1684
        %v1686 = vmul.f32 %v1478, 1.442695
        %v1687 = vpow.pop %v1686
        %v1688 = vmul.f32 %v1479, 1.442695
        %v1689 = vpow.pop %v1688
        %v1690 = vmul.f32 %v1480, 1.442695
        %v1691 = vpow.pop %v1690
        %v1692 = vmul.f32 %v1481, 1.442695
        %v1693 = vpow.pop %v1692
        %v1694 = vmul.f32 %v1482, 1.442695
        %v1695 = vpow.pop %v1694
        %v1696 = vmul.f32 %v1483, 1.442695
        %v1697 = vpow.pop %v1696
        %v1698 = vmul.f32 %v1484, 1.442695
        %v1699 = vpow.pop %v1698
        %v1700 = vmul.f32 %v1485, 1.442695
        %v1701 = vpow.pop %v1700
        %v1702 = vmul.f32 %v1486, 1.442695
        %v1703 = vpow.pop %v1702
        %v1704 = vmul.f32 %v1487, 1.442695
        %v1705 = vpow.pop %v1704
        %v1706 = vmul.f32 %v1488, 1.442695
        %v1707 = vpow.pop %v1706
        %v1708 = vmul.f32 %v1489, 1.442695
        %v1709 = vpow.pop %v1708
        %v1710 = vmul.f32 %v1490, 1.442695
        %v1711 = vpow.pop %v1710
        %v1712 = vmul.f32 %v1491, 1.442695
        %v1713 = vpow.pop %v1712
        %v1714 = vmul.f32 %v1492, 1.442695
        %v1715 = vpow.pop %v1714
        %v1716 = vmul.f32 %v1493, 1.442695
        %v1717 = vpow.pop %v1716
        %v1718 = vmul.f32 %v1494, 1.442695
        %v1719 = vpow.pop %v1718
        %v1720 = vmul.f32 %v1495, 1.442695
        %v1721 = vpow.pop %v1720
        %v1722 = vmul.f32 %v1496, 1.442695
        %v1723 = vpow.pop %v1722
        %v1724 = vmul.f32 %v1497, 1.442695
        %v1725 = vpow.pop %v1724
        %v1726 = vmul.f32 %v1498, 1.442695
        %v1727 = vpow.pop %v1726
        %v1728 = vmul.f32 %v1499, 1.442695
        %v1729 = vpow.pop %v1728
        %v1730 = vmul.f32 %v1500, 1.442695
        %v1731 = vpow.pop %v1730
        %v1732 = vmul.f32 %v1501, 1.442695
        %v1733 = vpow.pop %v1732
        %v1734 = vmul.f32 %v1502, 1.442695
        %v1735 = vpow.pop %v1734
        %v1736 = vmul.f32 %v1503, 1.442695
        %v1737 = vpow.pop %v1736
        %v1738 = vmul.f32 %v1504, 1.442695
        %v1739 = vpow.pop %v1738
        %v1740 = vmul.f32 %v1505, 1.442695
        %v1741 = vpow.pop %v1740
        %v1742 = vmul.f32 %v1506, 1.442695
        %v1743 = vpow.pop %v1742
        %v1744 = vmul.f32 %v1507, 1.442695
        %v1745 = vpow.pop %v1744
        %v1746 = vmul.f32 %v1508, 1.442695
        %v1747 = vpow.pop %v1746
        %v1748 = vmul.f32 %v1509, 1.442695
        %v1749 = vpow.pop %v1748
        %v1750 = vmul.f32 %v1510, 1.442695
        %v1751 = vpow.pop %v1750
        %v1752 = vmul.f32 %v1511, 1.442695
        %v1753 = vpow.pop %v1752
        %v1754 = vmul.f32 %v1512, 1.442695
        %v1755 = vpow.pop %v1754
        %v1756 = vmul.f32 %v1513, 1.442695
        %v1757 = vpow.pop %v1756
        %v1758 = vmul.f32 %v1514, 1.442695
        %v1759 = vpow.pop %v1758
        %v1760 = vmul.f32 %v1515, 1.442695
        %v1761 = vpow.pop %v1760
        %v1762 = vmul.f32 %v1516, 1.442695
        %v1763 = vpow.pop %v1762
        %v1764 = vmul.f32 %v1517, 1.442695
        %v1765 = vpow.pop %v1764
        %v1766 = vmul.f32 %v1518, 1.442695
        %v1767 = vpow.pop %v1766
        %v1768 = vmul.f32 %v1519, 1.442695
        %v1769 = vpow.pop %v1768
        %v1770 = vmul.f32 %v1520, 1.442695
        %v1771 = vpow.pop %v1770
        %v1772 = vmul.f32 %v1521, 1.442695
        %v1773 = vpow.pop %v1772
        %v1774 = vmul.f32 %v1522, 1.442695
        %v1775 = vpow.pop %v1774
        %v1776 = vmul.f32 %v1523, 1.442695
        %v1777 = vpow.pop %v1776
        %v1778 = vmul.f32 %v1524, 1.442695
        %v1779 = vpow.pop %v1778
        %v1780 = vmul.f32 %v1525, 1.442695
        %v1781 = vpow.pop %v1780
        %v1782 = vadd.f32 %v1527, 1.0
        %v1783 = vadd.f32 %v1529, 1.0
        %v1784 = vadd.f32 %v1531, 1.0
        %v1785 = vadd.f32 %v1533, 1.0
        %v1786 = vadd.f32 %v1535, 1.0
        %v1787 = vadd.f32 %v1537, 1.0
        %v1788 = vadd.f32 %v1539, 1.0
        %v1789 = vadd.f32 %v1541, 1.0
        %v1790 = vadd.f32 %v1543, 1.0
        %v1791 = vadd.f32 %v1545, 1.0
        %v1792 = vadd.f32 %v1547, 1.0
        %v1793 = vadd.f32 %v1549, 1.0
        %v1794 = vadd.f32 %v1551, 1.0
        %v1795 = vadd.f32 %v1553, 1.0
        %v1796 = vadd.f32 %v1555, 1.0
        %v1797 = vadd.f32 %v1557, 1.0
        %v1798 = vadd.f32 %v1559, 1.0
        %v1799 = vadd.f32 %v1561, 1.0
        %v1800 = vadd.f32 %v1563, 1.0
        %v1801 = vadd.f32 %v1565, 1.0
        %v1802 = vadd.f32 %v1567, 1.0
        %v1803 = vadd.f32 %v1569, 1.0
        %v1804 = vadd.f32 %v1571, 1.0
        %v1805 = vadd.f32 %v1573, 1.0
        %v1806 = vadd.f32 %v1575, 1.0
        %v1807 = vadd.f32 %v1577, 1.0
        %v1808 = vadd.f32 %v1579, 1.0
        %v1809 = vadd.f32 %v1581, 1.0
        %v1810 = vadd.f32 %v1583, 1.0
        %v1811 = vadd.f32 %v1585, 1.0
        %v1812 = vadd.f32 %v1587, 1.0
        %v1813 = vadd.f32 %v1589, 1.0
        %v1814 = vadd.f32 %v1591, 1.0
        %v1815 = vadd.f32 %v1593, 1.0
        %v1816 = vadd.f32 %v1595, 1.0
        %v1817 = vadd.f32 %v1597, 1.0
        %v1818 = vadd.f32 %v1599, 1.0
        %v1819 = vadd.f32 %v1601, 1.0
        %v1820 = vadd.f32 %v1603, 1.0
        %v1821 = vadd.f32 %v1605, 1.0
        %v1822 = vadd.f32 %v1607, 1.0
        %v1823 = vadd.f32 %v1609, 1.0
        %v1824 = vadd.f32 %v1611, 1.0
        %v1825 = vadd.f32 %v1613, 1.0
        %v1826 = vadd.f32 %v1615, 1.0
        %v1827 = vadd.f32 %v1617, 1.0
        %v1828 = vadd.f32 %v1619, 1.0
        %v1829 = vadd.f32 %v1621, 1.0
        %v1830 = vadd.f32 %v1623, 1.0
        %v1831 = vadd.f32 %v1625, 1.0
        %v1832 = vadd.f32 %v1627, 1.0
        %v1833 = vadd.f32 %v1629, 1.0
        %v1834 = vadd.f32 %v1631, 1.0
        %v1835 = vadd.f32 %v1633, 1.0
        %v1836 = vadd.f32 %v1635, 1.0
        %v1837 = vadd.f32 %v1637, 1.0
        %v1838 = vadd.f32 %v1639, 1.0
        %v1839 = vadd.f32 %v1641, 1.0
        %v1840 = vadd.f32 %v1643, 1.0
        %v1841 = vadd.f32 %v1645, 1.0
        %v1842 = vadd.f32 %v1647, 1.0
        %v1843 = vadd.f32 %v1649, 1.0
        %v1844 = vadd.f32 %v1651, 1.0
        %v1845 = vadd.f32 %v1653, 1.0
        %v1846 = vadd.f32 %v1655, 1.0
        %v1847 = vadd.f32 %v1657, 1.0
        %v1848 = vadd.f32 %v1659, 1.0
        %v1849 = vadd.f32 %v1661, 1.0
        %v1850 = vadd.f32 %v1663, 1.0
        %v1851 = vadd.f32 %v1665, 1.0
        %v1852 = vadd.f32 %v1667, 1.0
        %v1853 = vadd.f32 %v1669, 1.0
        %v1854 = vadd.f32 %v1671, 1.0
        %v1855 = vadd.f32 %v1673, 1.0
        %v1856 = vadd.f32 %v1675, 1.0
        %v1857 = vadd.f32 %v1677, 1.0
        %v1858 = vadd.f32 %v1679, 1.0
        %v1859 = vadd.f32 %v1681, 1.0
        %v1860 = vadd.f32 %v1683, 1.0
        %v1861 = vadd.f32 %v1685, 1.0
        %v1862 = vadd.f32 %v1687, 1.0
        %v1863 = vadd.f32 %v1689, 1.0
        %v1864 = vadd.f32 %v1691, 1.0
        %v1865 = vadd.f32 %v1693, 1.0
        %v1866 = vadd.f32 %v1695, 1.0
        %v1867 = vadd.f32 %v1697, 1.0
        %v1868 = vadd.f32 %v1699, 1.0
        %v1869 = vadd.f32 %v1701, 1.0
        %v1870 = vadd.f32 %v1703, 1.0
        %v1871 = vadd.f32 %v1705, 1.0
        %v1872 = vadd.f32 %v1707, 1.0
        %v1873 = vadd.f32 %v1709, 1.0
        %v1874 = vadd.f32 %v1711, 1.0
        %v1875 = vadd.f32 %v1713, 1.0
        %v1876 = vadd.f32 %v1715, 1.0
        %v1877 = vadd.f32 %v1717, 1.0
        %v1878 = vadd.f32 %v1719, 1.0
        %v1879 = vadd.f32 %v1721, 1.0
        %v1880 = vadd.f32 %v1723, 1.0
        %v1881 = vadd.f32 %v1725, 1.0
        %v1882 = vadd.f32 %v1727, 1.0
        %v1883 = vadd.f32 %v1729, 1.0
        %v1884 = vadd.f32 %v1731, 1.0
        %v1885 = vadd.f32 %v1733, 1.0
        %v1886 = vadd.f32 %v1735, 1.0
        %v1887 = vadd.f32 %v1737, 1.0
        %v1888 = vadd.f32 %v1739, 1.0
        %v1889 = vadd.f32 %v1741, 1.0
        %v1890 = vadd.f32 %v1743, 1.0
        %v1891 = vadd.f32 %v1745, 1.0
        %v1892 = vadd.f32 %v1747, 1.0
        %v1893 = vadd.f32 %v1749, 1.0
        %v1894 = vadd.f32 %v1751, 1.0
        %v1895 = vadd.f32 %v1753, 1.0
        %v1896 = vadd.f32 %v1755, 1.0
        %v1897 = vadd.f32 %v1757, 1.0
        %v1898 = vadd.f32 %v1759, 1.0
        %v1899 = vadd.f32 %v1761, 1.0
        %v1900 = vadd.f32 %v1763, 1.0
        %v1901 = vadd.f32 %v1765, 1.0
        %v1902 = vadd.f32 %v1767, 1.0
        %v1903 = vadd.f32 %v1769, 1.0
        %v1904 = vadd.f32 %v1771, 1.0
        %v1905 = vadd.f32 %v1773, 1.0
        %v1906 = vadd.f32 %v1775, 1.0
        %v1907 = vadd.f32 %v1777, 1.0
        %v1908 = vadd.f32 %v1779, 1.0
        %v1909 = vadd.f32 %v1781, 1.0
        %v1910 = vrcp.pop %v1782
        %v1911 = vmul.f32 1.0, %v1910
        %v1912 = vrcp.pop %v1783
        %v1913 = vmul.f32 1.0, %v1912
        %v1914 = vrcp.pop %v1784
        %v1915 = vmul.f32 1.0, %v1914
        %v1916 = vrcp.pop %v1785
        %v1917 = vmul.f32 1.0, %v1916
        %v1918 = vrcp.pop %v1786
        %v1919 = vmul.f32 1.0, %v1918
        %v1920 = vrcp.pop %v1787
        %v1921 = vmul.f32 1.0, %v1920
        %v1922 = vrcp.pop %v1788
        %v1923 = vmul.f32 1.0, %v1922
        %v1924 = vrcp.pop %v1789
        %v1925 = vmul.f32 1.0, %v1924
        %v1926 = vrcp.pop %v1790
        %v1927 = vmul.f32 1.0, %v1926
        %v1928 = vrcp.pop %v1791
        %v1929 = vmul.f32 1.0, %v1928
        %v1930 = vrcp.pop %v1792
        %v1931 = vmul.f32 1.0, %v1930
        %v1932 = vrcp.pop %v1793
        %v1933 = vmul.f32 1.0, %v1932
        %v1934 = vrcp.pop %v1794
        %v1935 = vmul.f32 1.0, %v1934
        %v1936 = vrcp.pop %v1795
        %v1937 = vmul.f32 1.0, %v1936
        %v1938 = vrcp.pop %v1796
        %v1939 = vmul.f32 1.0, %v1938
        %v1940 = vrcp.pop %v1797
        %v1941 = vmul.f32 1.0, %v1940
        %v1942 = vrcp.pop %v1798
        %v1943 = vmul.f32 1.0, %v1942
        %v1944 = vrcp.pop %v1799
        %v1945 = vmul.f32 1.0, %v1944
        %v1946 = vrcp.pop %v1800
        %v1947 = vmul.f32 1.0, %v1946
        %v1948 = vrcp.pop %v1801
        %v1949 = vmul.f32 1.0, %v1948
        %v1950 = vrcp.pop %v1802
        %v1951 = vmul.f32 1.0, %v1950
        %v1952 = vrcp.pop %v1803
        %v1953 = vmul.f32 1.0, %v1952
        %v1954 = vrcp.pop %v1804
        %v1955 = vmul.f32 1.0, %v1954
        %v1956 = vrcp.pop %v1805
        %v1957 = vmul.f32 1.0, %v1956
        %v1958 = vrcp.pop %v1806
        %v1959 = vmul.f32 1.0, %v1958
        %v1960 = vrcp.pop %v1807
        %v1961 = vmul.f32 1.0, %v1960
        %v1962 = vrcp.pop %v1808
        %v1963 = vmul.f32 1.0, %v1962
        %v1964 = vrcp.pop %v1809
        %v1965 = vmul.f32 1.0, %v1964
        %v1966 = vrcp.pop %v1810
        %v1967 = vmul.f32 1.0, %v1966
        %v1968 = vrcp.pop %v1811
        %v1969 = vmul.f32 1.0, %v1968
        %v1970 = vrcp.pop %v1812
        %v1971 = vmul.f32 1.0, %v1970
        %v1972 = vrcp.pop %v1813
        %v1973 = vmul.f32 1.0, %v1972
        %v1974 = vrcp.pop %v1814
        %v1975 = vmul.f32 1.0, %v1974
        %v1976 = vrcp.pop %v1815
        %v1977 = vmul.f32 1.0, %v1976
        %v1978 = vrcp.pop %v1816
        %v1979 = vmul.f32 1.0, %v1978
        %v1980 = vrcp.pop %v1817
        %v1981 = vmul.f32 1.0, %v1980
        %v1982 = vrcp.pop %v1818
        %v1983 = vmul.f32 1.0, %v1982
        %v1984 = vrcp.pop %v1819
        %v1985 = vmul.f32 1.0, %v1984
        %v1986 = vrcp.pop %v1820
        %v1987 = vmul.f32 1.0, %v1986
        %v1988 = vrcp.pop %v1821
        %v1989 = vmul.f32 1.0, %v1988
        %v1990 = vrcp.pop %v1822
        %v1991 = vmul.f32 1.0, %v1990
        %v1992 = vrcp.pop %v1823
        %v1993 = vmul.f32 1.0, %v1992
        %v1994 = vrcp.pop %v1824
        %v1995 = vmul.f32 1.0, %v1994
        %v1996 = vrcp.pop %v1825
        %v1997 = vmul.f32 1.0, %v1996
        %v1998 = vrcp.pop %v1826
        %v1999 = vmul.f32 1.0, %v1998
        %v2000 = vrcp.pop %v1827
        %v2001 = vmul.f32 1.0, %v2000
        %v2002 = vrcp.pop %v1828
        %v2003 = vmul.f32 1.0, %v2002
        %v2004 = vrcp.pop %v1829
        %v2005 = vmul.f32 1.0, %v2004
        %v2006 = vrcp.pop %v1830
        %v2007 = vmul.f32 1.0, %v2006
        %v2008 = vrcp.pop %v1831
        %v2009 = vmul.f32 1.0, %v2008
        %v2010 = vrcp.pop %v1832
        %v2011 = vmul.f32 1.0, %v2010
        %v2012 = vrcp.pop %v1833
        %v2013 = vmul.f32 1.0, %v2012
        %v2014 = vrcp.pop %v1834
        %v2015 = vmul.f32 1.0, %v2014
        %v2016 = vrcp.pop %v1835
        %v2017 = vmul.f32 1.0, %v2016
        %v2018 = vrcp.pop %v1836
        %v2019 = vmul.f32 1.0, %v2018
        %v2020 = vrcp.pop %v1837
        %v2021 = vmul.f32 1.0, %v2020
        %v2022 = vrcp.pop %v1838
        %v2023 = vmul.f32 1.0, %v2022
        %v2024 = vrcp.pop %v1839
        %v2025 = vmul.f32 1.0, %v2024
        %v2026 = vrcp.pop %v1840
        %v2027 = vmul.f32 1.0, %v2026
        %v2028 = vrcp.pop %v1841
        %v2029 = vmul.f32 1.0, %v2028
        %v2030 = vrcp.pop %v1842
        %v2031 = vmul.f32 1.0, %v2030
        %v2032 = vrcp.pop %v1843
        %v2033 = vmul.f32 1.0, %v2032
        %v2034 = vrcp.pop %v1844
        %v2035 = vmul.f32 1.0, %v2034
        %v2036 = vrcp.pop %v1845
        %v2037 = vmul.f32 1.0, %v2036
        %v2038 = vrcp.pop %v1846
        %v2039 = vmul.f32 1.0, %v2038
        %v2040 = vrcp.pop %v1847
        %v2041 = vmul.f32 1.0, %v2040
        %v2042 = vrcp.pop %v1848
        %v2043 = vmul.f32 1.0, %v2042
        %v2044 = vrcp.pop %v1849
        %v2045 = vmul.f32 1.0, %v2044
        %v2046 = vrcp.pop %v1850
        %v2047 = vmul.f32 1.0, %v2046
        %v2048 = vrcp.pop %v1851
        %v2049 = vmul.f32 1.0, %v2048
        %v2050 = vrcp.pop %v1852
        %v2051 = vmul.f32 1.0, %v2050
        %v2052 = vrcp.pop %v1853
        %v2053 = vmul.f32 1.0, %v2052
        %v2054 = vrcp.pop %v1854
        %v2055 = vmul.f32 1.0, %v2054
        %v2056 = vrcp.pop %v1855
        %v2057 = vmul.f32 1.0, %v2056
        %v2058 = vrcp.pop %v1856
        %v2059 = vmul.f32 1.0, %v2058
        %v2060 = vrcp.pop %v1857
        %v2061 = vmul.f32 1.0, %v2060
        %v2062 = vrcp.pop %v1858
        %v2063 = vmul.f32 1.0, %v2062
        %v2064 = vrcp.pop %v1859
        %v2065 = vmul.f32 1.0, %v2064
        %v2066 = vrcp.pop %v1860
        %v2067 = vmul.f32 1.0, %v2066
        %v2068 = vrcp.pop %v1861
        %v2069 = vmul.f32 1.0, %v2068
        %v2070 = vrcp.pop %v1862
        %v2071 = vmul.f32 1.0, %v2070
        %v2072 = vrcp.pop %v1863
        %v2073 = vmul.f32 1.0, %v2072
        %v2074 = vrcp.pop %v1864
        %v2075 = vmul.f32 1.0, %v2074
        %v2076 = vrcp.pop %v1865
        %v2077 = vmul.f32 1.0, %v2076
        %v2078 = vrcp.pop %v1866
        %v2079 = vmul.f32 1.0, %v2078
        %v2080 = vrcp.pop %v1867
        %v2081 = vmul.f32 1.0, %v2080
        %v2082 = vrcp.pop %v1868
        %v2083 = vmul.f32 1.0, %v2082
        %v2084 = vrcp.pop %v1869
        %v2085 = vmul.f32 1.0, %v2084
        %v2086 = vrcp.pop %v1870
        %v2087 = vmul.f32 1.0, %v2086
        %v2088 = vrcp.pop %v1871
        %v2089 = vmul.f32 1.0, %v2088
        %v2090 = vrcp.pop %v1872
        %v2091 = vmul.f32 1.0, %v2090
        %v2092 = vrcp.pop %v1873
        %v2093 = vmul.f32 1.0, %v2092
        %v2094 = vrcp.pop %v1874
        %v2095 = vmul.f32 1.0, %v2094
        %v2096 = vrcp.pop %v1875
        %v2097 = vmul.f32 1.0, %v2096
        %v2098 = vrcp.pop %v1876
        %v2099 = vmul.f32 1.0, %v2098
        %v2100 = vrcp.pop %v1877
        %v2101 = vmul.f32 1.0, %v2100
        %v2102 = vrcp.pop %v1878
        %v2103 = vmul.f32 1.0, %v2102
        %v2104 = vrcp.pop %v1879
        %v2105 = vmul.f32 1.0, %v2104
        %v2106 = vrcp.pop %v1880
        %v2107 = vmul.f32 1.0, %v2106
        %v2108 = vrcp.pop %v1881
        %v2109 = vmul.f32 1.0, %v2108
        %v2110 = vrcp.pop %v1882
        %v2111 = vmul.f32 1.0, %v2110
        %v2112 = vrcp.pop %v1883
        %v2113 = vmul.f32 1.0, %v2112
        %v2114 = vrcp.pop %v1884
        %v2115 = vmul.f32 1.0, %v2114
        %v2116 = vrcp.pop %v1885
        %v2117 = vmul.f32 1.0, %v2116
        %v2118 = vrcp.pop %v1886
        %v2119 = vmul.f32 1.0, %v2118
        %v2120 = vrcp.pop %v1887
        %v2121 = vmul.f32 1.0, %v2120
        %v2122 = vrcp.pop %v1888
        %v2123 = vmul.f32 1.0, %v2122
        %v2124 = vrcp.pop %v1889
        %v2125 = vmul.f32 1.0, %v2124
        %v2126 = vrcp.pop %v1890
        %v2127 = vmul.f32 1.0, %v2126
        %v2128 = vrcp.pop %v1891
        %v2129 = vmul.f32 1.0, %v2128
        %v2130 = vrcp.pop %v1892
        %v2131 = vmul.f32 1.0, %v2130
        %v2132 = vrcp.pop %v1893
        %v2133 = vmul.f32 1.0, %v2132
        %v2134 = vrcp.pop %v1894
        %v2135 = vmul.f32 1.0, %v2134
        %v2136 = vrcp.pop %v1895
        %v2137 = vmul.f32 1.0, %v2136
        %v2138 = vrcp.pop %v1896
        %v2139 = vmul.f32 1.0, %v2138
        %v2140 = vrcp.pop %v1897
        %v2141 = vmul.f32 1.0, %v2140
        %v2142 = vrcp.pop %v1898
        %v2143 = vmul.f32 1.0, %v2142
        %v2144 = vrcp.pop %v1899
        %v2145 = vmul.f32 1.0, %v2144
        %v2146 = vrcp.pop %v1900
        %v2147 = vmul.f32 1.0, %v2146
        %v2148 = vrcp.pop %v1901
        %v2149 = vmul.f32 1.0, %v2148
        %v2150 = vrcp.pop %v1902
        %v2151 = vmul.f32 1.0, %v2150
        %v2152 = vrcp.pop %v1903
        %v2153 = vmul.f32 1.0, %v2152
        %v2154 = vrcp.pop %v1904
        %v2155 = vmul.f32 1.0, %v2154
        %v2156 = vrcp.pop %v1905
        %v2157 = vmul.f32 1.0, %v2156
        %v2158 = vrcp.pop %v1906
        %v2159 = vmul.f32 1.0, %v2158
        %v2160 = vrcp.pop %v1907
        %v2161 = vmul.f32 1.0, %v2160
        %v2162 = vrcp.pop %v1908
        %v2163 = vmul.f32 1.0, %v2162
        %v2164 = vrcp.pop %v1909
        %v2165 = vmul.f32 1.0, %v2164
        %v2166 = vmul.f32 %v888, %v1911
        %v2167 = vmul.f32 %v891, %v1913
        %v2168 = vmul.f32 %v896, %v1915
        %v2169 = vmul.f32 %v899, %v1917
        %v2170 = vmul.f32 %v904, %v1919
        %v2171 = vmul.f32 %v907, %v1921
        %v2172 = vmul.f32 %v912, %v1923
        %v2173 = vmul.f32 %v915, %v1925
        %v2174 = vmul.f32 %v920, %v1927
        %v2175 = vmul.f32 %v923, %v1929
        %v2176 = vmul.f32 %v928, %v1931
        %v2177 = vmul.f32 %v931, %v1933
        %v2178 = vmul.f32 %v936, %v1935
        %v2179 = vmul.f32 %v939, %v1937
        %v2180 = vmul.f32 %v944, %v1939
        %v2181 = vmul.f32 %v947, %v1941
        %v2182 = vmul.f32 %v952, %v1943
        %v2183 = vmul.f32 %v955, %v1945
        %v2184 = vmul.f32 %v960, %v1947
        %v2185 = vmul.f32 %v963, %v1949
        %v2186 = vmul.f32 %v968, %v1951
        %v2187 = vmul.f32 %v971, %v1953
        %v2188 = vmul.f32 %v976, %v1955
        %v2189 = vmul.f32 %v979, %v1957
        %v2190 = vmul.f32 %v984, %v1959
        %v2191 = vmul.f32 %v987, %v1961
        %v2192 = vmul.f32 %v992, %v1963
        %v2193 = vmul.f32 %v995, %v1965
        %v2194 = vmul.f32 %v1000, %v1967
        %v2195 = vmul.f32 %v1003, %v1969
        %v2196 = vmul.f32 %v1008, %v1971
        %v2197 = vmul.f32 %v1011, %v1973
        %v2198 = vmul.f32 %v1016, %v1975
        %v2199 = vmul.f32 %v1019, %v1977
        %v2200 = vmul.f32 %v1024, %v1979
        %v2201 = vmul.f32 %v1027, %v1981
        %v2202 = vmul.f32 %v1032, %v1983
        %v2203 = vmul.f32 %v1035, %v1985
        %v2204 = vmul.f32 %v1040, %v1987
        %v2205 = vmul.f32 %v1043, %v1989
        %v2206 = vmul.f32 %v1048, %v1991
        %v2207 = vmul.f32 %v1051, %v1993
        %v2208 = vmul.f32 %v1056, %v1995
        %v2209 = vmul.f32 %v1059, %v1997
        %v2210 = vmul.f32 %v1064, %v1999
        %v2211 = vmul.f32 %v1067, %v2001
        %v2212 = vmul.f32 %v1072, %v2003
        %v2213 = vmul.f32 %v1075, %v2005
        %v2214 = vmul.f32 %v1080, %v2007
        %v2215 = vmul.f32 %v1083, %v2009
        %v2216 = vmul.f32 %v1088, %v2011
        %v2217 = vmul.f32 %v1091, %v2013
        %v2218 = vmul.f32 %v1096, %v2015
        %v2219 = vmul.f32 %v1099, %v2017
        %v2220 = vmul.f32 %v1104, %v2019
        %v2221 = vmul.f32 %v1107, %v2021
        %v2222 = vmul.f32 %v1112, %v2023
        %v2223 = vmul.f32 %v1115, %v2025
        %v2224 = vmul.f32 %v1120, %v2027
        %v2225 = vmul.f32 %v1123, %v2029
        %v2226 = vmul.f32 %v1128, %v2031
        %v2227 = vmul.f32 %v1131, %v2033
        %v2228 = vmul.f32 %v1136, %v2035
        %v2229 = vmul.f32 %v1139, %v2037
        %v2230 = vmul.f32 %v1144, %v2039
        %v2231 = vmul.f32 %v1147, %v2041
        %v2232 = vmul.f32 %v1152, %v2043
        %v2233 = vmul.f32 %v1155, %v2045
        %v2234 = vmul.f32 %v1160, %v2047
        %v2235 = vmul.f32 %v1163, %v2049
        %v2236 = vmul.f32 %v1168, %v2051
        %v2237 = vmul.f32 %v1171, %v2053
        %v2238 = vmul.f32 %v1176, %v2055
        %v2239 = vmul.f32 %v1179, %v2057
        %v2240 = vmul.f32 %v1184, %v2059
        %v2241 = vmul.f32 %v1187, %v2061
        %v2242 = vmul.f32 %v1192, %v2063
        %v2243 = vmul.f32 %v1195, %v2065
        %v2244 = vmul.f32 %v1200, %v2067
        %v2245 = vmul.f32 %v1203, %v2069
        %v2246 = vmul.f32 %v1208, %v2071
        %v2247 = vmul.f32 %v1211, %v2073
        %v2248 = vmul.f32 %v1216, %v2075
        %v2249 = vmul.f32 %v1219, %v2077
        %v2250 = vmul.f32 %v1224, %v2079
        %v2251 = vmul.f32 %v1227, %v2081
        %v2252 = vmul.f32 %v1232, %v2083
        %v2253 = vmul.f32 %v1235, %v2085
        %v2254 = vmul.f32 %v1240, %v2087
        %v2255 = vmul.f32 %v1243, %v2089
        %v2256 = vmul.f32 %v1248, %v2091
        %v2257 = vmul.f32 %v1251, %v2093
        %v2258 = vmul.f32 %v1256, %v2095
        %v2259 = vmul.f32 %v1259, %v2097
        %v2260 = vmul.f32 %v1264, %v2099
        %v2261 = vmul.f32 %v1267, %v2101
        %v2262 = vmul.f32 %v1272, %v2103
        %v2263 = vmul.f32 %v1275, %v2105
        %v2264 = vmul.f32 %v1280, %v2107
        %v2265 = vmul.f32 %v1283, %v2109
        %v2266 = vmul.f32 %v1288, %v2111
        %v2267 = vmul.f32 %v1291, %v2113
        %v2268 = vmul.f32 %v1296, %v2115
        %v2269 = vmul.f32 %v1299, %v2117
        %v2270 = vmul.f32 %v1304, %v2119
        %v2271 = vmul.f32 %v1307, %v2121
        %v2272 = vmul.f32 %v1312, %v2123
        %v2273 = vmul.f32 %v1315, %v2125
        %v2274 = vmul.f32 %v1320, %v2127
        %v2275 = vmul.f32 %v1323, %v2129
        %v2276 = vmul.f32 %v1328, %v2131
        %v2277 = vmul.f32 %v1331, %v2133
        %v2278 = vmul.f32 %v1336, %v2135
        %v2279 = vmul.f32 %v1339, %v2137
        %v2280 = vmul.f32 %v1344, %v2139
        %v2281 = vmul.f32 %v1347, %v2141
        %v2282 = vmul.f32 %v1352, %v2143
        %v2283 = vmul.f32 %v1355, %v2145
        %v2284 = vmul.f32 %v1360, %v2147
        %v2285 = vmul.f32 %v1363, %v2149
        %v2286 = vmul.f32 %v1368, %v2151
        %v2287 = vmul.f32 %v1371, %v2153
        %v2288 = vmul.f32 %v1376, %v2155
        %v2289 = vmul.f32 %v1379, %v2157
        %v2290 = vmul.f32 %v1384, %v2159
        %v2291 = vmul.f32 %v1387, %v2161
        %v2292 = vmul.f32 %v1392, %v2163
        %v2293 = vmul.f32 %v1395, %v2165
        %v2294 = vld [vmem:[%s3] sm:$0xff]
        %v2295 = vld [vmem:[%s3 + $0x8] sm:$0xff]
        %v2296 = vld [vmem:[%s3 + $0x10] sm:$0xff]
        %v2297 = vld [vmem:[%s3 + $0x18] sm:$0xff]
        %v2298 = vld [vmem:[%s3 + $0x20] sm:$0xff]
        %v2299 = vld [vmem:[%s3 + $0x28] sm:$0xff]
        %v2300 = vld [vmem:[%s3 + $0x30] sm:$0xff]
        %v2301 = vld [vmem:[%s3 + $0x38] sm:$0xff]
        %v2302 = vld [vmem:[%s3 + $0x40] sm:$0xff]
        %v2303 = vld [vmem:[%s3 + $0x48] sm:$0xff]
        %v2304 = vld [vmem:[%s3 + $0x50] sm:$0xff]
        %v2305 = vld [vmem:[%s3 + $0x58] sm:$0xff]
        %v2306 = vld [vmem:[%s3 + $0x60] sm:$0xff]
        %v2307 = vld [vmem:[%s3 + $0x68] sm:$0xff]
        %v2308 = vld [vmem:[%s3 + $0x70] sm:$0xff]
        %v2309 = vld [vmem:[%s3 + $0x78] sm:$0xff]
        %2310 = vmatprep.subr.mxu0 0.0
        %2311 = vmatpush1.msra.mxu0 %v2166
        %2312 = vmatprep.subr.mxu0 0.0
        %2313 = vmatpush1.msra.mxu0 %v2167
        %2314 = vmatprep.subr.mxu0 0.0
        %2315 = vmatpush1.msra.mxu0 %v2168
        %2316 = vmatprep.subr.mxu0 0.0
        %2317 = vmatpush1.msra.mxu0 %v2169
        %2318 = vmatprep.subr.mxu0 0.0
        %2319 = vmatpush1.msra.mxu0 %v2170
        %2320 = vmatprep.subr.mxu0 0.0
        %2321 = vmatpush1.msra.mxu0 %v2171
        %2322 = vmatprep.subr.mxu0 0.0
        %2323 = vmatpush1.msra.mxu0 %v2172
        %2324 = vmatprep.subr.mxu0 0.0
        %2325 = vmatpush1.msra.mxu0 %v2173
        %2326 = vmatprep.subr.mxu0 0.0
        %2327 = vmatpush1.msra.mxu0 %v2174
        %2328 = vmatprep.subr.mxu0 0.0
        %2329 = vmatpush1.msra.mxu0 %v2175
        %2330 = vmatprep.subr.mxu0 0.0
        %2331 = vmatpush1.msra.mxu0 %v2176
        %2332 = vmatprep.subr.mxu0 0.0
        %2333 = vmatpush1.msra.mxu0 %v2177
        %2334 = vmatprep.subr.mxu0 0.0
        %2335 = vmatpush1.msra.mxu0 %v2178
        %2336 = vmatprep.subr.mxu0 0.0
        %2337 = vmatpush1.msra.mxu0 %v2179
        %2338 = vmatprep.subr.mxu0 0.0
        %2339 = vmatpush1.msra.mxu0 %v2180
        %2340 = vmatprep.subr.mxu0 0.0
        %2341 = vmatpush1.msra.mxu0 %v2181
        %2342 = vmatprep.subr.mxu0 0.0
        %2343 = vmatpush1.msra.mxu0 %v2182
        %2344 = vmatprep.subr.mxu0 0.0
        %2345 = vmatpush1.msra.mxu0 %v2183
        %2346 = vmatprep.subr.mxu0 0.0
        %2347 = vmatpush1.msra.mxu0 %v2184
        %2348 = vmatprep.subr.mxu0 0.0
        %2349 = vmatpush1.msra.mxu0 %v2185
        %2350 = vmatprep.subr.mxu0 0.0
        %2351 = vmatpush1.msra.mxu0 %v2186
        %2352 = vmatprep.subr.mxu0 0.0
        %2353 = vmatpush1.msra.mxu0 %v2187
        %2354 = vmatprep.subr.mxu0 0.0
        %2355 = vmatpush1.msra.mxu0 %v2188
        %2356 = vmatprep.subr.mxu0 0.0
        %2357 = vmatpush1.msra.mxu0 %v2189
        %2358 = vmatprep.subr.mxu0 0.0
        %2359 = vmatpush1.msra.mxu0 %v2190
        %2360 = vmatprep.subr.mxu0 0.0
        %2361 = vmatpush1.msra.mxu0 %v2191
        %2362 = vmatprep.subr.mxu0 0.0
        %2363 = vmatpush1.msra.mxu0 %v2192
        %2364 = vmatprep.subr.mxu0 0.0
        %2365 = vmatpush1.msra.mxu0 %v2193
        %2366 = vmatprep.subr.mxu0 0.0
        %2367 = vmatpush1.msra.mxu0 %v2194
        %2368 = vmatprep.subr.mxu0 0.0
        %2369 = vmatpush1.msra.mxu0 %v2195
        %2370 = vmatprep.subr.mxu0 0.0
        %2371 = vmatpush1.msra.mxu0 %v2196
        %2372 = vmatprep.subr.mxu0 0.0
        %2373 = vmatpush1.msra.mxu0 %v2197
        %2374 = vmatprep.mubr.f32.mxu0 %v2295
        %2375 = vmatmul.mubr.f32.gmra.mrb[0].mxu0 %v2294
        %v2376 = vpop.f32.mrb[0].mxu0
        %v2377 = vadd.f32 0.0, %v2376
        %v2378 = vpop.f32.mrb[0].mxu0
        %2379 = vmatprep.mubr.f32.mxu0 %v2303
        %2380 = vmatmul.mubr.f32.gmra.mrb[0].mxu0 %v2302
        %v2381 = vpop.f32.mrb[0].mxu0
        %v2382 = vadd.f32 0.0, %v2381
        %v2383 = vpop.f32.mrb[0].mxu0
        %2384 = vdwg.mxu0
        %2385 = vmatprep.subr.mxu0 0.0
        %2386 = vmatpush1.msra.mxu0 %v2198
        %2387 = vmatprep.subr.mxu0 0.0
        %2388 = vmatpush1.msra.mxu0 %v2199
        %2389 = vmatprep.subr.mxu0 0.0
        %2390 = vmatpush1.msra.mxu0 %v2200
        %2391 = vmatprep.subr.mxu0 0.0
        %2392 = vmatpush1.msra.mxu0 %v2201
        %2393 = vmatprep.subr.mxu0 0.0
        %2394 = vmatpush1.msra.mxu0 %v2202
        %2395 = vmatprep.subr.mxu0 0.0
        %2396 = vmatpush1.msra.mxu0 %v2203
        %2397 = vmatprep.subr.mxu0 0.0
        %2398 = vmatpush1.msra.mxu0 %v2204
        %2399 = vmatprep.subr.mxu0 0.0
        %2400 = vmatpush1.msra.mxu0 %v2205
        %2401 = vmatprep.subr.mxu0 0.0
        %2402 = vmatpush1.msra.mxu0 %v2206
        %2403 = vmatprep.subr.mxu0 0.0
        %2404 = vmatpush1.msra.mxu0 %v2207
        %2405 = vmatprep.subr.mxu0 0.0
        %2406 = vmatpush1.msra.mxu0 %v2208
        %2407 = vmatprep.subr.mxu0 0.0
        %2408 = vmatpush1.msra.mxu0 %v2209
        %2409 = vmatprep.subr.mxu0 0.0
        %2410 = vmatpush1.msra.mxu0 %v2210
        %2411 = vmatprep.subr.mxu0 0.0
        %2412 = vmatpush1.msra.mxu0 %v2211
        %2413 = vmatprep.subr.mxu0 0.0
        %2414 = vmatpush1.msra.mxu0 %v2212
        %2415 = vmatprep.subr.mxu0 0.0
        %2416 = vmatpush1.msra.mxu0 %v2213
        %2417 = vmatprep.subr.mxu0 0.0
        %2418 = vmatpush1.msra.mxu0 %v2214
        %2419 = vmatprep.subr.mxu0 0.0
        %2420 = vmatpush1.msra.mxu0 %v2215
        %2421 = vmatprep.subr.mxu0 0.0
        %2422 = vmatpush1.msra.mxu0 %v2216
        %2423 = vmatprep.subr.mxu0 0.0
        %2424 = vmatpush1.msra.mxu0 %v2217
        %2425 = vmatprep.subr.mxu0 0.0
        %2426 = vmatpush1.msra.mxu0 %v2218
        %2427 = vmatprep.subr.mxu0 0.0
        %2428 = vmatpush1.msra.mxu0 %v2219
        %2429 = vmatprep.subr.mxu0 0.0
        %2430 = vmatpush1.msra.mxu0 %v2220
        %2431 = vmatprep.subr.mxu0 0.0
        %2432 = vmatpush1.msra.mxu0 %v2221
        %2433 = vmatprep.subr.mxu0 0.0
        %2434 = vmatpush1.msra.mxu0 %v2222
        %2435 = vmatprep.subr.mxu0 0.0
        %2436 = vmatpush1.msra.mxu0 %v2223
        %2437 = vmatprep.subr.mxu0 0.0
        %2438 = vmatpush1.msra.mxu0 %v2224
        %2439 = vmatprep.subr.mxu0 0.0
        %2440 = vmatpush1.msra.mxu0 %v2225
        %2441 = vmatprep.subr.mxu0 0.0
        %2442 = vmatpush1.msra.mxu0 %v2226
        %2443 = vmatprep.subr.mxu0 0.0
        %2444 = vmatpush1.msra.mxu0 %v2227
        %2445 = vmatprep.subr.mxu0 0.0
        %2446 = vmatpush1.msra.mxu0 %v2228
        %2447 = vmatprep.subr.mxu0 0.0
        %2448 = vmatpush1.msra.mxu0 %v2229
        %2449 = vmatprep.mubr.f32.mxu0 %v2297
        %2450 = vmatmul.mubr.f32.gmra.mrb[0].mxu0 %v2296
        %v2451 = vpop.f32.mrb[0].mxu0
        %v2452 = vadd.f32 %v2377, %v2451
        %v2453 = vpop.f32.mrb[0].mxu0
        %2454 = vmatprep.mubr.f32.mxu0 %v2305
        %2455 = vmatmul.mubr.f32.gmra.mrb[0].mxu0 %v2304
        %v2456 = vpop.f32.mrb[0].mxu0
        %v2457 = vadd.f32 %v2382, %v2456
        %v2458 = vpop.f32.mrb[0].mxu0
        %2459 = vdwg.mxu0
        %2460 = vmatprep.subr.mxu0 0.0
        %2461 = vmatpush1.msra.mxu0 %v2230
        %2462 = vmatprep.subr.mxu0 0.0
        %2463 = vmatpush1.msra.mxu0 %v2231
        %2464 = vmatprep.subr.mxu0 0.0
        %2465 = vmatpush1.msra.mxu0 %v2232
        %2466 = vmatprep.subr.mxu0 0.0
        %2467 = vmatpush1.msra.mxu0 %v2233
        %2468 = vmatprep.subr.mxu0 0.0
        %2469 = vmatpush1.msra.mxu0 %v2234
        %2470 = vmatprep.subr.mxu0 0.0
        %2471 = vmatpush1.msra.mxu0 %v2235
        %2472 = vmatprep.subr.mxu0 0.0
        %2473 = vmatpush1.msra.mxu0 %v2236
        %2474 = vmatprep.subr.mxu0 0.0
        %2475 = vmatpush1.msra.mxu0 %v2237
        %2476 = vmatprep.subr.mxu0 0.0
        %2477 = vmatpush1.msra.mxu0 %v2238
        %2478 = vmatprep.subr.mxu0 0.0
        %2479 = vmatpush1.msra.mxu0 %v2239
        %2480 = vmatprep.subr.mxu0 0.0
        %2481 = vmatpush1.msra.mxu0 %v2240
        %2482 = vmatprep.subr.mxu0 0.0
        %2483 = vmatpush1.msra.mxu0 %v2241
        %2484 = vmatprep.subr.mxu0 0.0
        %2485 = vmatpush1.msra.mxu0 %v2242
        %2486 = vmatprep.subr.mxu0 0.0
        %2487 = vmatpush1.msra.mxu0 %v2243
        %2488 = vmatprep.subr.mxu0 0.0
        %2489 = vmatpush1.msra.mxu0 %v2244
        %2490 = vmatprep.subr.mxu0 0.0
        %2491 = vmatpush1.msra.mxu0 %v2245
        %2492 = vmatprep.subr.mxu0 0.0
        %2493 = vmatpush1.msra.mxu0 %v2246
        %2494 = vmatprep.subr.mxu0 0.0
        %2495 = vmatpush1.msra.mxu0 %v2247
        %2496 = vmatprep.subr.mxu0 0.0
        %2497 = vmatpush1.msra.mxu0 %v2248
        %2498 = vmatprep.subr.mxu0 0.0
        %2499 = vmatpush1.msra.mxu0 %v2249
        %2500 = vmatprep.subr.mxu0 0.0
        %2501 = vmatpush1.msra.mxu0 %v2250
        %2502 = vmatprep.subr.mxu0 0.0
        %2503 = vmatpush1.msra.mxu0 %v2251
        %2504 = vmatprep.subr.mxu0 0.0
        %2505 = vmatpush1.msra.mxu0 %v2252
        %2506 = vmatprep.subr.mxu0 0.0
        %2507 = vmatpush1.msra.mxu0 %v2253
        %2508 = vmatprep.subr.mxu0 0.0
        %2509 = vmatpush1.msra.mxu0 %v2254
        %2510 = vmatprep.subr.mxu0 0.0
        %2511 = vmatpush1.msra.mxu0 %v2255
        %2512 = vmatprep.subr.mxu0 0.0
        %2513 = vmatpush1.msra.mxu0 %v2256
        %2514 = vmatprep.subr.mxu0 0.0
        %2515 = vmatpush1.msra.mxu0 %v2257
        %2516 = vmatprep.subr.mxu0 0.0
        %2517 = vmatpush1.msra.mxu0 %v2258
        %2518 = vmatprep.subr.mxu0 0.0
        %2519 = vmatpush1.msra.mxu0 %v2259
        %2520 = vmatprep.subr.mxu0 0.0
        %2521 = vmatpush1.msra.mxu0 %v2260
        %2522 = vmatprep.subr.mxu0 0.0
        %2523 = vmatpush1.msra.mxu0 %v2261
        %2524 = vmatprep.mubr.f32.mxu0 %v2299
        %2525 = vmatmul.mubr.f32.gmra.mrb[0].mxu0 %v2298
        %v2526 = vpop.f32.mrb[0].mxu0
        %v2527 = vadd.f32 %v2452, %v2526
        %v2528 = vpop.f32.mrb[0].mxu0
        %2529 = vmatprep.mubr.f32.mxu0 %v2307
        %2530 = vmatmul.mubr.f32.gmra.mrb[0].mxu0 %v2306
        %v2531 = vpop.f32.mrb[0].mxu0
        %v2532 = vadd.f32 %v2457, %v2531
        %v2533 = vpop.f32.mrb[0].mxu0
        %2534 = vdwg.mxu0
        %2535 = vmatprep.subr.mxu0 0.0
        %2536 = vmatpush1.msra.mxu0 %v2262
        %2537 = vmatprep.subr.mxu0 0.0
        %2538 = vmatpush1.msra.mxu0 %v2263
        %2539 = vmatprep.subr.mxu0 0.0
        %2540 = vmatpush1.msra.mxu0 %v2264
        %2541 = vmatprep.subr.mxu0 0.0
        %2542 = vmatpush1.msra.mxu0 %v2265
        %2543 = vmatprep.subr.mxu0 0.0
        %2544 = vmatpush1.msra.mxu0 %v2266
        %2545 = vmatprep.subr.mxu0 0.0
        %2546 = vmatpush1.msra.mxu0 %v2267
        %2547 = vmatprep.subr.mxu0 0.0
        %2548 = vmatpush1.msra.mxu0 %v2268
        %2549 = vmatprep.subr.mxu0 0.0
        %2550 = vmatpush1.msra.mxu0 %v2269
        %2551 = vmatprep.subr.mxu0 0.0
        %2552 = vmatpush1.msra.mxu0 %v2270
        %2553 = vmatprep.subr.mxu0 0.0
        %2554 = vmatpush1.msra.mxu0 %v2271
        %2555 = vmatprep.subr.mxu0 0.0
        %2556 = vmatpush1.msra.mxu0 %v2272
        %2557 = vmatprep.subr.mxu0 0.0
        %2558 = vmatpush1.msra.mxu0 %v2273
        %2559 = vmatprep.subr.mxu0 0.0
        %2560 = vmatpush1.msra.mxu0 %v2274
        %2561 = vmatprep.subr.mxu0 0.0
        %2562 = vmatpush1.msra.mxu0 %v2275
        %2563 = vmatprep.subr.mxu0 0.0
        %2564 = vmatpush1.msra.mxu0 %v2276
        %2565 = vmatprep.subr.mxu0 0.0
        %2566 = vmatpush1.msra.mxu0 %v2277
        %2567 = vmatprep.subr.mxu0 0.0
        %2568 = vmatpush1.msra.mxu0 %v2278
        %2569 = vmatprep.subr.mxu0 0.0
        %2570 = vmatpush1.msra.mxu0 %v2279
        %2571 = vmatprep.subr.mxu0 0.0
        %2572 = vmatpush1.msra.mxu0 %v2280
        %2573 = vmatprep.subr.mxu0 0.0
        %2574 = vmatpush1.msra.mxu0 %v2281
        %2575 = vmatprep.subr.mxu0 0.0
        %2576 = vmatpush1.msra.mxu0 %v2282
        %2577 = vmatprep.subr.mxu0 0.0
        %2578 = vmatpush1.msra.mxu0 %v2283
        %2579 = vmatprep.subr.mxu0 0.0
        %2580 = vmatpush1.msra.mxu0 %v2284
        %2581 = vmatprep.subr.mxu0 0.0
        %2582 = vmatpush1.msra.mxu0 %v2285
        %2583 = vmatprep.subr.mxu0 0.0
        %2584 = vmatpush1.msra.mxu0 %v2286
        %2585 = vmatprep.subr.mxu0 0.0
        %2586 = vmatpush1.msra.mxu0 %v2287
        %2587 = vmatprep.subr.mxu0 0.0
        %2588 = vmatpush1.msra.mxu0 %v2288
        %2589 = vmatprep.subr.mxu0 0.0
        %2590 = vmatpush1.msra.mxu0 %v2289
        %2591 = vmatprep.subr.mxu0 0.0
        %2592 = vmatpush1.msra.mxu0 %v2290
        %2593 = vmatprep.subr.mxu0 0.0
        %2594 = vmatpush1.msra.mxu0 %v2291
        %2595 = vmatprep.subr.mxu0 0.0
        %2596 = vmatpush1.msra.mxu0 %v2292
        %2597 = vmatprep.subr.mxu0 0.0
        %2598 = vmatpush1.msra.mxu0 %v2293
        %2599 = vmatprep.mubr.f32.mxu0 %v2301
        %2600 = vmatmul.mubr.f32.gmra.mrb[0].mxu0 %v2300
        %v2601 = vpop.f32.mrb[0].mxu0
        %v2602 = vadd.f32 %v2527, %v2601
        %v2603 = vpop.f32.mrb[0].mxu0
        %2604 = vmatprep.mubr.f32.mxu0 %v2309
        %2605 = vmatmul.mubr.f32.gmra.mrb[0].mxu0 %v2308
        %v2606 = vpop.f32.mrb[0].mxu0
        %v2607 = vadd.f32 %v2532, %v2606
        %v2608 = vpop.f32.mrb[0].mxu0
        %2609 = vdwg.mxu0
        %vm2610 = vcmask 261120
        %2611 = vst.msk [vmem:[%s191] sm:$0xff] %vm2610, %v2602
        %2612 = vst.msk [vmem:[%s191 + $0x8] sm:$0xff] %vm2610, %v2607
        %s2613 = sand.u32 %s115, 1
        %s2614 = scalar_lea.sflag [#allocation3], %s2613
        %s2615 = sand.u32 %s115, 1
        %s2616 = smul.addr %s2615, 16
        %s2617 = scalar_lea.vmem [#allocation2], %s2616
        // Predicated region
        $region37: #{_forward.1} parent=35 // pred_check
          %p2618 = pneg %p125
        $region38: #{_forward.1} parent=35 // pred_check_branch
          %2620 = sbr.rel (%p2618) target = $region40
        $region39: #{_forward.1} parent=35 // pred_region
          %s2621 = smul.u32 2, %s18
          %s2623 = ssub.s32 256, 256
          %2624 = vsyncadd %s2614, %s2623
          %s2625 = smul.addr %s2621, 128
          %s2626 = scalar_lea.hbm %s4, %s2625
          %s2627 = sshll.u32 %s2617, 4
          %s2628 = int_to_ptr.vmem [resolvable:$true] %s2627
          %2633 = dma.vmem_to_hbm [thread:$0]  %s2628, 256, %s2626, %s2614, 128, 128, 8
        $region40: #{_forward.1} parent=35 // pred_fallthru
          _
      $region36: #{_forward.1} parent=5 // pred_fallthru
        _
      %p2634 = scmp.le.s32.totalorder 2, %s13
      // Predicated region
      $region41: #{_forward.1} parent=5 // pred_check
        %p2635 = pneg %p2634
      $region42: #{_forward.1} parent=5 // pred_check_branch
        %2637 = sbr.rel (%p2635) target = $region44
      $region43: #{_forward.1} parent=5 // pred_region
        %s2638 = ssub.s32 %s13, 2
        // Predicated region
        $region45: #{_forward.1} parent=43 // pred_check
          %p2639 = pneg %p131
        $region46: #{_forward.1} parent=43 // pred_check_branch
          %2641 = sbr.rel (%p2639) target = $region48
        $region47: #{_forward.1} parent=43 // pred_region
          %s2642 = sand.u32 %s116, 1
          %s2643 = scalar_lea.sflag [#allocation3], %s2642
          %s2644 = sand.u32 %s116, 1
          %s2645 = smul.addr %s2644, 16
          %s2646 = scalar_lea.vmem [#allocation2], %s2645
          %2647 = dma.done %s2643, 256
        $region48: #{_forward.1} parent=43 // pred_fallthru
          _
      $region44: #{_forward.1} parent=5 // pred_fallthru
        _
    $region6: #{_forward.1} parent=1 // loop_footer
      %s17 = sadd.s32 1, %s13
    $region7: #{_forward.1} parent=1 // loop_footer_branch
      %12 = sbr.rel target = $region3
    $region8: #{_forward.1} parent=1 // loop_exit
      _
    %2648 = vsyncpa [#allocation3], 1
    %s2649 = scalar_lea.sflag [#allocation3], 1
    %2650 = vsyncpa %s2649, 1

// kernel: _forward.1
$region0: #{_forward.1}
  #allocation0 [shape = 'u32[]', space=smem, size = 0x4, offset = 0x4, fixed_abs, tag = 'smem constant byte address 0x4 - core index']
  #allocation1 [shape = 'u32[144,128]{1,0:T(1,128)}', space=vmem, size = 0x12000, scoped, tag = 'internal scratch']
  %s0 = inlined_call_operand.vmem [shape: bf16[2048,4], index: 0, kind: input, shape index: {}]
  %s1 = inlined_call_operand.vmem [shape: bf16[4,32], index: 1, kind: input, shape index: {}]
  %s2 = inlined_call_operand.vmem [shape: f32[1,32], index: 2, kind: input, shape index: {}]
  %s3 = inlined_call_operand.vmem [shape: f32[16,1024], index: 3, kind: input, shape index: {}]
  %s4 = inlined_call_operand.hbm [shape: f32[32,32], index: 4, kind: output, shape index: {}]
  %s5 = sld [smem:[#allocation0]]
  $region49: #{_forward.1} parent=0
    _
  %s7 = ssub.s32 1, %s5
  %s8 = scalar_select 0, %s7, %s5
  $region1: #{_forward.1} parent=0
    #allocation2 [shape = 'u8[16384]{0}', space=vmem, size = 0x4000, scoped, tag = 'output window, operand 0']
    #allocation3 [shape = 's32[2]{0}', space=sflag, size = 0x8, scoped, tag = 'scoped memory for _forward.1']
    %9 = vsyncpa [#allocation3], 0
    %s10 = scalar_lea.sflag [#allocation3], 1
    %11 = vsyncpa %s10, 0
    loop: start=0, step=1, limit=4
    $region2: #{_forward.1} parent=1 // loop_pre_header
      _
    $region3: #{_forward.1} parent=1 // loop_header
      %s13 = sphi 0, %s17
      %p14 = scmp.ge.s32.totalorder %s13, 4
      %s23 = sphi 0, %s25
      %s26 = sphi 0, %s23
      %s27 = sphi 0, %s26
      %s43 = sphi 0, %s27
      %s47 = sphi 0, %s47
      %s49 = sphi 0, %s47
      %s50 = sphi 0, %s49
      %s64 = sphi 0, %s50
      %s68 = sphi 0, %s68
      %s70 = sphi 0, %s68
      %s71 = sphi 0, %s70
      %s85 = sphi 0, %s71
      %s89 = sphi 0, %s89
      %s91 = sphi 0, %s89
      %s92 = sphi 0, %s91
      %s106 = sphi 0, %s92
      %s112 = sphi 0, %s114
      %s115 = sphi 0, %s112
      %s116 = sphi 0, %s115
      %s132 = sphi 0, %s116
    $region4: #{_forward.1} parent=1 // loop_header_branch
      %16 = sbr.rel (%p14) target = $region8
    $region5: #{_forward.1} parent=1 // loop_body
      %s18 = ssub.s32 %s13, 1
      %s19 = ssub.s32 %s13, 2
      %s20 = sadd.s32 %s13, 1
      %s21 = ssub.s32 %s13, %s20
      %p22 = scmp.eq.s32.totalorder %s21, 0
      %s24 = sadd.s32 %s23, 1
      %s25 = scalar_select %p22, %s23, %s24
      %p28 = pneg %p22
      %p29 = scmp.eq.s32.totalorder %s13, 1
      %p30 = por %p28, %p29
      %p31 = scmp.ne.s32.totalorder %s23, %s26
      %p32 = scmp.eq.s32.totalorder %s13, 0
      %p33 = por %p31, %p32
      %p34 = scmp.ne.s32.totalorder %s23, %s26
      %p35 = scmp.eq.s32.totalorder %s18, 1
      %p36 = por %p34, %p35
      %p37 = scmp.ne.s32.totalorder %s26, %s27
      %p38 = scmp.eq.s32.totalorder %s18, 0
      %p39 = por %p37, %p38
      %p40 = scmp.ne.s32.totalorder %s26, %s27
      %p41 = scmp.eq.s32.totalorder %s19, 1
      %p42 = por %p40, %p41
      %p44 = scmp.ne.s32.totalorder %s27, %s43
      %p45 = scmp.eq.s32.totalorder %s19, 0
      %p46 = por %p44, %p45
      %s48 = sadd.s32 %s47, 1
      %p51 = scmp.eq.s32.totalorder %s13, 1
      %p52 = scmp.ne.s32.totalorder %s47, %s49
      %p53 = scmp.eq.s32.totalorder %s13, 0
      %p54 = por %p52, %p53
      %p55 = scmp.ne.s32.totalorder %s47, %s49
      %p56 = scmp.eq.s32.totalorder %s18, 1
      %p57 = por %p55, %p56
      %p58 = scmp.ne.s32.totalorder %s49, %s50
      %p59 = scmp.eq.s32.totalorder %s18, 0
      %p60 = por %p58, %p59
      %p61 = scmp.ne.s32.totalorder %s49, %s50
      %p62 = scmp.eq.s32.totalorder %s19, 1
      %p63 = por %p61, %p62
      %p65 = scmp.ne.s32.totalorder %s50, %s64
      %p66 = scmp.eq.s32.totalorder %s19, 0
      %p67 = por %p65, %p66
      %s69 = sadd.s32 %s68, 1
      %p72 = scmp.eq.s32.totalorder %s13, 1
      %p73 = scmp.ne.s32.totalorder %s68, %s70
      %p74 = scmp.eq.s32.totalorder %s13, 0
      %p75 = por %p73, %p74
      %p76 = scmp.ne.s32.totalorder %s68, %s70
      %p77 = scmp.eq.s32.totalorder %s18, 1
      %p78 = por %p76, %p77
      %p79 = scmp.ne.s32.totalorder %s70, %s71
      %p80 = scmp.eq.s32.totalorder %s18, 0
      %p81 = por %p79, %p80
      %p82 = scmp.ne.s32.totalorder %s70, %s71
      %p83 = scmp.eq.s32.totalorder %s19, 1
      %p84 = por %p82, %p83
      %p86 = scmp.ne.s32.totalorder %s71, %s85
      %p87 = scmp.eq.s32.totalorder %s19, 0
      %p88 = por %p86, %p87
      %s90 = sadd.s32 %s89, 1
      %p93 = scmp.eq.s32.totalorder %s13, 1
      %p94 = scmp.ne.s32.totalorder %s89, %s91
      %p95 = scmp.eq.s32.totalorder %s13, 0
      %p96 = por %p94, %p95
      %p97 = scmp.ne.s32.totalorder %s89, %s91
      %p98 = scmp.eq.s32.totalorder %s18, 1
      %p99 = por %p97, %p98
      %p100 = scmp.ne.s32.totalorder %s91, %s92
      %p101 = scmp.eq.s32.totalorder %s18, 0
      %p102 = por %p100, %p101
      %p103 = scmp.ne.s32.totalorder %s91, %s92
      %p104 = scmp.eq.s32.totalorder %s19, 1
      %p105 = por %p103, %p104
      %p107 = scmp.ne.s32.totalorder %s92, %s106
      %p108 = scmp.eq.s32.totalorder %s19, 0
      %p109 = por %p107, %p108
      %s110 = ssub.s32 %s13, %s20
      %p111 = scmp.eq.s32.totalorder %s110, 0
      %s113 = sadd.s32 %s112, 1
      %s114 = scalar_select %p111, %s112, %s113
      %p117 = pneg %p111
      %p118 = scmp.eq.s32.totalorder %s13, 1
      %p119 = por %p117, %p118
      %p120 = scmp.ne.s32.totalorder %s112, %s115
      %p121 = scmp.eq.s32.totalorder %s13, 0
      %p122 = por %p120, %p121
      %p123 = scmp.ne.s32.totalorder %s112, %s115
      %p124 = scmp.eq.s32.totalorder %s18, 1
      %p125 = por %p123, %p124
      %p126 = scmp.ne.s32.totalorder %s115, %s116
      %p127 = scmp.eq.s32.totalorder %s18, 0
      %p128 = por %p126, %p127
      %p129 = scmp.ne.s32.totalorder %s115, %s116
      %p130 = scmp.eq.s32.totalorder %s19, 1
      %p131 = por %p129, %p130
      %p133 = scmp.ne.s32.totalorder %s116, %s132
      %p134 = scmp.eq.s32.totalorder %s19, 0
      %p135 = por %p133, %p134
      %p136 = scmp.le.s32.totalorder 1, %s13
      %p137 = scmp.lt.s32.totalorder %s13, 3
      %p138 = pnand %p136, %p137
      %p139 = pneg %p138
      // Predicated region
      $region9: #{_forward.1} parent=5 // pred_check
        _
      $region10: #{_forward.1} parent=5 // pred_check_branch
        %141 = sbr.rel (%p138) target = $region12
      $region11: #{_forward.1} parent=5 // pred_region
        %s142 = ssub.s32 %s13, 1
        // Predicated region
        $region13: #{_forward.1} parent=11 // pred_check
          %p143 = pneg %p60
        $region14: #{_forward.1} parent=11 // pred_check_branch
          %145 = sbr.rel (%p143) target = $region16
        $region15: #{_forward.1} parent=11 // pred_region
          _
        $region16: #{_forward.1} parent=11 // pred_fallthru
          _
        // Predicated region
        $region17: #{_forward.1} parent=11 // pred_check
          %p146 = pneg %p81
        $region18: #{_forward.1} parent=11 // pred_check_branch
          %148 = sbr.rel (%p146) target = $region20
        $region19: #{_forward.1} parent=11 // pred_region
          _
        $region20: #{_forward.1} parent=11 // pred_fallthru
          _
        // Predicated region
        $region21: #{_forward.1} parent=11 // pred_check
          %p149 = pneg %p102
        $region22: #{_forward.1} parent=11 // pred_check_branch
          %151 = sbr.rel (%p149) target = $region24
        $region23: #{_forward.1} parent=11 // pred_region
          _
        $region24: #{_forward.1} parent=11 // pred_fallthru
          _
      $region12: #{_forward.1} parent=5 // pred_fallthru
        _
      %p152 = scmp.lt.s32.totalorder %s13, 2
      // Predicated region
      $region25: #{_forward.1} parent=5 // pred_check
        %p153 = pneg %p152
      $region26: #{_forward.1} parent=5 // pred_check_branch
        %155 = sbr.rel (%p153) target = $region28
      $region27: #{_forward.1} parent=5 // pred_region
        // Predicated region
        $region29: #{_forward.1} parent=27 // pred_check
          %p156 = pneg %p33
        $region30: #{_forward.1} parent=27 // pred_check_branch
          %158 = sbr.rel (%p156) target = $region32
        $region31: #{_forward.1} parent=27 // pred_region
          %s159 = smul.u32 128, %s13
          %p160 = scmp.lt.s32.totalorder %s159, 255
          %s161 = scalar_select %p160, %s159, 255
          %s162 = smul.addr %s161, 4
          %s163 = scalar_lea.vmem %s0, %s162
          %s164 = smul.u32 128, %s13
        $region32: #{_forward.1} parent=27 // pred_fallthru
          _
      $region28: #{_forward.1} parent=5 // pred_fallthru
        _
      %p165 = scmp.le.s32.totalorder 1, %s13
      %p166 = scmp.lt.s32.totalorder %s13, 3
      %p167 = pnand %p165, %p166
      %p168 = pneg %p167
      // Predicated region
      $region33: #{_forward.1} parent=5 // pred_check
        _
      $region34: #{_forward.1} parent=5 // pred_check_branch
        %170 = sbr.rel (%p167) target = $region36
      $region35: #{_forward.1} parent=5 // pred_region
        %s171 = ssub.s32 %s13, 1
        %s172 = smul.u32 128, %s18
        %p173 = scmp.lt.s32.totalorder %s172, 255
        %s174 = scalar_select %p173, %s172, 255
        %s175 = smul.addr %s174, 4
        %s176 = scalar_lea.vmem %s0, %s175
        %p177 = pneg %p39
        %p178 = pneg %p36
        %p179 = pneg %p60
        %p180 = pneg %p57
        %p181 = pneg %p81
        %p182 = pneg %p78
        %p183 = pneg %p102
        %p184 = pneg %p99
        %p185 = pneg %p128
        %p186 = pneg %p125
        %s187 = sand.u32 %s115, 1
        %s188 = scalar_lea.sflag [#allocation3], %s187
        %s189 = sand.u32 %s115, 1
        %s190 = smul.addr %s189, 16
        %s191 = scalar_lea.vmem [#allocation2], %s190
        %s192 = smul.u32 128, %s18
        %p193 = scmp.lt.s32.totalorder %s192, 255
        %s194 = scalar_select %p193, %s192, 255
        %s195 = smul.addr %s194, 4
        %s196 = scalar_lea.vmem %s0, %s195
        %s197 = smul.u32 128, %s18
        %s198 = smul.u32 2, %s18
        %v200 = vld [vmem:[%s196] sm:$0xf]
        %v201 = vld [vmem:[%s196 + $0x4] sm:$0xf]
        %v202 = vld [vmem:[%s196 + $0x8] sm:$0xf]
        %v203 = vld [vmem:[%s196 + $0xc] sm:$0xf]
        %v204 = vld [vmem:[%s196 + $0x10] sm:$0xf]
        %v205 = vld [vmem:[%s196 + $0x14] sm:$0xf]
        %v206 = vld [vmem:[%s196 + $0x18] sm:$0xf]
        %v207 = vld [vmem:[%s196 + $0x1c] sm:$0xf]
        %v208 = vld [vmem:[%s196 + $0x20] sm:$0xf]
        %v209 = vld [vmem:[%s196 + $0x24] sm:$0xf]
        %v210 = vld [vmem:[%s196 + $0x28] sm:$0xf]
        %v211 = vld [vmem:[%s196 + $0x2c] sm:$0xf]
        %v212 = vld [vmem:[%s196 + $0x30] sm:$0xf]
        %v213 = vld [vmem:[%s196 + $0x34] sm:$0xf]
        %v214 = vld [vmem:[%s196 + $0x38] sm:$0xf]
        %v215 = vld [vmem:[%s196 + $0x3c] sm:$0xf]
        %v216 = vld [vmem:[%s196 + $0x40] sm:$0xf]
        %v217 = vld [vmem:[%s196 + $0x44] sm:$0xf]
        %v218 = vld [vmem:[%s196 + $0x48] sm:$0xf]
        %v219 = vld [vmem:[%s196 + $0x4c] sm:$0xf]
        %v220 = vld [vmem:[%s196 + $0x50] sm:$0xf]
        %v221 = vld [vmem:[%s196 + $0x54] sm:$0xf]
        %v222 = vld [vmem:[%s196 + $0x58] sm:$0xf]
        %v223 = vld [vmem:[%s196 + $0x5c] sm:$0xf]
        %v224 = vld [vmem:[%s196 + $0x60] sm:$0xf]
        %v225 = vld [vmem:[%s196 + $0x64] sm:$0xf]
        %v226 = vld [vmem:[%s196 + $0x68] sm:$0xf]
        %v227 = vld [vmem:[%s196 + $0x6c] sm:$0xf]
        %v228 = vld [vmem:[%s196 + $0x70] sm:$0xf]
        %v229 = vld [vmem:[%s196 + $0x74] sm:$0xf]
        %v230 = vld [vmem:[%s196 + $0x78] sm:$0xf]
        %v231 = vld [vmem:[%s196 + $0x7c] sm:$0xf]
        %v232 = vld [vmem:[%s196 + $0x80] sm:$0xf]
        %v233 = vld [vmem:[%s196 + $0x84] sm:$0xf]
        %v234 = vld [vmem:[%s196 + $0x88] sm:$0xf]
        %v235 = vld [vmem:[%s196 + $0x8c] sm:$0xf]
        %v236 = vld [vmem:[%s196 + $0x90] sm:$0xf]
        %v237 = vld [vmem:[%s196 + $0x94] sm:$0xf]
        %v238 = vld [vmem:[%s196 + $0x98] sm:$0xf]
        %v239 = vld [vmem:[%s196 + $0x9c] sm:$0xf]
        %v240 = vld [vmem:[%s196 + $0xa0] sm:$0xf]
        %v241 = vld [vmem:[%s196 + $0xa4] sm:$0xf]
        %v242 = vld [vmem:[%s196 + $0xa8] sm:$0xf]
        %v243 = vld [vmem:[%s196 + $0xac] sm:$0xf]
        %v244 = vld [vmem:[%s196 + $0xb0] sm:$0xf]
        %v245 = vld [vmem:[%s196 + $0xb4] sm:$0xf]
        %v246 = vld [vmem:[%s196 + $0xb8] sm:$0xf]
        %v247 = vld [vmem:[%s196 + $0xbc] sm:$0xf]
        %v248 = vld [vmem:[%s196 + $0xc0] sm:$0xf]
        %v249 = vld [vmem:[%s196 + $0xc4] sm:$0xf]
        %v250 = vld [vmem:[%s196 + $0xc8] sm:$0xf]
        %v251 = vld [vmem:[%s196 + $0xcc] sm:$0xf]
        %v252 = vld [vmem:[%s196 + $0xd0] sm:$0xf]
        %v253 = vld [vmem:[%s196 + $0xd4] sm:$0xf]
        %v254 = vld [vmem:[%s196 + $0xd8] sm:$0xf]
        %v255 = vld [vmem:[%s196 + $0xdc] sm:$0xf]
        %v256 = vld [vmem:[%s196 + $0xe0] sm:$0xf]
        %v257 = vld [vmem:[%s196 + $0xe4] sm:$0xf]
        %v258 = vld [vmem:[%s196 + $0xe8] sm:$0xf]
        %v259 = vld [vmem:[%s196 + $0xec] sm:$0xf]
        %v260 = vld [vmem:[%s196 + $0xf0] sm:$0xf]
        %v261 = vld [vmem:[%s196 + $0xf4] sm:$0xf]
        %v262 = vld [vmem:[%s196 + $0xf8] sm:$0xf]
        %v263 = vld [vmem:[%s196 + $0xfc] sm:$0xf]
        %v264 = vld [vmem:[%s196 + $0x100] sm:$0xf]
        %v265 = vld [vmem:[%s196 + $0x104] sm:$0xf]
        %v266 = vld [vmem:[%s196 + $0x108] sm:$0xf]
        %v267 = vld [vmem:[%s196 + $0x10c] sm:$0xf]
        %v268 = vld [vmem:[%s196 + $0x110] sm:$0xf]
        %v269 = vld [vmem:[%s196 + $0x114] sm:$0xf]
        %v270 = vld [vmem:[%s196 + $0x118] sm:$0xf]
        %v271 = vld [vmem:[%s196 + $0x11c] sm:$0xf]
        %v272 = vld [vmem:[%s196 + $0x120] sm:$0xf]
        %v273 = vld [vmem:[%s196 + $0x124] sm:$0xf]
        %v274 = vld [vmem:[%s196 + $0x128] sm:$0xf]
        %v275 = vld [vmem:[%s196 + $0x12c] sm:$0xf]
        %v276 = vld [vmem:[%s196 + $0x130] sm:$0xf]
        %v277 = vld [vmem:[%s196 + $0x134] sm:$0xf]
        %v278 = vld [vmem:[%s196 + $0x138] sm:$0xf]
        %v279 = vld [vmem:[%s196 + $0x13c] sm:$0xf]
        %v280 = vld [vmem:[%s196 + $0x140] sm:$0xf]
        %v281 = vld [vmem:[%s196 + $0x144] sm:$0xf]
        %v282 = vld [vmem:[%s196 + $0x148] sm:$0xf]
        %v283 = vld [vmem:[%s196 + $0x14c] sm:$0xf]
        %v284 = vld [vmem:[%s196 + $0x150] sm:$0xf]
        %v285 = vld [vmem:[%s196 + $0x154] sm:$0xf]
        %v286 = vld [vmem:[%s196 + $0x158] sm:$0xf]
        %v287 = vld [vmem:[%s196 + $0x15c] sm:$0xf]
        %v288 = vld [vmem:[%s196 + $0x160] sm:$0xf]
        %v289 = vld [vmem:[%s196 + $0x164] sm:$0xf]
        %v290 = vld [vmem:[%s196 + $0x168] sm:$0xf]
        %v291 = vld [vmem:[%s196 + $0x16c] sm:$0xf]
        %v292 = vld [vmem:[%s196 + $0x170] sm:$0xf]
        %v293 = vld [vmem:[%s196 + $0x174] sm:$0xf]
        %v294 = vld [vmem:[%s196 + $0x178] sm:$0xf]
        %v295 = vld [vmem:[%s196 + $0x17c] sm:$0xf]
        %v296 = vld [vmem:[%s196 + $0x180] sm:$0xf]
        %v297 = vld [vmem:[%s196 + $0x184] sm:$0xf]
        %v298 = vld [vmem:[%s196 + $0x188] sm:$0xf]
        %v299 = vld [vmem:[%s196 + $0x18c] sm:$0xf]
        %v300 = vld [vmem:[%s196 + $0x190] sm:$0xf]
        %v301 = vld [vmem:[%s196 + $0x194] sm:$0xf]
        %v302 = vld [vmem:[%s196 + $0x198] sm:$0xf]
        %v303 = vld [vmem:[%s196 + $0x19c] sm:$0xf]
        %v304 = vld [vmem:[%s196 + $0x1a0] sm:$0xf]
        %v305 = vld [vmem:[%s196 + $0x1a4] sm:$0xf]
        %v306 = vld [vmem:[%s196 + $0x1a8] sm:$0xf]
        %v307 = vld [vmem:[%s196 + $0x1ac] sm:$0xf]
        %v308 = vld [vmem:[%s196 + $0x1b0] sm:$0xf]
        %v309 = vld [vmem:[%s196 + $0x1b4] sm:$0xf]
        %v310 = vld [vmem:[%s196 + $0x1b8] sm:$0xf]
        %v311 = vld [vmem:[%s196 + $0x1bc] sm:$0xf]
        %v312 = vld [vmem:[%s196 + $0x1c0] sm:$0xf]
        %v313 = vld [vmem:[%s196 + $0x1c4] sm:$0xf]
        %v314 = vld [vmem:[%s196 + $0x1c8] sm:$0xf]
        %v315 = vld [vmem:[%s196 + $0x1cc] sm:$0xf]
        %v316 = vld [vmem:[%s196 + $0x1d0] sm:$0xf]
        %v317 = vld [vmem:[%s196 + $0x1d4] sm:$0xf]
        %v318 = vld [vmem:[%s196 + $0x1d8] sm:$0xf]
        %v319 = vld [vmem:[%s196 + $0x1dc] sm:$0xf]
        %v320 = vld [vmem:[%s196 + $0x1e0] sm:$0xf]
        %v321 = vld [vmem:[%s196 + $0x1e4] sm:$0xf]
        %v322 = vld [vmem:[%s196 + $0x1e8] sm:$0xf]
        %v323 = vld [vmem:[%s196 + $0x1ec] sm:$0xf]
        %v324 = vld [vmem:[%s196 + $0x1f0] sm:$0xf]
        %v325 = vld [vmem:[%s196 + $0x1f4] sm:$0xf]
        %v326 = vld [vmem:[%s196 + $0x1f8] sm:$0xf]
        %v327 = vld [vmem:[%s196 + $0x1fc] sm:$0xf]
        %v328 = vld [vmem:[%s1] sm:$0x3]
        %v329 = vld [vmem:[%s2] sm:$0x1]
        %v331 = vlaneseq
        %v332 = vshrl.u32 %v331, 7
        %v333 = vsub.s32 0, %v332
        %v334 = vrot.slane %v329, %v333
        %v464 = vunpack.c.l.b16 %v200
        %v465 = vunpack.c.l.b16 %v201
        %v466 = vunpack.c.l.b16 %v202
        %v467 = vunpack.c.l.b16 %v203
        %v468 = vunpack.c.l.b16 %v204
        %v469 = vunpack.c.l.b16 %v205
        %v470 = vunpack.c.l.b16 %v206
        %v471 = vunpack.c.l.b16 %v207
        %v472 = vunpack.c.l.b16 %v208
        %v473 = vunpack.c.l.b16 %v209
        %v474 = vunpack.c.l.b16 %v210
        %v475 = vunpack.c.l.b16 %v211
        %v476 = vunpack.c.l.b16 %v212
        %v477 = vunpack.c.l.b16 %v213
        %v478 = vunpack.c.l.b16 %v214
        %v479 = vunpack.c.l.b16 %v215
        %v480 = vunpack.c.l.b16 %v216
        %v481 = vunpack.c.l.b16 %v217
        %v482 = vunpack.c.l.b16 %v218
        %v483 = vunpack.c.l.b16 %v219
        %v484 = vunpack.c.l.b16 %v220
        %v485 = vunpack.c.l.b16 %v221
        %v486 = vunpack.c.l.b16 %v222
        %v487 = vunpack.c.l.b16 %v223
        %v488 = vunpack.c.l.b16 %v224
        %v489 = vunpack.c.l.b16 %v225
        %v490 = vunpack.c.l.b16 %v226
        %v491 = vunpack.c.l.b16 %v227
        %v492 = vunpack.c.l.b16 %v228
        %v493 = vunpack.c.l.b16 %v229
        %v494 = vunpack.c.l.b16 %v230
        %v495 = vunpack.c.l.b16 %v231
        %v496 = vunpack.c.l.b16 %v232
        %v497 = vunpack.c.l.b16 %v233
        %v498 = vunpack.c.l.b16 %v234
        %v499 = vunpack.c.l.b16 %v235
        %v500 = vunpack.c.l.b16 %v236
        %v501 = vunpack.c.l.b16 %v237
        %v502 = vunpack.c.l.b16 %v238
        %v503 = vunpack.c.l.b16 %v239
        %v504 = vunpack.c.l.b16 %v240
        %v505 = vunpack.c.l.b16 %v241
        %v506 = vunpack.c.l.b16 %v242
        %v507 = vunpack.c.l.b16 %v243
        %v508 = vunpack.c.l.b16 %v244
        %v509 = vunpack.c.l.b16 %v245
        %v510 = vunpack.c.l.b16 %v246
        %v511 = vunpack.c.l.b16 %v247
        %v512 = vunpack.c.l.b16 %v248
        %v513 = vunpack.c.l.b16 %v249
        %v514 = vunpack.c.l.b16 %v250
        %v515 = vunpack.c.l.b16 %v251
        %v516 = vunpack.c.l.b16 %v252
        %v517 = vunpack.c.l.b16 %v253
        %v518 = vunpack.c.l.b16 %v254
        %v519 = vunpack.c.l.b16 %v255
        %v520 = vunpack.c.l.b16 %v256
        %v521 = vunpack.c.l.b16 %v257
        %v522 = vunpack.c.l.b16 %v258
        %v523 = vunpack.c.l.b16 %v259
        %v524 = vunpack.c.l.b16 %v260
        %v525 = vunpack.c.l.b16 %v261
        %v526 = vunpack.c.l.b16 %v262
        %v527 = vunpack.c.l.b16 %v263
        %v528 = vunpack.c.l.b16 %v264
        %v529 = vunpack.c.l.b16 %v265
        %v530 = vunpack.c.l.b16 %v266
        %v531 = vunpack.c.l.b16 %v267
        %v532 = vunpack.c.l.b16 %v268
        %v533 = vunpack.c.l.b16 %v269
        %v534 = vunpack.c.l.b16 %v270
        %v535 = vunpack.c.l.b16 %v271
        %v536 = vunpack.c.l.b16 %v272
        %v537 = vunpack.c.l.b16 %v273
        %v538 = vunpack.c.l.b16 %v274
        %v539 = vunpack.c.l.b16 %v275
        %v540 = vunpack.c.l.b16 %v276
        %v541 = vunpack.c.l.b16 %v277
        %v542 = vunpack.c.l.b16 %v278
        %v543 = vunpack.c.l.b16 %v279
        %v544 = vunpack.c.l.b16 %v280
        %v545 = vunpack.c.l.b16 %v281
        %v546 = vunpack.c.l.b16 %v282
        %v547 = vunpack.c.l.b16 %v283
        %v548 = vunpack.c.l.b16 %v284
        %v549 = vunpack.c.l.b16 %v285
        %v550 = vunpack.c.l.b16 %v286
        %v551 = vunpack.c.l.b16 %v287
        %v552 = vunpack.c.l.b16 %v288
        %v553 = vunpack.c.l.b16 %v289
        %v554 = vunpack.c.l.b16 %v290
        %v555 = vunpack.c.l.b16 %v291
        %v556 = vunpack.c.l.b16 %v292
        %v557 = vunpack.c.l.b16 %v293
        %v558 = vunpack.c.l.b16 %v294
        %v559 = vunpack.c.l.b16 %v295
        %v560 = vunpack.c.l.b16 %v296
        %v561 = vunpack.c.l.b16 %v297
        %v562 = vunpack.c.l.b16 %v298
        %v563 = vunpack.c.l.b16 %v299
        %v564 = vunpack.c.l.b16 %v300
        %v565 = vunpack.c.l.b16 %v301
        %v566 = vunpack.c.l.b16 %v302
        %v567 = vunpack.c.l.b16 %v303
        %v568 = vunpack.c.l.b16 %v304
        %v569 = vunpack.c.l.b16 %v305
        %v570 = vunpack.c.l.b16 %v306
        %v571 = vunpack.c.l.b16 %v307
        %v572 = vunpack.c.l.b16 %v308
        %v573 = vunpack.c.l.b16 %v309
        %v574 = vunpack.c.l.b16 %v310
        %v575 = vunpack.c.l.b16 %v311
        %v576 = vunpack.c.l.b16 %v312
        %v577 = vunpack.c.l.b16 %v313
        %v578 = vunpack.c.l.b16 %v314
        %v579 = vunpack.c.l.b16 %v315
        %v580 = vunpack.c.l.b16 %v316
        %v581 = vunpack.c.l.b16 %v317
        %v582 = vunpack.c.l.b16 %v318
        %v583 = vunpack.c.l.b16 %v319
        %v584 = vunpack.c.l.b16 %v320
        %v585 = vunpack.c.l.b16 %v321
        %v586 = vunpack.c.l.b16 %v322
        %v587 = vunpack.c.l.b16 %v323
        %v588 = vunpack.c.l.b16 %v324
        %v589 = vunpack.c.l.b16 %v325
        %v590 = vunpack.c.l.b16 %v326
        %v591 = vunpack.c.l.b16 %v327
        %v592 = vpack.c.b16 %v465, %v464
        %v593 = vpack.c.b16 %v467, %v466
        %v594 = vpack.c.b16 %v469, %v468
        %v595 = vpack.c.b16 %v471, %v470
        %v596 = vpack.c.b16 %v473, %v472
        %v597 = vpack.c.b16 %v475, %v474
        %v598 = vpack.c.b16 %v477, %v476
        %v599 = vpack.c.b16 %v479, %v478
        %v600 = vpack.c.b16 %v481, %v480
        %v601 = vpack.c.b16 %v483, %v482
        %v602 = vpack.c.b16 %v485, %v484
        %v603 = vpack.c.b16 %v487, %v486
        %v604 = vpack.c.b16 %v489, %v488
        %v605 = vpack.c.b16 %v491, %v490
        %v606 = vpack.c.b16 %v493, %v492
        %v607 = vpack.c.b16 %v495, %v494
        %v608 = vpack.c.b16 %v497, %v496
        %v609 = vpack.c.b16 %v499, %v498
        %v610 = vpack.c.b16 %v501, %v500
        %v611 = vpack.c.b16 %v503, %v502
        %v612 = vpack.c.b16 %v505, %v504
        %v613 = vpack.c.b16 %v507, %v506
        %v614 = vpack.c.b16 %v509, %v508
        %v615 = vpack.c.b16 %v511, %v510
        %v616 = vpack.c.b16 %v513, %v512
        %v617 = vpack.c.b16 %v515, %v514
        %v618 = vpack.c.b16 %v517, %v516
        %v619 = vpack.c.b16 %v519, %v518
        %v620 = vpack.c.b16 %v521, %v520
        %v621 = vpack.c.b16 %v523, %v522
        %v622 = vpack.c.b16 %v525, %v524
        %v623 = vpack.c.b16 %v527, %v526
        %v624 = vpack.c.b16 %v529, %v528
        %v625 = vpack.c.b16 %v531, %v530
        %v626 = vpack.c.b16 %v533, %v532
        %v627 = vpack.c.b16 %v535, %v534
        %v628 = vpack.c.b16 %v537, %v536
        %v629 = vpack.c.b16 %v539, %v538
        %v630 = vpack.c.b16 %v541, %v540
        %v631 = vpack.c.b16 %v543, %v542
        %v632 = vpack.c.b16 %v545, %v544
        %v633 = vpack.c.b16 %v547, %v546
        %v634 = vpack.c.b16 %v549, %v548
        %v635 = vpack.c.b16 %v551, %v550
        %v636 = vpack.c.b16 %v553, %v552
        %v637 = vpack.c.b16 %v555, %v554
        %v638 = vpack.c.b16 %v557, %v556
        %v639 = vpack.c.b16 %v559, %v558
        %v640 = vpack.c.b16 %v561, %v560
        %v641 = vpack.c.b16 %v563, %v562
        %v642 = vpack.c.b16 %v565, %v564
        %v643 = vpack.c.b16 %v567, %v566
        %v644 = vpack.c.b16 %v569, %v568
        %v645 = vpack.c.b16 %v571, %v570
        %v646 = vpack.c.b16 %v573, %v572
        %v647 = vpack.c.b16 %v575, %v574
        %v648 = vpack.c.b16 %v577, %v576
        %v649 = vpack.c.b16 %v579, %v578
        %v650 = vpack.c.b16 %v581, %v580
        %v651 = vpack.c.b16 %v583, %v582
        %v652 = vpack.c.b16 %v585, %v584
        %v653 = vpack.c.b16 %v587, %v586
        %v654 = vpack.c.b16 %v589, %v588
        %v655 = vpack.c.b16 %v591, %v590
        %vm656 = vcmask 31744
        %v658 = vsel %vm656, %v592, 0
        %v661 = vsel %vm656, %v593, 0
        %v664 = vsel %vm656, %v594, 0
        %v667 = vsel %vm656, %v595, 0
        %v670 = vsel %vm656, %v596, 0
        %v673 = vsel %vm656, %v597, 0
        %v676 = vsel %vm656, %v598, 0
        %v679 = vsel %vm656, %v599, 0
        %v682 = vsel %vm656, %v600, 0
        %v685 = vsel %vm656, %v601, 0
        %v688 = vsel %vm656, %v602, 0
        %v691 = vsel %vm656, %v603, 0
        %v694 = vsel %vm656, %v604, 0
        %v697 = vsel %vm656, %v605, 0
        %v700 = vsel %vm656, %v606, 0
        %v703 = vsel %vm656, %v607, 0
        %v706 = vsel %vm656, %v608, 0
        %v709 = vsel %vm656, %v609, 0
        %v712 = vsel %vm656, %v610, 0
        %v715 = vsel %vm656, %v611, 0
        %v718 = vsel %vm656, %v612, 0
        %v721 = vsel %vm656, %v613, 0
        %v724 = vsel %vm656, %v614, 0
        %v727 = vsel %vm656, %v615, 0
        %v730 = vsel %vm656, %v616, 0
        %v733 = vsel %vm656, %v617, 0
        %v736 = vsel %vm656, %v618, 0
        %v739 = vsel %vm656, %v619, 0
        %v742 = vsel %vm656, %v620, 0
        %v745 = vsel %vm656, %v621, 0
        %v748 = vsel %vm656, %v622, 0
        %v751 = vsel %vm656, %v623, 0
        %v754 = vsel %vm656, %v624, 0
        %v757 = vsel %vm656, %v625, 0
        %v760 = vsel %vm656, %v626, 0
        %v763 = vsel %vm656, %v627, 0
        %v766 = vsel %vm656, %v628, 0
        %v769 = vsel %vm656, %v629, 0
        %v772 = vsel %vm656, %v630, 0
        %v775 = vsel %vm656, %v631, 0
        %v778 = vsel %vm656, %v632, 0
        %v781 = vsel %vm656, %v633, 0
        %v784 = vsel %vm656, %v634, 0
        %v787 = vsel %vm656, %v635, 0
        %v790 = vsel %vm656, %v636, 0
        %v793 = vsel %vm656, %v637, 0
        %v796 = vsel %vm656, %v638, 0
        %v799 = vsel %vm656, %v639, 0
        %v802 = vsel %vm656, %v640, 0
        %v805 = vsel %vm656, %v641, 0
        %v808 = vsel %vm656, %v642, 0
        %v811 = vsel %vm656, %v643, 0
        %v814 = vsel %vm656, %v644, 0
        %v817 = vsel %vm656, %v645, 0
        %v820 = vsel %vm656, %v646, 0
        %v823 = vsel %vm656, %v647, 0
        %v826 = vsel %vm656, %v648, 0
        %v829 = vsel %vm656, %v649, 0
        %v832 = vsel %vm656, %v650, 0
        %v835 = vsel %vm656, %v651, 0
        %v838 = vsel %vm656, %v652, 0
        %v841 = vsel %vm656, %v653, 0
        %v844 = vsel %vm656, %v654, 0
        %v847 = vsel %vm656, %v655, 0
        %vm849 = vcmask 1041408
        %v851 = vsel %vm849, %v328, 0
        %853 = vmatprep.subr.bf16.mxu0 0
        %854 = vmatpush1.bf16.msra.mxu0 %v851
        %855 = vmatprep.subr.bf16.mxu0 0
        %856 = vmatpush1.bf16.msra.mxu0 0
        %857 = vmatprep.subr.bf16.mxu0 0
        %858 = vmatpush1.bf16.msra.mxu0 0
        %859 = vmatprep.subr.bf16.mxu0 0
        %860 = vmatpush1.bf16.msra.mxu0 0
        %861 = vmatprep.subr.bf16.mxu0 0
        %862 = vmatpush1.bf16.msra.mxu0 0
        %863 = vmatprep.subr.bf16.mxu0 0
        %864 = vmatpush1.bf16.msra.mxu0 0
        %865 = vmatprep.subr.bf16.mxu0 0
        %866 = vmatpush1.bf16.msra.mxu0 0
        %867 = vmatprep.subr.bf16.mxu0 0
        %868 = vmatpush1.bf16.msra.mxu0 0
        %869 = vmatprep.subr.bf16.mxu0 0
        %870 = vmatpush1.bf16.msra.mxu0 0
        %871 = vmatprep.subr.bf16.mxu0 0
        %872 = vmatpush1.bf16.msra.mxu0 0
        %873 = vmatprep.subr.bf16.mxu0 0
        %874 = vmatpush1.bf16.msra.mxu0 0
        %875 = vmatprep.subr.bf16.mxu0 0
        %876 = vmatpush1.bf16.msra.mxu0 0
        %877 = vmatprep.subr.bf16.mxu0 0
        %878 = vmatpush1.bf16.msra.mxu0 0
        %879 = vmatprep.subr.bf16.mxu0 0
        %880 = vmatpush1.bf16.msra.mxu0 0
        %881 = vmatprep.subr.bf16.mxu0 0
        %882 = vmatpush1.bf16.msra.mxu0 0
        %883 = vmatprep.subr.bf16.mxu0 0
        %884 = vmatpush1.bf16.msra.mxu0 0
        %885 = vmatprep.mubr.bf16.mxu0 0
        %886 = vmatmul.mubr.bf16.gmra.mrb[0].mxu0 %v658
        %v887 = vpop.f32.mrb[0].mxu0
        %v888 = vadd.f32 %v334, %v887
        %v889 = vpop.f32.mrb[0].mxu0
        %v890 = vpop.f32.mrb[0].mxu0
        %v891 = vadd.f32 %v334, %v890
        %v892 = vpop.f32.mrb[0].mxu0
        %893 = vmatprep.mubr.bf16.mxu0 0
        %894 = vmatmul.mubr.bf16.gmra.mrb[0].mxu0 %v661
        %v895 = vpop.f32.mrb[0].mxu0
        %v896 = vadd.f32 %v334, %v895
        %v897 = vpop.f32.mrb[0].mxu0
        %v898 = vpop.f32.mrb[0].mxu0
        %v899 = vadd.f32 %v334, %v898
        %v900 = vpop.f32.mrb[0].mxu0
        %901 = vmatprep.mubr.bf16.mxu0 0
        %902 = vmatmul.mubr.bf16.gmra.mrb[0].mxu0 %v664
        %v903 = vpop.f32.mrb[0].mxu0
        %v904 = vadd.f32 %v334, %v903
        %v905 = vpop.f32.mrb[0].mxu0
        %v906 = vpop.f32.mrb[0].mxu0
        %v907 = vadd.f32 %v334, %v906
        %v908 = vpop.f32.mrb[0].mxu0
        %909 = vmatprep.mubr.bf16.mxu0 0
        %910 = vmatmul.mubr.bf16.gmra.mrb[0].mxu0 %v667
        %v911 = vpop.f32.mrb[0].mxu0
        %v912 = vadd.f32 %v334, %v911
        %v913 = vpop.f32.mrb[0].mxu0
        %v914 = vpop.f32.mrb[0].mxu0
        %v915 = vadd.f32 %v334, %v914
        %v916 = vpop.f32.mrb[0].mxu0
        %917 = vmatprep.mubr.bf16.mxu0 0
        %918 = vmatmul.mubr.bf16.gmra.mrb[0].mxu0 %v670
        %v919 = vpop.f32.mrb[0].mxu0
        %v920 = vadd.f32 %v334, %v919
        %v921 = vpop.f32.mrb[0].mxu0
        %v922 = vpop.f32.mrb[0].mxu0
        %v923 = vadd.f32 %v334, %v922
        %v924 = vpop.f32.mrb[0].mxu0
        %925 = vmatprep.mubr.bf16.mxu0 0
        %926 = vmatmul.mubr.bf16.gmra.mrb[0].mxu0 %v673
        %v927 = vpop.f32.mrb[0].mxu0
        %v928 = vadd.f32 %v334, %v927
        %v929 = vpop.f32.mrb[0].mxu0
        %v930 = vpop.f32.mrb[0].mxu0
        %v931 = vadd.f32 %v334, %v930
        %v932 = vpop.f32.mrb[0].mxu0
        %933 = vmatprep.mubr.bf16.mxu0 0
        %934 = vmatmul.mubr.bf16.gmra.mrb[0].mxu0 %v676
        %v935 = vpop.f32.mrb[0].mxu0
        %v936 = vadd.f32 %v334, %v935
        %v937 = vpop.f32.mrb[0].mxu0
        %v938 = vpop.f32.mrb[0].mxu0
        %v939 = vadd.f32 %v334, %v938
        %v940 = vpop.f32.mrb[0].mxu0
        %941 = vmatprep.mubr.bf16.mxu0 0
        %942 = vmatmul.mubr.bf16.gmra.mrb[0].mxu0 %v679
        %v943 = vpop.f32.mrb[0].mxu0
        %v944 = vadd.f32 %v334, %v943
        %v945 = vpop.f32.mrb[0].mxu0
        %v946 = vpop.f32.mrb[0].mxu0
        %v947 = vadd.f32 %v334, %v946
        %v948 = vpop.f32.mrb[0].mxu0
        %949 = vmatprep.mubr.bf16.mxu0 0
        %950 = vmatmul.mubr.bf16.gmra.mrb[0].mxu0 %v682
        %v951 = vpop.f32.mrb[0].mxu0
        %v952 = vadd.f32 %v334, %v951
        %v953 = vpop.f32.mrb[0].mxu0
        %v954 = vpop.f32.mrb[0].mxu0
        %v955 = vadd.f32 %v334, %v954
        %v956 = vpop.f32.mrb[0].mxu0
        %957 = vmatprep.mubr.bf16.mxu0 0
        %958 = vmatmul.mubr.bf16.gmra.mrb[0].mxu0 %v685
        %v959 = vpop.f32.mrb[0].mxu0
        %v960 = vadd.f32 %v334, %v959
        %v961 = vpop.f32.mrb[0].mxu0
        %v962 = vpop.f32.mrb[0].mxu0
        %v963 = vadd.f32 %v334, %v962
        %v964 = vpop.f32.mrb[0].mxu0
        %965 = vmatprep.mubr.bf16.mxu0 0
        %966 = vmatmul.mubr.bf16.gmra.mrb[0].mxu0 %v688
        %v967 = vpop.f32.mrb[0].mxu0
        %v968 = vadd.f32 %v334, %v967
        %v969 = vpop.f32.mrb[0].mxu0
        %v970 = vpop.f32.mrb[0].mxu0
        %v971 = vadd.f32 %v334, %v970
        %v972 = vpop.f32.mrb[0].mxu0
        %973 = vmatprep.mubr.bf16.mxu0 0
        %974 = vmatmul.mubr.bf16.gmra.mrb[0].mxu0 %v691
        %v975 = vpop.f32.mrb[0].mxu0
        %v976 = vadd.f32 %v334, %v975
        %v977 = vpop.f32.mrb[0].mxu0
        %v978 = vpop.f32.mrb[0].mxu0
        %v979 = vadd.f32 %v334, %v978
        %v980 = vpop.f32.mrb[0].mxu0
        %981 = vmatprep.mubr.bf16.mxu0 0
        %982 = vmatmul.mubr.bf16.gmra.mrb[0].mxu0 %v694
        %v983 = vpop.f32.mrb[0].mxu0
        %v984 = vadd.f32 %v334, %v983
        %v985 = vpop.f32.mrb[0].mxu0
        %v986 = vpop.f32.mrb[0].mxu0
        %v987 = vadd.f32 %v334, %v986
        %v988 = vpop.f32.mrb[0].mxu0
        %989 = vmatprep.mubr.bf16.mxu0 0
        %990 = vmatmul.mubr.bf16.gmra.mrb[0].mxu0 %v697
        %v991 = vpop.f32.mrb[0].mxu0
        %v992 = vadd.f32 %v334, %v991
        %v993 = vpop.f32.mrb[0].mxu0
        %v994 = vpop.f32.mrb[0].mxu0
        %v995 = vadd.f32 %v334, %v994
        %v996 = vpop.f32.mrb[0].mxu0
        %997 = vmatprep.mubr.bf16.mxu0 0
        %998 = vmatmul.mubr.bf16.gmra.mrb[0].mxu0 %v700
        %v999 = vpop.f32.mrb[0].mxu0
        %v1000 = vadd.f32 %v334, %v999
        %v1001 = vpop.f32.mrb[0].mxu0
        %v1002 = vpop.f32.mrb[0].mxu0
        %v1003 = vadd.f32 %v334, %v1002
        %v1004 = vpop.f32.mrb[0].mxu0
        %1005 = vmatprep.mubr.bf16.mxu0 0
        %1006 = vmatmul.mubr.bf16.gmra.mrb[0].mxu0 %v703
        %v1007 = vpop.f32.mrb[0].mxu0
        %v1008 = vadd.f32 %v334, %v1007
        %v1009 = vpop.f32.mrb[0].mxu0
        %v1010 = vpop.f32.mrb[0].mxu0
        %v1011 = vadd.f32 %v334, %v1010
        %v1012 = vpop.f32.mrb[0].mxu0
        %1013 = vmatprep.mubr.bf16.mxu0 0
        %1014 = vmatmul.mubr.bf16.gmra.mrb[0].mxu0 %v706
        %v1015 = vpop.f32.mrb[0].mxu0
        %v1016 = vadd.f32 %v334, %v1015
        %v1017 = vpop.f32.mrb[0].mxu0
        %v1018 = vpop.f32.mrb[0].mxu0
        %v1019 = vadd.f32 %v334, %v1018
        %v1020 = vpop.f32.mrb[0].mxu0
        %1021 = vmatprep.mubr.bf16.mxu0 0
        %1022 = vmatmul.mubr.bf16.gmra.mrb[0].mxu0 %v709
        %v1023 = vpop.f32.mrb[0].mxu0
        %v1024 = vadd.f32 %v334, %v1023
        %v1025 = vpop.f32.mrb[0].mxu0
        %v1026 = vpop.f32.mrb[0].mxu0
        %v1027 = vadd.f32 %v334, %v1026
        %v1028 = vpop.f32.mrb[0].mxu0
        %1029 = vmatprep.mubr.bf16.mxu0 0
        %1030 = vmatmul.mubr.bf16.gmra.mrb[0].mxu0 %v712
        %v1031 = vpop.f32.mrb[0].mxu0
        %v1032 = vadd.f32 %v334, %v1031
        %v1033 = vpop.f32.mrb[0].mxu0
        %v1034 = vpop.f32.mrb[0].mxu0
        %v1035 = vadd.f32 %v334, %v1034
        %v1036 = vpop.f32.mrb[0].mxu0
        %1037 = vmatprep.mubr.bf16.mxu0 0
        %1038 = vmatmul.mubr.bf16.gmra.mrb[0].mxu0 %v715
        %v1039 = vpop.f32.mrb[0].mxu0
        %v1040 = vadd.f32 %v334, %v1039
        %v1041 = vpop.f32.mrb[0].mxu0
        %v1042 = vpop.f32.mrb[0].mxu0
        %v1043 = vadd.f32 %v334, %v1042
        %v1044 = vpop.f32.mrb[0].mxu0
        %1045 = vmatprep.mubr.bf16.mxu0 0
        %1046 = vmatmul.mubr.bf16.gmra.mrb[0].mxu0 %v718
        %v1047 = vpop.f32.mrb[0].mxu0
        %v1048 = vadd.f32 %v334, %v1047
        %v1049 = vpop.f32.mrb[0].mxu0
        %v1050 = vpop.f32.mrb[0].mxu0
        %v1051 = vadd.f32 %v334, %v1050
        %v1052 = vpop.f32.mrb[0].mxu0
        %1053 = vmatprep.mubr.bf16.mxu0 0
        %1054 = vmatmul.mubr.bf16.gmra.mrb[0].mxu0 %v721
        %v1055 = vpop.f32.mrb[0].mxu0
        %v1056 = vadd.f32 %v334, %v1055
        %v1057 = vpop.f32.mrb[0].mxu0
        %v1058 = vpop.f32.mrb[0].mxu0
        %v1059 = vadd.f32 %v334, %v1058
        %v1060 = vpop.f32.mrb[0].mxu0
        %1061 = vmatprep.mubr.bf16.mxu0 0
        %1062 = vmatmul.mubr.bf16.gmra.mrb[0].mxu0 %v724
        %v1063 = vpop.f32.mrb[0].mxu0
        %v1064 = vadd.f32 %v334, %v1063
        %v1065 = vpop.f32.mrb[0].mxu0
        %v1066 = vpop.f32.mrb[0].mxu0
        %v1067 = vadd.f32 %v334, %v1066
        %v1068 = vpop.f32.mrb[0].mxu0
        %1069 = vmatprep.mubr.bf16.mxu0 0
        %1070 = vmatmul.mubr.bf16.gmra.mrb[0].mxu0 %v727
        %v1071 = vpop.f32.mrb[0].mxu0
        %v1072 = vadd.f32 %v334, %v1071
        %v1073 = vpop.f32.mrb[0].mxu0
        %v1074 = vpop.f32.mrb[0].mxu0
        %v1075 = vadd.f32 %v334, %v1074
        %v1076 = vpop.f32.mrb[0].mxu0
        %1077 = vmatprep.mubr.bf16.mxu0 0
        %1078 = vmatmul.mubr.bf16.gmra.mrb[0].mxu0 %v730
        %v1079 = vpop.f32.mrb[0].mxu0
        %v1080 = vadd.f32 %v334, %v1079
        %v1081 = vpop.f32.mrb[0].mxu0
        %v1082 = vpop.f32.mrb[0].mxu0
        %v1083 = vadd.f32 %v334, %v1082
        %v1084 = vpop.f32.mrb[0].mxu0
        %1085 = vmatprep.mubr.bf16.mxu0 0
        %1086 = vmatmul.mubr.bf16.gmra.mrb[0].mxu0 %v733
        %v1087 = vpop.f32.mrb[0].mxu0
        %v1088 = vadd.f32 %v334, %v1087
        %v1089 = vpop.f32.mrb[0].mxu0
        %v1090 = vpop.f32.mrb[0].mxu0
        %v1091 = vadd.f32 %v334, %v1090
        %v1092 = vpop.f32.mrb[0].mxu0
        %1093 = vmatprep.mubr.bf16.mxu0 0
        %1094 = vmatmul.mubr.bf16.gmra.mrb[0].mxu0 %v736
        %v1095 = vpop.f32.mrb[0].mxu0
        %v1096 = vadd.f32 %v334, %v1095
        %v1097 = vpop.f32.mrb[0].mxu0
        %v1098 = vpop.f32.mrb[0].mxu0
        %v1099 = vadd.f32 %v334, %v1098
        %v1100 = vpop.f32.mrb[0].mxu0
        %1101 = vmatprep.mubr.bf16.mxu0 0
        %1102 = vmatmul.mubr.bf16.gmra.mrb[0].mxu0 %v739
        %v1103 = vpop.f32.mrb[0].mxu0
        %v1104 = vadd.f32 %v334, %v1103
        %v1105 = vpop.f32.mrb[0].mxu0
        %v1106 = vpop.f32.mrb[0].mxu0
        %v1107 = vadd.f32 %v334, %v1106
        %v1108 = vpop.f32.mrb[0].mxu0
        %1109 = vmatprep.mubr.bf16.mxu0 0
        %1110 = vmatmul.mubr.bf16.gmra.mrb[0].mxu0 %v742
        %v1111 = vpop.f32.mrb[0].mxu0
        %v1112 = vadd.f32 %v334, %v1111
        %v1113 = vpop.f32.mrb[0].mxu0
        %v1114 = vpop.f32.mrb[0].mxu0
        %v1115 = vadd.f32 %v334, %v1114
        %v1116 = vpop.f32.mrb[0].mxu0
        %1117 = vmatprep.mubr.bf16.mxu0 0
        %1118 = vmatmul.mubr.bf16.gmra.mrb[0].mxu0 %v745
        %v1119 = vpop.f32.mrb[0].mxu0
        %v1120 = vadd.f32 %v334, %v1119
        %v1121 = vpop.f32.mrb[0].mxu0
        %v1122 = vpop.f32.mrb[0].mxu0
        %v1123 = vadd.f32 %v334, %v1122
        %v1124 = vpop.f32.mrb[0].mxu0
        %1125 = vmatprep.mubr.bf16.mxu0 0
        %1126 = vmatmul.mubr.bf16.gmra.mrb[0].mxu0 %v748
        %v1127 = vpop.f32.mrb[0].mxu0
        %v1128 = vadd.f32 %v334, %v1127
        %v1129 = vpop.f32.mrb[0].mxu0
        %v1130 = vpop.f32.mrb[0].mxu0
        %v1131 = vadd.f32 %v334, %v1130
        %v1132 = vpop.f32.mrb[0].mxu0
        %1133 = vmatprep.mubr.bf16.mxu0 0
        %1134 = vmatmul.mubr.bf16.gmra.mrb[0].mxu0 %v751
        %v1135 = vpop.f32.mrb[0].mxu0
        %v1136 = vadd.f32 %v334, %v1135
        %v1137 = vpop.f32.mrb[0].mxu0
        %v1138 = vpop.f32.mrb[0].mxu0
        %v1139 = vadd.f32 %v334, %v1138
        %v1140 = vpop.f32.mrb[0].mxu0
        %1141 = vmatprep.mubr.bf16.mxu0 0
        %1142 = vmatmul.mubr.bf16.gmra.mrb[0].mxu0 %v754
        %v1143 = vpop.f32.mrb[0].mxu0
        %v1144 = vadd.f32 %v334, %v1143
        %v1145 = vpop.f32.mrb[0].mxu0
        %v1146 = vpop.f32.mrb[0].mxu0
        %v1147 = vadd.f32 %v334, %v1146
        %v1148 = vpop.f32.mrb[0].mxu0
        %1149 = vmatprep.mubr.bf16.mxu0 0
        %1150 = vmatmul.mubr.bf16.gmra.mrb[0].mxu0 %v757
        %v1151 = vpop.f32.mrb[0].mxu0
        %v1152 = vadd.f32 %v334, %v1151
        %v1153 = vpop.f32.mrb[0].mxu0
        %v1154 = vpop.f32.mrb[0].mxu0
        %v1155 = vadd.f32 %v334, %v1154
        %v1156 = vpop.f32.mrb[0].mxu0
        %1157 = vmatprep.mubr.bf16.mxu0 0
        %1158 = vmatmul.mubr.bf16.gmra.mrb[0].mxu0 %v760
        %v1159 = vpop.f32.mrb[0].mxu0
        %v1160 = vadd.f32 %v334, %v1159
        %v1161 = vpop.f32.mrb[0].mxu0
        %v1162 = vpop.f32.mrb[0].mxu0
        %v1163 = vadd.f32 %v334, %v1162
        %v1164 = vpop.f32.mrb[0].mxu0
        %1165 = vmatprep.mubr.bf16.mxu0 0
        %1166 = vmatmul.mubr.bf16.gmra.mrb[0].mxu0 %v763
        %v1167 = vpop.f32.mrb[0].mxu0
        %v1168 = vadd.f32 %v334, %v1167
        %v1169 = vpop.f32.mrb[0].mxu0
        %v1170 = vpop.f32.mrb[0].mxu0
        %v1171 = vadd.f32 %v334, %v1170
        %v1172 = vpop.f32.mrb[0].mxu0
        %1173 = vmatprep.mubr.bf16.mxu0 0
        %1174 = vmatmul.mubr.bf16.gmra.mrb[0].mxu0 %v766
        %v1175 = vpop.f32.mrb[0].mxu0
        %v1176 = vadd.f32 %v334, %v1175
        %v1177 = vpop.f32.mrb[0].mxu0
        %v1178 = vpop.f32.mrb[0].mxu0
        %v1179 = vadd.f32 %v334, %v1178
        %v1180 = vpop.f32.mrb[0].mxu0
        %1181 = vmatprep.mubr.bf16.mxu0 0
        %1182 = vmatmul.mubr.bf16.gmra.mrb[0].mxu0 %v769
        %v1183 = vpop.f32.mrb[0].mxu0
        %v1184 = vadd.f32 %v334, %v1183
        %v1185 = vpop.f32.mrb[0].mxu0
        %v1186 = vpop.f32.mrb[0].mxu0
        %v1187 = vadd.f32 %v334, %v1186
        %v1188 = vpop.f32.mrb[0].mxu0
        %1189 = vmatprep.mubr.bf16.mxu0 0
        %1190 = vmatmul.mubr.bf16.gmra.mrb[0].mxu0 %v772
        %v1191 = vpop.f32.mrb[0].mxu0
        %v1192 = vadd.f32 %v334, %v1191
        %v1193 = vpop.f32.mrb[0].mxu0
        %v1194 = vpop.f32.mrb[0].mxu0
        %v1195 = vadd.f32 %v334, %v1194
        %v1196 = vpop.f32.mrb[0].mxu0
        %1197 = vmatprep.mubr.bf16.mxu0 0
        %1198 = vmatmul.mubr.bf16.gmra.mrb[0].mxu0 %v775
        %v1199 = vpop.f32.mrb[0].mxu0
        %v1200 = vadd.f32 %v334, %v1199
        %v1201 = vpop.f32.mrb[0].mxu0
        %v1202 = vpop.f32.mrb[0].mxu0
        %v1203 = vadd.f32 %v334, %v1202
        %v1204 = vpop.f32.mrb[0].mxu0
        %1205 = vmatprep.mubr.bf16.mxu0 0
        %1206 = vmatmul.mubr.bf16.gmra.mrb[0].mxu0 %v778
        %v1207 = vpop.f32.mrb[0].mxu0
        %v1208 = vadd.f32 %v334, %v1207
        %v1209 = vpop.f32.mrb[0].mxu0
        %v1210 = vpop.f32.mrb[0].mxu0
        %v1211 = vadd.f32 %v334, %v1210
        %v1212 = vpop.f32.mrb[0].mxu0
        %1213 = vmatprep.mubr.bf16.mxu0 0
        %1214 = vmatmul.mubr.bf16.gmra.mrb[0].mxu0 %v781
        %v1215 = vpop.f32.mrb[0].mxu0
        %v1216 = vadd.f32 %v334, %v1215
        %v1217 = vpop.f32.mrb[0].mxu0
        %v1218 = vpop.f32.mrb[0].mxu0
        %v1219 = vadd.f32 %v334, %v1218
        %v1220 = vpop.f32.mrb[0].mxu0
        %1221 = vmatprep.mubr.bf16.mxu0 0
        %1222 = vmatmul.mubr.bf16.gmra.mrb[0].mxu0 %v784
        %v1223 = vpop.f32.mrb[0].mxu0
        %v1224 = vadd.f32 %v334, %v1223
        %v1225 = vpop.f32.mrb[0].mxu0
        %v1226 = vpop.f32.mrb[0].mxu0
        %v1227 = vadd.f32 %v334, %v1226
        %v1228 = vpop.f32.mrb[0].mxu0
        %1229 = vmatprep.mubr.bf16.mxu0 0
        %1230 = vmatmul.mubr.bf16.gmra.mrb[0].mxu0 %v787
        %v1231 = vpop.f32.mrb[0].mxu0
        %v1232 = vadd.f32 %v334, %v1231
        %v1233 = vpop.f32.mrb[0].mxu0
        %v1234 = vpop.f32.mrb[0].mxu0
        %v1235 = vadd.f32 %v334, %v1234
        %v1236 = vpop.f32.mrb[0].mxu0
        %1237 = vmatprep.mubr.bf16.mxu0 0
        %1238 = vmatmul.mubr.bf16.gmra.mrb[0].mxu0 %v790
        %v1239 = vpop.f32.mrb[0].mxu0
        %v1240 = vadd.f32 %v334, %v1239
        %v1241 = vpop.f32.mrb[0].mxu0
        %v1242 = vpop.f32.mrb[0].mxu0
        %v1243 = vadd.f32 %v334, %v1242
        %v1244 = vpop.f32.mrb[0].mxu0
        %1245 = vmatprep.mubr.bf16.mxu0 0
        %1246 = vmatmul.mubr.bf16.gmra.mrb[0].mxu0 %v793
        %v1247 = vpop.f32.mrb[0].mxu0
        %v1248 = vadd.f32 %v334, %v1247
        %v1249 = vpop.f32.mrb[0].mxu0
        %v1250 = vpop.f32.mrb[0].mxu0
        %v1251 = vadd.f32 %v334, %v1250
        %v1252 = vpop.f32.mrb[0].mxu0
        %1253 = vmatprep.mubr.bf16.mxu0 0
        %1254 = vmatmul.mubr.bf16.gmra.mrb[0].mxu0 %v796
        %v1255 = vpop.f32.mrb[0].mxu0
        %v1256 = vadd.f32 %v334, %v1255
        %v1257 = vpop.f32.mrb[0].mxu0
        %v1258 = vpop.f32.mrb[0].mxu0
        %v1259 = vadd.f32 %v334, %v1258
        %v1260 = vpop.f32.mrb[0].mxu0
        %1261 = vmatprep.mubr.bf16.mxu0 0
        %1262 = vmatmul.mubr.bf16.gmra.mrb[0].mxu0 %v799
        %v1263 = vpop.f32.mrb[0].mxu0
        %v1264 = vadd.f32 %v334, %v1263
        %v1265 = vpop.f32.mrb[0].mxu0
        %v1266 = vpop.f32.mrb[0].mxu0
        %v1267 = vadd.f32 %v334, %v1266
        %v1268 = vpop.f32.mrb[0].mxu0
        %1269 = vmatprep.mubr.bf16.mxu0 0
        %1270 = vmatmul.mubr.bf16.gmra.mrb[0].mxu0 %v802
        %v1271 = vpop.f32.mrb[0].mxu0
        %v1272 = vadd.f32 %v334, %v1271
        %v1273 = vpop.f32.mrb[0].mxu0
        %v1274 = vpop.f32.mrb[0].mxu0
        %v1275 = vadd.f32 %v334, %v1274
        %v1276 = vpop.f32.mrb[0].mxu0
        %1277 = vmatprep.mubr.bf16.mxu0 0
        %1278 = vmatmul.mubr.bf16.gmra.mrb[0].mxu0 %v805
        %v1279 = vpop.f32.mrb[0].mxu0
        %v1280 = vadd.f32 %v334, %v1279
        %v1281 = vpop.f32.mrb[0].mxu0
        %v1282 = vpop.f32.mrb[0].mxu0
        %v1283 = vadd.f32 %v334, %v1282
        %v1284 = vpop.f32.mrb[0].mxu0
        %1285 = vmatprep.mubr.bf16.mxu0 0
        %1286 = vmatmul.mubr.bf16.gmra.mrb[0].mxu0 %v808
        %v1287 = vpop.f32.mrb[0].mxu0
        %v1288 = vadd.f32 %v334, %v1287
        %v1289 = vpop.f32.mrb[0].mxu0
        %v1290 = vpop.f32.mrb[0].mxu0
        %v1291 = vadd.f32 %v334, %v1290
        %v1292 = vpop.f32.mrb[0].mxu0
        %1293 = vmatprep.mubr.bf16.mxu0 0
        %1294 = vmatmul.mubr.bf16.gmra.mrb[0].mxu0 %v811
        %v1295 = vpop.f32.mrb[0].mxu0
        %v1296 = vadd.f32 %v334, %v1295
        %v1297 = vpop.f32.mrb[0].mxu0
        %v1298 = vpop.f32.mrb[0].mxu0
        %v1299 = vadd.f32 %v334, %v1298
        %v1300 = vpop.f32.mrb[0].mxu0
        %1301 = vmatprep.mubr.bf16.mxu0 0
        %1302 = vmatmul.mubr.bf16.gmra.mrb[0].mxu0 %v814
        %v1303 = vpop.f32.mrb[0].mxu0
        %v1304 = vadd.f32 %v334, %v1303
        %v1305 = vpop.f32.mrb[0].mxu0
        %v1306 = vpop.f32.mrb[0].mxu0
        %v1307 = vadd.f32 %v334, %v1306
        %v1308 = vpop.f32.mrb[0].mxu0
        %1309 = vmatprep.mubr.bf16.mxu0 0
        %1310 = vmatmul.mubr.bf16.gmra.mrb[0].mxu0 %v817
        %v1311 = vpop.f32.mrb[0].mxu0
        %v1312 = vadd.f32 %v334, %v1311
        %v1313 = vpop.f32.mrb[0].mxu0
        %v1314 = vpop.f32.mrb[0].mxu0
        %v1315 = vadd.f32 %v334, %v1314
        %v1316 = vpop.f32.mrb[0].mxu0
        %1317 = vmatprep.mubr.bf16.mxu0 0
        %1318 = vmatmul.mubr.bf16.gmra.mrb[0].mxu0 %v820
        %v1319 = vpop.f32.mrb[0].mxu0
        %v1320 = vadd.f32 %v334, %v1319
        %v1321 = vpop.f32.mrb[0].mxu0
        %v1322 = vpop.f32.mrb[0].mxu0
        %v1323 = vadd.f32 %v334, %v1322
        %v1324 = vpop.f32.mrb[0].mxu0
        %1325 = vmatprep.mubr.bf16.mxu0 0
        %1326 = vmatmul.mubr.bf16.gmra.mrb[0].mxu0 %v823
        %v1327 = vpop.f32.mrb[0].mxu0
        %v1328 = vadd.f32 %v334, %v1327
        %v1329 = vpop.f32.mrb[0].mxu0
        %v1330 = vpop.f32.mrb[0].mxu0
        %v1331 = vadd.f32 %v334, %v1330
        %v1332 = vpop.f32.mrb[0].mxu0
        %1333 = vmatprep.mubr.bf16.mxu0 0
        %1334 = vmatmul.mubr.bf16.gmra.mrb[0].mxu0 %v826
        %v1335 = vpop.f32.mrb[0].mxu0
        %v1336 = vadd.f32 %v334, %v1335
        %v1337 = vpop.f32.mrb[0].mxu0
        %v1338 = vpop.f32.mrb[0].mxu0
        %v1339 = vadd.f32 %v334, %v1338
        %v1340 = vpop.f32.mrb[0].mxu0
        %1341 = vmatprep.mubr.bf16.mxu0 0
        %1342 = vmatmul.mubr.bf16.gmra.mrb[0].mxu0 %v829
        %v1343 = vpop.f32.mrb[0].mxu0
        %v1344 = vadd.f32 %v334, %v1343
        %v1345 = vpop.f32.mrb[0].mxu0
        %v1346 = vpop.f32.mrb[0].mxu0
        %v1347 = vadd.f32 %v334, %v1346
        %v1348 = vpop.f32.mrb[0].mxu0
        %1349 = vmatprep.mubr.bf16.mxu0 0
        %1350 = vmatmul.mubr.bf16.gmra.mrb[0].mxu0 %v832
        %v1351 = vpop.f32.mrb[0].mxu0
        %v1352 = vadd.f32 %v334, %v1351
        %v1353 = vpop.f32.mrb[0].mxu0
        %v1354 = vpop.f32.mrb[0].mxu0
        %v1355 = vadd.f32 %v334, %v1354
        %v1356 = vpop.f32.mrb[0].mxu0
        %1357 = vmatprep.mubr.bf16.mxu0 0
        %1358 = vmatmul.mubr.bf16.gmra.mrb[0].mxu0 %v835
        %v1359 = vpop.f32.mrb[0].mxu0
        %v1360 = vadd.f32 %v334, %v1359
        %v1361 = vpop.f32.mrb[0].mxu0
        %v1362 = vpop.f32.mrb[0].mxu0
        %v1363 = vadd.f32 %v334, %v1362
        %v1364 = vpop.f32.mrb[0].mxu0
        %1365 = vmatprep.mubr.bf16.mxu0 0
        %1366 = vmatmul.mubr.bf16.gmra.mrb[0].mxu0 %v838
        %v1367 = vpop.f32.mrb[0].mxu0
        %v1368 = vadd.f32 %v334, %v1367
        %v1369 = vpop.f32.mrb[0].mxu0
        %v1370 = vpop.f32.mrb[0].mxu0
        %v1371 = vadd.f32 %v334, %v1370
        %v1372 = vpop.f32.mrb[0].mxu0
        %1373 = vmatprep.mubr.bf16.mxu0 0
        %1374 = vmatmul.mubr.bf16.gmra.mrb[0].mxu0 %v841
        %v1375 = vpop.f32.mrb[0].mxu0
        %v1376 = vadd.f32 %v334, %v1375
        %v1377 = vpop.f32.mrb[0].mxu0
        %v1378 = vpop.f32.mrb[0].mxu0
        %v1379 = vadd.f32 %v334, %v1378
        %v1380 = vpop.f32.mrb[0].mxu0
        %1381 = vmatprep.mubr.bf16.mxu0 0
        %1382 = vmatmul.mubr.bf16.gmra.mrb[0].mxu0 %v844
        %v1383 = vpop.f32.mrb[0].mxu0
        %v1384 = vadd.f32 %v334, %v1383
        %v1385 = vpop.f32.mrb[0].mxu0
        %v1386 = vpop.f32.mrb[0].mxu0
        %v1387 = vadd.f32 %v334, %v1386
        %v1388 = vpop.f32.mrb[0].mxu0
        %1389 = vmatprep.mubr.bf16.mxu0 0
        %1390 = vmatmul.mubr.bf16.gmra.mrb[0].mxu0 %v847
        %v1391 = vpop.f32.mrb[0].mxu0
        %v1392 = vadd.f32 %v334, %v1391
        %v1393 = vpop.f32.mrb[0].mxu0
        %v1394 = vpop.f32.mrb[0].mxu0
        %v1395 = vadd.f32 %v334, %v1394
        %v1396 = vpop.f32.mrb[0].mxu0
        %1397 = vdwg.mxu0
        %v1398 = vxor.u32 %v888, 2147483648
        %v1399 = vxor.u32 %v891, 2147483648
        %v1400 = vxor.u32 %v896, 2147483648
        %v1401 = vxor.u32 %v899, 2147483648
        %v1402 = vxor.u32 %v904, 2147483648
        %v1403 = vxor.u32 %v907, 2147483648
        %v1404 = vxor.u32 %v912, 2147483648
        %v1405 = vxor.u32 %v915, 2147483648
        %v1406 = vxor.u32 %v920, 2147483648
        %v1407 = vxor.u32 %v923, 2147483648
        %v1408 = vxor.u32 %v928, 2147483648
        %v1409 = vxor.u32 %v931, 2147483648
        %v1410 = vxor.u32 %v936, 2147483648
        %v1411 = vxor.u32 %v939, 2147483648
        %v1412 = vxor.u32 %v944, 2147483648
        %v1413 = vxor.u32 %v947, 2147483648
        %v1414 = vxor.u32 %v952, 2147483648
        %v1415 = vxor.u32 %v955, 2147483648
        %v1416 = vxor.u32 %v960, 2147483648
        %v1417 = vxor.u32 %v963, 2147483648
        %v1418 = vxor.u32 %v968, 2147483648
        %v1419 = vxor.u32 %v971, 2147483648
        %v1420 = vxor.u32 %v976, 2147483648
        %v1421 = vxor.u32 %v979, 2147483648
        %v1422 = vxor.u32 %v984, 2147483648
        %v1423 = vxor.u32 %v987, 2147483648
        %v1424 = vxor.u32 %v992, 2147483648
        %v1425 = vxor.u32 %v995, 2147483648
        %v1426 = vxor.u32 %v1000, 2147483648
        %v1427 = vxor.u32 %v1003, 2147483648
        %v1428 = vxor.u32 %v1008, 2147483648
        %v1429 = vxor.u32 %v1011, 2147483648
        %v1430 = vxor.u32 %v1016, 2147483648
        %v1431 = vxor.u32 %v1019, 2147483648
        %v1432 = vxor.u32 %v1024, 2147483648
        %v1433 = vxor.u32 %v1027, 2147483648
        %v1434 = vxor.u32 %v1032, 2147483648
        %v1435 = vxor.u32 %v1035, 2147483648
        %v1436 = vxor.u32 %v1040, 2147483648
        %v1437 = vxor.u32 %v1043, 2147483648
        %v1438 = vxor.u32 %v1048, 2147483648
        %v1439 = vxor.u32 %v1051, 2147483648
        %v1440 = vxor.u32 %v1056, 2147483648
        %v1441 = vxor.u32 %v1059, 2147483648
        %v1442 = vxor.u32 %v1064, 2147483648
        %v1443 = vxor.u32 %v1067, 2147483648
        %v1444 = vxor.u32 %v1072, 2147483648
        %v1445 = vxor.u32 %v1075, 2147483648
        %v1446 = vxor.u32 %v1080, 2147483648
        %v1447 = vxor.u32 %v1083, 2147483648
        %v1448 = vxor.u32 %v1088, 2147483648
        %v1449 = vxor.u32 %v1091, 2147483648
        %v1450 = vxor.u32 %v1096, 2147483648
        %v1451 = vxor.u32 %v1099, 2147483648
        %v1452 = vxor.u32 %v1104, 2147483648
        %v1453 = vxor.u32 %v1107, 2147483648
        %v1454 = vxor.u32 %v1112, 2147483648
        %v1455 = vxor.u32 %v1115, 2147483648
        %v1456 = vxor.u32 %v1120, 2147483648
        %v1457 = vxor.u32 %v1123, 2147483648
        %v1458 = vxor.u32 %v1128, 2147483648
        %v1459 = vxor.u32 %v1131, 2147483648
        %v1460 = vxor.u32 %v1136, 2147483648
        %v1461 = vxor.u32 %v1139, 2147483648
        %v1462 = vxor.u32 %v1144, 2147483648
        %v1463 = vxor.u32 %v1147, 2147483648
        %v1464 = vxor.u32 %v1152, 2147483648
        %v1465 = vxor.u32 %v1155, 2147483648
        %v1466 = vxor.u32 %v1160, 2147483648
        %v1467 = vxor.u32 %v1163, 2147483648
        %v1468 = vxor.u32 %v1168, 2147483648
        %v1469 = vxor.u32 %v1171, 2147483648
        %v1470 = vxor.u32 %v1176, 2147483648
        %v1471 = vxor.u32 %v1179, 2147483648
        %v1472 = vxor.u32 %v1184, 2147483648
        %v1473 = vxor.u32 %v1187, 2147483648
        %v1474 = vxor.u32 %v1192, 2147483648
        %v1475 = vxor.u32 %v1195, 2147483648
        %v1476 = vxor.u32 %v1200, 2147483648
        %v1477 = vxor.u32 %v1203, 2147483648
        %v1478 = vxor.u32 %v1208, 2147483648
        %v1479 = vxor.u32 %v1211, 2147483648
        %v1480 = vxor.u32 %v1216, 2147483648
        %v1481 = vxor.u32 %v1219, 2147483648
        %v1482 = vxor.u32 %v1224, 2147483648
        %v1483 = vxor.u32 %v1227, 2147483648
        %v1484 = vxor.u32 %v1232, 2147483648
        %v1485 = vxor.u32 %v1235, 2147483648
        %v1486 = vxor.u32 %v1240, 2147483648
        %v1487 = vxor.u32 %v1243, 2147483648
        %v1488 = vxor.u32 %v1248, 2147483648
        %v1489 = vxor.u32 %v1251, 2147483648
        %v1490 = vxor.u32 %v1256, 2147483648
        %v1491 = vxor.u32 %v1259, 2147483648
        %v1492 = vxor.u32 %v1264, 2147483648
        %v1493 = vxor.u32 %v1267, 2147483648
        %v1494 = vxor.u32 %v1272, 2147483648
        %v1495 = vxor.u32 %v1275, 2147483648
        %v1496 = vxor.u32 %v1280, 2147483648
        %v1497 = vxor.u32 %v1283, 2147483648
        %v1498 = vxor.u32 %v1288, 2147483648
        %v1499 = vxor.u32 %v1291, 2147483648
        %v1500 = vxor.u32 %v1296, 2147483648
        %v1501 = vxor.u32 %v1299, 2147483648
        %v1502 = vxor.u32 %v1304, 2147483648
        %v1503 = vxor.u32 %v1307, 2147483648
        %v1504 = vxor.u32 %v1312, 2147483648
        %v1505 = vxor.u32 %v1315, 2147483648
        %v1506 = vxor.u32 %v1320, 2147483648
        %v1507 = vxor.u32 %v1323, 2147483648
        %v1508 = vxor.u32 %v1328, 2147483648
        %v1509 = vxor.u32 %v1331, 2147483648
        %v1510 = vxor.u32 %v1336, 2147483648
        %v1511 = vxor.u32 %v1339, 2147483648
        %v1512 = vxor.u32 %v1344, 2147483648
        %v1513 = vxor.u32 %v1347, 2147483648
        %v1514 = vxor.u32 %v1352, 2147483648
        %v1515 = vxor.u32 %v1355, 2147483648
        %v1516 = vxor.u32 %v1360, 2147483648
        %v1517 = vxor.u32 %v1363, 2147483648
        %v1518 = vxor.u32 %v1368, 2147483648
        %v1519 = vxor.u32 %v1371, 2147483648
        %v1520 = vxor.u32 %v1376, 2147483648
        %v1521 = vxor.u32 %v1379, 2147483648
        %v1522 = vxor.u32 %v1384, 2147483648
        %v1523 = vxor.u32 %v1387, 2147483648
        %v1524 = vxor.u32 %v1392, 2147483648
        %v1525 = vxor.u32 %v1395, 2147483648
        %v1526 = vmul.f32 %v1398, 1.442695
        %v1527 = vpow.pop %v1526
        %v1528 = vmul.f32 %v1399, 1.442695
        %v1529 = vpow.pop %v1528
        %v1530 = vmul.f32 %v1400, 1.442695
        %v1531 = vpow.pop %v1530
        %v1532 = vmul.f32 %v1401, 1.442695
        %v1533 = vpow.pop %v1532
        %v1534 = vmul.f32 %v1402, 1.442695
        %v1535 = vpow.pop %v1534
        %v1536 = vmul.f32 %v1403, 1.442695
        %v1537 = vpow.pop %v1536
        %v1538 = vmul.f32 %v1404, 1.442695
        %v1539 = vpow.pop %v1538
        %v1540 = vmul.f32 %v1405, 1.442695
        %v1541 = vpow.pop %v1540
        %v1542 = vmul.f32 %v1406, 1.442695
        %v1543 = vpow.pop %v1542
        %v1544 = vmul.f32 %v1407, 1.442695
        %v1545 = vpow.pop %v1544
        %v1546 = vmul.f32 %v1408, 1.442695
        %v1547 = vpow.pop %v1546
        %v1548 = vmul.f32 %v1409, 1.442695
        %v1549 = vpow.pop %v1548
        %v1550 = vmul.f32 %v1410, 1.442695
        %v1551 = vpow.pop %v1550
        %v1552 = vmul.f32 %v1411, 1.442695
        %v1553 = vpow.pop %v1552
        %v1554 = vmul.f32 %v1412, 1.442695
        %v1555 = vpow.pop %v1554
        %v1556 = vmul.f32 %v1413, 1.442695
        %v1557 = vpow.pop %v1556
        %v1558 = vmul.f32 %v1414, 1.442695
        %v1559 = vpow.pop %v1558
        %v1560 = vmul.f32 %v1415, 1.442695
        %v1561 = vpow.pop %v1560
        %v1562 = vmul.f32 %v1416, 1.442695
        %v1563 = vpow.pop %v1562
        %v1564 = vmul.f32 %v1417, 1.442695
        %v1565 = vpow.pop %v1564
        %v1566 = vmul.f32 %v1418, 1.442695
        %v1567 = vpow.pop %v1566
        %v1568 = vmul.f32 %v1419, 1.442695
        %v1569 = vpow.pop %v1568
        %v1570 = vmul.f32 %v1420, 1.442695
        %v1571 = vpow.pop %v1570
        %v1572 = vmul.f32 %v1421, 1.442695
        %v1573 = vpow.pop %v1572
        %v1574 = vmul.f32 %v1422, 1.442695
        %v1575 = vpow.pop %v1574
        %v1576 = vmul.f32 %v1423, 1.442695
        %v1577 = vpow.pop %v1576
        %v1578 = vmul.f32 %v1424, 1.442695
        %v1579 = vpow.pop %v1578
        %v1580 = vmul.f32 %v1425, 1.442695
        %v1581 = vpow.pop %v1580
        %v1582 = vmul.f32 %v1426, 1.442695
        %v1583 = vpow.pop %v1582
        %v1584 = vmul.f32 %v1427, 1.442695
        %v1585 = vpow.pop %v1584
        %v1586 = vmul.f32 %v1428, 1.442695
        %v1587 = vpow.pop %v1586
        %v1588 = vmul.f32 %v1429, 1.442695
        %v1589 = vpow.pop %v1588
        %v1590 = vmul.f32 %v1430, 1.442695
        %v1591 = vpow.pop %v1590
        %v1592 = vmul.f32 %v1431, 1.442695
        %v1593 = vpow.pop %v1592
        %v1594 = vmul.f32 %v1432, 1.442695
        %v1595 = vpow.pop %v1594
        %v1596 = vmul.f32 %v1433, 1.442695
        %v1597 = vpow.pop %v1596
        %v1598 = vmul.f32 %v1434, 1.442695
        %v1599 = vpow.pop %v1598
        %v1600 = vmul.f32 %v1435, 1.442695
        %v1601 = vpow.pop %v1600
        %v1602 = vmul.f32 %v1436, 1.442695
        %v1603 = vpow.pop %v1602
        %v1604 = vmul.f32 %v1437, 1.442695
        %v1605 = vpow.pop %v1604
        %v1606 = vmul.f32 %v1438, 1.442695
        %v1607 = vpow.pop %v1606
        %v1608 = vmul.f32 %v1439, 1.442695
        %v1609 = vpow.pop %v1608
        %v1610 = vmul.f32 %v1440, 1.442695
        %v1611 = vpow.pop %v1610
        %v1612 = vmul.f32 %v1441, 1.442695
        %v1613 = vpow.pop %v1612
        %v1614 = vmul.f32 %v1442, 1.442695
        %v1615 = vpow.pop %v1614
        %v1616 = vmul.f32 %v1443, 1.442695
        %v1617 = vpow.pop %v1616
        %v1618 = vmul.f32 %v1444, 1.442695
        %v1619 = vpow.pop %v1618
        %v1620 = vmul.f32 %v1445, 1.442695
        %v1621 = vpow.pop %v1620
        %v1622 = vmul.f32 %v1446, 1.442695
        %v1623 = vpow.pop %v1622
        %v1624 = vmul.f32 %v1447, 1.442695
        %v1625 = vpow.pop %v1624
        %v1626 = vmul.f32 %v1448, 1.442695
        %v1627 = vpow.pop %v1626
        %v1628 = vmul.f32 %v1449, 1.442695
        %v1629 = vpow.pop %v1628
        %v1630 = vmul.f32 %v1450, 1.442695
        %v1631 = vpow.pop %v1630
        %v1632 = vmul.f32 %v1451, 1.442695
        %v1633 = vpow.pop %v1632
        %v1634 = vmul.f32 %v1452, 1.442695
        %v1635 = vpow.pop %v1634
        %v1636 = vmul.f32 %v1453, 1.442695
        %v1637 = vpow.pop %v1636
        %v1638 = vmul.f32 %v1454, 1.442695
        %v1639 = vpow.pop %v1638
        %v1640 = vmul.f32 %v1455, 1.442695
        %v1641 = vpow.pop %v1640
        %v1642 = vmul.f32 %v1456, 1.442695
        %v1643 = vpow.pop %v1642
        %v1644 = vmul.f32 %v1457, 1.442695
        %v1645 = vpow.pop %v1644
        %v1646 = vmul.f32 %v1458, 1.442695
        %v1647 = vpow.pop %v1646
        %v1648 = vmul.f32 %v1459, 1.442695
        %v1649 = vpow.pop %v1648
        %v1650 = vmul.f32 %v1460, 1.442695
        %v1651 = vpow.pop %v1650
        %v1652 = vmul.f32 %v1461, 1.442695
        %v1653 = vpow.pop %v1652
        %v1654 = vmul.f32 %v1462, 1.442695
        %v1655 = vpow.pop %v1654
        %v1656 = vmul.f32 %v1463, 1.442695
        %v1657 = vpow.pop %v1656
        %v1658 = vmul.f32 %v1464, 1.442695
        %v1659 = vpow.pop %v1658
        %v1660 = vmul.f32 %v1465, 1.442695
        %v1661 = vpow.pop %v1660
        %v1662 = vmul.f32 %v1466, 1.442695
        %v1663 = vpow.pop %v1662
        %v1664 = vmul.f32 %v1467, 1.442695
        %v1665 = vpow.pop %v1664
        %v1666 = vmul.f32 %v1468, 1.442695
        %v1667 = vpow.pop %v1666
        %v1668 = vmul.f32 %v1469, 1.442695
        %v1669 = vpow.pop %v1668
        %v1670 = vmul.f32 %v1470, 1.442695
        %v1671 = vpow.pop %v1670
        %v1672 = vmul.f32 %v1471, 1.442695
        %v1673 = vpow.pop %v1672
        %v1674 = vmul.f32 %v1472, 1.442695
        %v1675 = vpow.pop %v1674
        %v1676 = vmul.f32 %v1473, 1.442695
        %v1677 = vpow.pop %v1676
        %v1678 = vmul.f32 %v1474, 1.442695
        %v1679 = vpow.pop %v1678
        %v1680 = vmul.f32 %v1475, 1.442695
        %v1681 = vpow.pop %v1680
        %v1682 = vmul.f32 %v1476, 1.442695
        %v1683 = vpow.pop %v1682
        %v1684 = vmul.f32 %v1477, 1.442695
        %v1685 = vpow.pop %v1684
        %v1686 = vmul.f32 %v1478, 1.442695
        %v1687 = vpow.pop %v1686
        %v1688 = vmul.f32 %v1479, 1.442695
        %v1689 = vpow.pop %v1688
        %v1690 = vmul.f32 %v1480, 1.442695
        %v1691 = vpow.pop %v1690
        %v1692 = vmul.f32 %v1481, 1.442695
        %v1693 = vpow.pop %v1692
        %v1694 = vmul.f32 %v1482, 1.442695
        %v1695 = vpow.pop %v1694
        %v1696 = vmul.f32 %v1483, 1.442695
        %v1697 = vpow.pop %v1696
        %v1698 = vmul.f32 %v1484, 1.442695
        %v1699 = vpow.pop %v1698
        %v1700 = vmul.f32 %v1485, 1.442695
        %v1701 = vpow.pop %v1700
        %v1702 = vmul.f32 %v1486, 1.442695
        %v1703 = vpow.pop %v1702
        %v1704 = vmul.f32 %v1487, 1.442695
        %v1705 = vpow.pop %v1704
        %v1706 = vmul.f32 %v1488, 1.442695
        %v1707 = vpow.pop %v1706
        %v1708 = vmul.f32 %v1489, 1.442695
        %v1709 = vpow.pop %v1708
        %v1710 = vmul.f32 %v1490, 1.442695
        %v1711 = vpow.pop %v1710
        %v1712 = vmul.f32 %v1491, 1.442695
        %v1713 = vpow.pop %v1712
        %v1714 = vmul.f32 %v1492, 1.442695
        %v1715 = vpow.pop %v1714
        %v1716 = vmul.f32 %v1493, 1.442695
        %v1717 = vpow.pop %v1716
        %v1718 = vmul.f32 %v1494, 1.442695
        %v1719 = vpow.pop %v1718
        %v1720 = vmul.f32 %v1495, 1.442695
        %v1721 = vpow.pop %v1720
        %v1722 = vmul.f32 %v1496, 1.442695
        %v1723 = vpow.pop %v1722
        %v1724 = vmul.f32 %v1497, 1.442695
        %v1725 = vpow.pop %v1724
        %v1726 = vmul.f32 %v1498, 1.442695
        %v1727 = vpow.pop %v1726
        %v1728 = vmul.f32 %v1499, 1.442695
        %v1729 = vpow.pop %v1728
        %v1730 = vmul.f32 %v1500, 1.442695
        %v1731 = vpow.pop %v1730
        %v1732 = vmul.f32 %v1501, 1.442695
        %v1733 = vpow.pop %v1732
        %v1734 = vmul.f32 %v1502, 1.442695
        %v1735 = vpow.pop %v1734
        %v1736 = vmul.f32 %v1503, 1.442695
        %v1737 = vpow.pop %v1736
        %v1738 = vmul.f32 %v1504, 1.442695
        %v1739 = vpow.pop %v1738
        %v1740 = vmul.f32 %v1505, 1.442695
        %v1741 = vpow.pop %v1740
        %v1742 = vmul.f32 %v1506, 1.442695
        %v1743 = vpow.pop %v1742
        %v1744 = vmul.f32 %v1507, 1.442695
        %v1745 = vpow.pop %v1744
        %v1746 = vmul.f32 %v1508, 1.442695
        %v1747 = vpow.pop %v1746
        %v1748 = vmul.f32 %v1509, 1.442695
        %v1749 = vpow.pop %v1748
        %v1750 = vmul.f32 %v1510, 1.442695
        %v1751 = vpow.pop %v1750
        %v1752 = vmul.f32 %v1511, 1.442695
        %v1753 = vpow.pop %v1752
        %v1754 = vmul.f32 %v1512, 1.442695
        %v1755 = vpow.pop %v1754
        %v1756 = vmul.f32 %v1513, 1.442695
        %v1757 = vpow.pop %v1756
        %v1758 = vmul.f32 %v1514, 1.442695
        %v1759 = vpow.pop %v1758
        %v1760 = vmul.f32 %v1515, 1.442695
        %v1761 = vpow.pop %v1760
        %v1762 = vmul.f32 %v1516, 1.442695
        %v1763 = vpow.pop %v1762
        %v1764 = vmul.f32 %v1517, 1.442695
        %v1765 = vpow.pop %v1764
        %v1766 = vmul.f32 %v1518, 1.442695
        %v1767 = vpow.pop %v1766
        %v1768 = vmul.f32 %v1519, 1.442695
        %v1769 = vpow.pop %v1768
        %v1770 = vmul.f32 %v1520, 1.442695
        %v1771 = vpow.pop %v1770
        %v1772 = vmul.f32 %v1521, 1.442695
        %v1773 = vpow.pop %v1772
        %v1774 = vmul.f32 %v1522, 1.442695
        %v1775 = vpow.pop %v1774
        %v1776 = vmul.f32 %v1523, 1.442695
        %v1777 = vpow.pop %v1776
        %v1778 = vmul.f32 %v1524, 1.442695
        %v1779 = vpow.pop %v1778
        %v1780 = vmul.f32 %v1525, 1.442695
        %v1781 = vpow.pop %v1780
        %v1782 = vadd.f32 %v1527, 1.0
        %v1783 = vadd.f32 %v1529, 1.0
        %v1784 = vadd.f32 %v1531, 1.0
        %v1785 = vadd.f32 %v1533, 1.0
        %v1786 = vadd.f32 %v1535, 1.0
        %v1787 = vadd.f32 %v1537, 1.0
        %v1788 = vadd.f32 %v1539, 1.0
        %v1789 = vadd.f32 %v1541, 1.0
        %v1790 = vadd.f32 %v1543, 1.0
        %v1791 = vadd.f32 %v1545, 1.0
        %v1792 = vadd.f32 %v1547, 1.0
        %v1793 = vadd.f32 %v1549, 1.0
        %v1794 = vadd.f32 %v1551, 1.0
        %v1795 = vadd.f32 %v1553, 1.0
        %v1796 = vadd.f32 %v1555, 1.0
        %v1797 = vadd.f32 %v1557, 1.0
        %v1798 = vadd.f32 %v1559, 1.0
        %v1799 = vadd.f32 %v1561, 1.0
        %v1800 = vadd.f32 %v1563, 1.0
        %v1801 = vadd.f32 %v1565, 1.0
        %v1802 = vadd.f32 %v1567, 1.0
        %v1803 = vadd.f32 %v1569, 1.0
        %v1804 = vadd.f32 %v1571, 1.0
        %v1805 = vadd.f32 %v1573, 1.0
        %v1806 = vadd.f32 %v1575, 1.0
        %v1807 = vadd.f32 %v1577, 1.0
        %v1808 = vadd.f32 %v1579, 1.0
        %v1809 = vadd.f32 %v1581, 1.0
        %v1810 = vadd.f32 %v1583, 1.0
        %v1811 = vadd.f32 %v1585, 1.0
        %v1812 = vadd.f32 %v1587, 1.0
        %v1813 = vadd.f32 %v1589, 1.0
        %v1814 = vadd.f32 %v1591, 1.0
        %v1815 = vadd.f32 %v1593, 1.0
        %v1816 = vadd.f32 %v1595, 1.0
        %v1817 = vadd.f32 %v1597, 1.0
        %v1818 = vadd.f32 %v1599, 1.0
        %v1819 = vadd.f32 %v1601, 1.0
        %v1820 = vadd.f32 %v1603, 1.0
        %v1821 = vadd.f32 %v1605, 1.0
        %v1822 = vadd.f32 %v1607, 1.0
        %v1823 = vadd.f32 %v1609, 1.0
        %v1824 = vadd.f32 %v1611, 1.0
        %v1825 = vadd.f32 %v1613, 1.0
        %v1826 = vadd.f32 %v1615, 1.0
        %v1827 = vadd.f32 %v1617, 1.0
        %v1828 = vadd.f32 %v1619, 1.0
        %v1829 = vadd.f32 %v1621, 1.0
        %v1830 = vadd.f32 %v1623, 1.0
        %v1831 = vadd.f32 %v1625, 1.0
        %v1832 = vadd.f32 %v1627, 1.0
        %v1833 = vadd.f32 %v1629, 1.0
        %v1834 = vadd.f32 %v1631, 1.0
        %v1835 = vadd.f32 %v1633, 1.0
        %v1836 = vadd.f32 %v1635, 1.0
        %v1837 = vadd.f32 %v1637, 1.0
        %v1838 = vadd.f32 %v1639, 1.0
        %v1839 = vadd.f32 %v1641, 1.0
        %v1840 = vadd.f32 %v1643, 1.0
        %v1841 = vadd.f32 %v1645, 1.0
        %v1842 = vadd.f32 %v1647, 1.0
        %v1843 = vadd.f32 %v1649, 1.0
        %v1844 = vadd.f32 %v1651, 1.0
        %v1845 = vadd.f32 %v1653, 1.0
        %v1846 = vadd.f32 %v1655, 1.0
        %v1847 = vadd.f32 %v1657, 1.0
        %v1848 = vadd.f32 %v1659, 1.0
        %v1849 = vadd.f32 %v1661, 1.0
        %v1850 = vadd.f32 %v1663, 1.0
        %v1851 = vadd.f32 %v1665, 1.0
        %v1852 = vadd.f32 %v1667, 1.0
        %v1853 = vadd.f32 %v1669, 1.0
        %v1854 = vadd.f32 %v1671, 1.0
        %v1855 = vadd.f32 %v1673, 1.0
        %v1856 = vadd.f32 %v1675, 1.0
        %v1857 = vadd.f32 %v1677, 1.0
        %v1858 = vadd.f32 %v1679, 1.0
        %v1859 = vadd.f32 %v1681, 1.0
        %v1860 = vadd.f32 %v1683, 1.0
        %v1861 = vadd.f32 %v1685, 1.0
        %v1862 = vadd.f32 %v1687, 1.0
        %v1863 = vadd.f32 %v1689, 1.0
        %v1864 = vadd.f32 %v1691, 1.0
        %v1865 = vadd.f32 %v1693, 1.0
        %v1866 = vadd.f32 %v1695, 1.0
        %v1867 = vadd.f32 %v1697, 1.0
        %v1868 = vadd.f32 %v1699, 1.0
        %v1869 = vadd.f32 %v1701, 1.0
        %v1870 = vadd.f32 %v1703, 1.0
        %v1871 = vadd.f32 %v1705, 1.0
        %v1872 = vadd.f32 %v1707, 1.0
        %v1873 = vadd.f32 %v1709, 1.0
        %v1874 = vadd.f32 %v1711, 1.0
        %v1875 = vadd.f32 %v1713, 1.0
        %v1876 = vadd.f32 %v1715, 1.0
        %v1877 = vadd.f32 %v1717, 1.0
        %v1878 = vadd.f32 %v1719, 1.0
        %v1879 = vadd.f32 %v1721, 1.0
        %v1880 = vadd.f32 %v1723, 1.0
        %v1881 = vadd.f32 %v1725, 1.0
        %v1882 = vadd.f32 %v1727, 1.0
        %v1883 = vadd.f32 %v1729, 1.0
        %v1884 = vadd.f32 %v1731, 1.0
        %v1885 = vadd.f32 %v1733, 1.0
        %v1886 = vadd.f32 %v1735, 1.0
        %v1887 = vadd.f32 %v1737, 1.0
        %v1888 = vadd.f32 %v1739, 1.0
        %v1889 = vadd.f32 %v1741, 1.0
        %v1890 = vadd.f32 %v1743, 1.0
        %v1891 = vadd.f32 %v1745, 1.0
        %v1892 = vadd.f32 %v1747, 1.0
        %v1893 = vadd.f32 %v1749, 1.0
        %v1894 = vadd.f32 %v1751, 1.0
        %v1895 = vadd.f32 %v1753, 1.0
        %v1896 = vadd.f32 %v1755, 1.0
        %v1897 = vadd.f32 %v1757, 1.0
        %v1898 = vadd.f32 %v1759, 1.0
        %v1899 = vadd.f32 %v1761, 1.0
        %v1900 = vadd.f32 %v1763, 1.0
        %v1901 = vadd.f32 %v1765, 1.0
        %v1902 = vadd.f32 %v1767, 1.0
        %v1903 = vadd.f32 %v1769, 1.0
        %v1904 = vadd.f32 %v1771, 1.0
        %v1905 = vadd.f32 %v1773, 1.0
        %v1906 = vadd.f32 %v1775, 1.0
        %v1907 = vadd.f32 %v1777, 1.0
        %v1908 = vadd.f32 %v1779, 1.0
        %v1909 = vadd.f32 %v1781, 1.0
        %v1910 = vrcp.pop %v1782
        %v1911 = vmul.f32 1.0, %v1910
        %v1912 = vrcp.pop %v1783
        %v1913 = vmul.f32 1.0, %v1912
        %v1914 = vrcp.pop %v1784
        %v1915 = vmul.f32 1.0, %v1914
        %v1916 = vrcp.pop %v1785
        %v1917 = vmul.f32 1.0, %v1916
        %v1918 = vrcp.pop %v1786
        %v1919 = vmul.f32 1.0, %v1918
        %v1920 = vrcp.pop %v1787
        %v1921 = vmul.f32 1.0, %v1920
        %v1922 = vrcp.pop %v1788
        %v1923 = vmul.f32 1.0, %v1922
        %v1924 = vrcp.pop %v1789
        %v1925 = vmul.f32 1.0, %v1924
        %v1926 = vrcp.pop %v1790
        %v1927 = vmul.f32 1.0, %v1926
        %v1928 = vrcp.pop %v1791
        %v1929 = vmul.f32 1.0, %v1928
        %v1930 = vrcp.pop %v1792
        %v1931 = vmul.f32 1.0, %v1930
        %v1932 = vrcp.pop %v1793
        %v1933 = vmul.f32 1.0, %v1932
        %v1934 = vrcp.pop %v1794
        %v1935 = vmul.f32 1.0, %v1934
        %v1936 = vrcp.pop %v1795
        %v1937 = vmul.f32 1.0, %v1936
        %v1938 = vrcp.pop %v1796
        %v1939 = vmul.f32 1.0, %v1938
        %v1940 = vrcp.pop %v1797
        %v1941 = vmul.f32 1.0, %v1940
        %v1942 = vrcp.pop %v1798
        %v1943 = vmul.f32 1.0, %v1942
        %v1944 = vrcp.pop %v1799
        %v1945 = vmul.f32 1.0, %v1944
        %v1946 = vrcp.pop %v1800
        %v1947 = vmul.f32 1.0, %v1946
        %v1948 = vrcp.pop %v1801
        %v1949 = vmul.f32 1.0, %v1948
        %v1950 = vrcp.pop %v1802
        %v1951 = vmul.f32 1.0, %v1950
        %v1952 = vrcp.pop %v1803
        %v1953 = vmul.f32 1.0, %v1952
        %v1954 = vrcp.pop %v1804
        %v1955 = vmul.f32 1.0, %v1954
        %v1956 = vrcp.pop %v1805
        %v1957 = vmul.f32 1.0, %v1956
        %v1958 = vrcp.pop %v1806
        %v1959 = vmul.f32 1.0, %v1958
        %v1960 = vrcp.pop %v1807
        %v1961 = vmul.f32 1.0, %v1960
        %v1962 = vrcp.pop %v1808
        %v1963 = vmul.f32 1.0, %v1962
        %v1964 = vrcp.pop %v1809
        %v1965 = vmul.f32 1.0, %v1964
        %v1966 = vrcp.pop %v1810
        %v1967 = vmul.f32 1.0, %v1966
        %v1968 = vrcp.pop %v1811
        %v1969 = vmul.f32 1.0, %v1968
        %v1970 = vrcp.pop %v1812
        %v1971 = vmul.f32 1.0, %v1970
        %v1972 = vrcp.pop %v1813
        %v1973 = vmul.f32 1.0, %v1972
        %v1974 = vrcp.pop %v1814
        %v1975 = vmul.f32 1.0, %v1974
        %v1976 = vrcp.pop %v1815
        %v1977 = vmul.f32 1.0, %v1976
        %v1978 = vrcp.pop %v1816
        %v1979 = vmul.f32 1.0, %v1978
        %v1980 = vrcp.pop %v1817
        %v1981 = vmul.f32 1.0, %v1980
        %v1982 = vrcp.pop %v1818
        %v1983 = vmul.f32 1.0, %v1982
        %v1984 = vrcp.pop %v1819
        %v1985 = vmul.f32 1.0, %v1984
        %v1986 = vrcp.pop %v1820
        %v1987 = vmul.f32 1.0, %v1986
        %v1988 = vrcp.pop %v1821
        %v1989 = vmul.f32 1.0, %v1988
        %v1990 = vrcp.pop %v1822
        %v1991 = vmul.f32 1.0, %v1990
        %v1992 = vrcp.pop %v1823
        %v1993 = vmul.f32 1.0, %v1992
        %v1994 = vrcp.pop %v1824
        %v1995 = vmul.f32 1.0, %v1994
        %v1996 = vrcp.pop %v1825
        %v1997 = vmul.f32 1.0, %v1996
        %v1998 = vrcp.pop %v1826
        %v1999 = vmul.f32 1.0, %v1998
        %v2000 = vrcp.pop %v1827
        %v2001 = vmul.f32 1.0, %v2000
        %v2002 = vrcp.pop %v1828
        %v2003 = vmul.f32 1.0, %v2002
        %v2004 = vrcp.pop %v1829
        %v2005 = vmul.f32 1.0, %v2004
        %v2006 = vrcp.pop %v1830
        %v2007 = vmul.f32 1.0, %v2006
        %v2008 = vrcp.pop %v1831
        %v2009 = vmul.f32 1.0, %v2008
        %v2010 = vrcp.pop %v1832
        %v2011 = vmul.f32 1.0, %v2010
        %v2012 = vrcp.pop %v1833
        %v2013 = vmul.f32 1.0, %v2012
        %v2014 = vrcp.pop %v1834
        %v2015 = vmul.f32 1.0, %v2014
        %v2016 = vrcp.pop %v1835
        %v2017 = vmul.f32 1.0, %v2016
        %v2018 = vrcp.pop %v1836
        %v2019 = vmul.f32 1.0, %v2018
        %v2020 = vrcp.pop %v1837
        %v2021 = vmul.f32 1.0, %v2020
        %v2022 = vrcp.pop %v1838
        %v2023 = vmul.f32 1.0, %v2022
        %v2024 = vrcp.pop %v1839
        %v2025 = vmul.f32 1.0, %v2024
        %v2026 = vrcp.pop %v1840
        %v2027 = vmul.f32 1.0, %v2026
        %v2028 = vrcp.pop %v1841
        %v2029 = vmul.f32 1.0, %v2028
        %v2030 = vrcp.pop %v1842
        %v2031 = vmul.f32 1.0, %v2030
        %v2032 = vrcp.pop %v1843
        %v2033 = vmul.f32 1.0, %v2032
        %v2034 = vrcp.pop %v1844
        %v2035 = vmul.f32 1.0, %v2034
        %v2036 = vrcp.pop %v1845
        %v2037 = vmul.f32 1.0, %v2036
        %v2038 = vrcp.pop %v1846
        %v2039 = vmul.f32 1.0, %v2038
        %v2040 = vrcp.pop %v1847
        %v2041 = vmul.f32 1.0, %v2040
        %v2042 = vrcp.pop %v1848
        %v2043 = vmul.f32 1.0, %v2042
        %v2044 = vrcp.pop %v1849
        %v2045 = vmul.f32 1.0, %v2044
        %v2046 = vrcp.pop %v1850
        %v2047 = vmul.f32 1.0, %v2046
        %v2048 = vrcp.pop %v1851
        %v2049 = vmul.f32 1.0, %v2048
        %v2050 = vrcp.pop %v1852
        %v2051 = vmul.f32 1.0, %v2050
        %v2052 = vrcp.pop %v1853
        %v2053 = vmul.f32 1.0, %v2052
        %v2054 = vrcp.pop %v1854
        %v2055 = vmul.f32 1.0, %v2054
        %v2056 = vrcp.pop %v1855
        %v2057 = vmul.f32 1.0, %v2056
        %v2058 = vrcp.pop %v1856
        %v2059 = vmul.f32 1.0, %v2058
        %v2060 = vrcp.pop %v1857
        %v2061 = vmul.f32 1.0, %v2060
        %v2062 = vrcp.pop %v1858
        %v2063 = vmul.f32 1.0, %v2062
        %v2064 = vrcp.pop %v1859
        %v2065 = vmul.f32 1.0, %v2064
        %v2066 = vrcp.pop %v1860
        %v2067 = vmul.f32 1.0, %v2066
        %v2068 = vrcp.pop %v1861
        %v2069 = vmul.f32 1.0, %v2068
        %v2070 = vrcp.pop %v1862
        %v2071 = vmul.f32 1.0, %v2070
        %v2072 = vrcp.pop %v1863
        %v2073 = vmul.f32 1.0, %v2072
        %v2074 = vrcp.pop %v1864
        %v2075 = vmul.f32 1.0, %v2074
        %v2076 = vrcp.pop %v1865
        %v2077 = vmul.f32 1.0, %v2076
        %v2078 = vrcp.pop %v1866
        %v2079 = vmul.f32 1.0, %v2078
        %v2080 = vrcp.pop %v1867
        %v2081 = vmul.f32 1.0, %v2080
        %v2082 = vrcp.pop %v1868
        %v2083 = vmul.f32 1.0, %v2082
        %v2084 = vrcp.pop %v1869
        %v2085 = vmul.f32 1.0, %v2084
        %v2086 = vrcp.pop %v1870
        %v2087 = vmul.f32 1.0, %v2086
        %v2088 = vrcp.pop %v1871
        %v2089 = vmul.f32 1.0, %v2088
        %v2090 = vrcp.pop %v1872
        %v2091 = vmul.f32 1.0, %v2090
        %v2092 = vrcp.pop %v1873
        %v2093 = vmul.f32 1.0, %v2092
        %v2094 = vrcp.pop %v1874
        %v2095 = vmul.f32 1.0, %v2094
        %v2096 = vrcp.pop %v1875
        %v2097 = vmul.f32 1.0, %v2096
        %v2098 = vrcp.pop %v1876
        %v2099 = vmul.f32 1.0, %v2098
        %v2100 = vrcp.pop %v1877
        %v2101 = vmul.f32 1.0, %v2100
        %v2102 = vrcp.pop %v1878
        %v2103 = vmul.f32 1.0, %v2102
        %v2104 = vrcp.pop %v1879
        %v2105 = vmul.f32 1.0, %v2104
        %v2106 = vrcp.pop %v1880
        %v2107 = vmul.f32 1.0, %v2106
        %v2108 = vrcp.pop %v1881
        %v2109 = vmul.f32 1.0, %v2108
        %v2110 = vrcp.pop %v1882
        %v2111 = vmul.f32 1.0, %v2110
        %v2112 = vrcp.pop %v1883
        %v2113 = vmul.f32 1.0, %v2112
        %v2114 = vrcp.pop %v1884
        %v2115 = vmul.f32 1.0, %v2114
        %v2116 = vrcp.pop %v1885
        %v2117 = vmul.f32 1.0, %v2116
        %v2118 = vrcp.pop %v1886
        %v2119 = vmul.f32 1.0, %v2118
        %v2120 = vrcp.pop %v1887
        %v2121 = vmul.f32 1.0, %v2120
        %v2122 = vrcp.pop %v1888
        %v2123 = vmul.f32 1.0, %v2122
        %v2124 = vrcp.pop %v1889
        %v2125 = vmul.f32 1.0, %v2124
        %v2126 = vrcp.pop %v1890
        %v2127 = vmul.f32 1.0, %v2126
        %v2128 = vrcp.pop %v1891
        %v2129 = vmul.f32 1.0, %v2128
        %v2130 = vrcp.pop %v1892
        %v2131 = vmul.f32 1.0, %v2130
        %v2132 = vrcp.pop %v1893
        %v2133 = vmul.f32 1.0, %v2132
        %v2134 = vrcp.pop %v1894
        %v2135 = vmul.f32 1.0, %v2134
        %v2136 = vrcp.pop %v1895
        %v2137 = vmul.f32 1.0, %v2136
        %v2138 = vrcp.pop %v1896
        %v2139 = vmul.f32 1.0, %v2138
        %v2140 = vrcp.pop %v1897
        %v2141 = vmul.f32 1.0, %v2140
        %v2142 = vrcp.pop %v1898
        %v2143 = vmul.f32 1.0, %v2142
        %v2144 = vrcp.pop %v1899
        %v2145 = vmul.f32 1.0, %v2144
        %v2146 = vrcp.pop %v1900
        %v2147 = vmul.f32 1.0, %v2146
        %v2148 = vrcp.pop %v1901
        %v2149 = vmul.f32 1.0, %v2148
        %v2150 = vrcp.pop %v1902
        %v2151 = vmul.f32 1.0, %v2150
        %v2152 = vrcp.pop %v1903
        %v2153 = vmul.f32 1.0, %v2152
        %v2154 = vrcp.pop %v1904
        %v2155 = vmul.f32 1.0, %v2154
        %v2156 = vrcp.pop %v1905
        %v2157 = vmul.f32 1.0, %v2156
        %v2158 = vrcp.pop %v1906
        %v2159 = vmul.f32 1.0, %v2158
        %v2160 = vrcp.pop %v1907
        %v2161 = vmul.f32 1.0, %v2160
        %v2162 = vrcp.pop %v1908
        %v2163 = vmul.f32 1.0, %v2162
        %v2164 = vrcp.pop %v1909
        %v2165 = vmul.f32 1.0, %v2164
        %v2166 = vmul.f32 %v888, %v1911
        %v2167 = vmul.f32 %v891, %v1913
        %v2168 = vmul.f32 %v896, %v1915
        %v2169 = vmul.f32 %v899, %v1917
        %v2170 = vmul.f32 %v904, %v1919
        %v2171 = vmul.f32 %v907, %v1921
        %v2172 = vmul.f32 %v912, %v1923
        %v2173 = vmul.f32 %v915, %v1925
        %v2174 = vmul.f32 %v920, %v1927
        %v2175 = vmul.f32 %v923, %v1929
        %v2176 = vmul.f32 %v928, %v1931
        %v2177 = vmul.f32 %v931, %v1933
        %v2178 = vmul.f32 %v936, %v1935
        %v2179 = vmul.f32 %v939, %v1937
        %v2180 = vmul.f32 %v944, %v1939
        %v2181 = vmul.f32 %v947, %v1941
        %v2182 = vmul.f32 %v952, %v1943
        %v2183 = vmul.f32 %v955, %v1945
        %v2184 = vmul.f32 %v960, %v1947
        %v2185 = vmul.f32 %v963, %v1949
        %v2186 = vmul.f32 %v968, %v1951
        %v2187 = vmul.f32 %v971, %v1953
        %v2188 = vmul.f32 %v976, %v1955
        %v2189 = vmul.f32 %v979, %v1957
        %v2190 = vmul.f32 %v984, %v1959
        %v2191 = vmul.f32 %v987, %v1961
        %v2192 = vmul.f32 %v992, %v1963
        %v2193 = vmul.f32 %v995, %v1965
        %v2194 = vmul.f32 %v1000, %v1967
        %v2195 = vmul.f32 %v1003, %v1969
        %v2196 = vmul.f32 %v1008, %v1971
        %v2197 = vmul.f32 %v1011, %v1973
        %v2198 = vmul.f32 %v1016, %v1975
        %v2199 = vmul.f32 %v1019, %v1977
        %v2200 = vmul.f32 %v1024, %v1979
        %v2201 = vmul.f32 %v1027, %v1981
        %v2202 = vmul.f32 %v1032, %v1983
        %v2203 = vmul.f32 %v1035, %v1985
        %v2204 = vmul.f32 %v1040, %v1987
        %v2205 = vmul.f32 %v1043, %v1989
        %v2206 = vmul.f32 %v1048, %v1991
        %v2207 = vmul.f32 %v1051, %v1993
        %v2208 = vmul.f32 %v1056, %v1995
        %v2209 = vmul.f32 %v1059, %v1997
        %v2210 = vmul.f32 %v1064, %v1999
        %v2211 = vmul.f32 %v1067, %v2001
        %v2212 = vmul.f32 %v1072, %v2003
        %v2213 = vmul.f32 %v1075, %v2005
        %v2214 = vmul.f32 %v1080, %v2007
        %v2215 = vmul.f32 %v1083, %v2009
        %v2216 = vmul.f32 %v1088, %v2011
        %v2217 = vmul.f32 %v1091, %v2013
        %v2218 = vmul.f32 %v1096, %v2015
        %v2219 = vmul.f32 %v1099, %v2017
        %v2220 = vmul.f32 %v1104, %v2019
        %v2221 = vmul.f32 %v1107, %v2021
        %v2222 = vmul.f32 %v1112, %v2023
        %v2223 = vmul.f32 %v1115, %v2025
        %v2224 = vmul.f32 %v1120, %v2027
        %v2225 = vmul.f32 %v1123, %v2029
        %v2226 = vmul.f32 %v1128, %v2031
        %v2227 = vmul.f32 %v1131, %v2033
        %v2228 = vmul.f32 %v1136, %v2035
        %v2229 = vmul.f32 %v1139, %v2037
        %v2230 = vmul.f32 %v1144, %v2039
        %v2231 = vmul.f32 %v1147, %v2041
        %v2232 = vmul.f32 %v1152, %v2043
        %v2233 = vmul.f32 %v1155, %v2045
        %v2234 = vmul.f32 %v1160, %v2047
        %v2235 = vmul.f32 %v1163, %v2049
        %v2236 = vmul.f32 %v1168, %v2051
        %v2237 = vmul.f32 %v1171, %v2053
        %v2238 = vmul.f32 %v1176, %v2055
        %v2239 = vmul.f32 %v1179, %v2057
        %v2240 = vmul.f32 %v1184, %v2059
        %v2241 = vmul.f32 %v1187, %v2061
        %v2242 = vmul.f32 %v1192, %v2063
        %v2243 = vmul.f32 %v1195, %v2065
        %v2244 = vmul.f32 %v1200, %v2067
        %v2245 = vmul.f32 %v1203, %v2069
        %v2246 = vmul.f32 %v1208, %v2071
        %v2247 = vmul.f32 %v1211, %v2073
        %v2248 = vmul.f32 %v1216, %v2075
        %v2249 = vmul.f32 %v1219, %v2077
        %v2250 = vmul.f32 %v1224, %v2079
        %v2251 = vmul.f32 %v1227, %v2081
        %v2252 = vmul.f32 %v1232, %v2083
        %v2253 = vmul.f32 %v1235, %v2085
        %v2254 = vmul.f32 %v1240, %v2087
        %v2255 = vmul.f32 %v1243, %v2089
        %v2256 = vmul.f32 %v1248, %v2091
        %v2257 = vmul.f32 %v1251, %v2093
        %v2258 = vmul.f32 %v1256, %v2095
        %v2259 = vmul.f32 %v1259, %v2097
        %v2260 = vmul.f32 %v1264, %v2099
        %v2261 = vmul.f32 %v1267, %v2101
        %v2262 = vmul.f32 %v1272, %v2103
        %v2263 = vmul.f32 %v1275, %v2105
        %v2264 = vmul.f32 %v1280, %v2107
        %v2265 = vmul.f32 %v1283, %v2109
        %v2266 = vmul.f32 %v1288, %v2111
        %v2267 = vmul.f32 %v1291, %v2113
        %v2268 = vmul.f32 %v1296, %v2115
        %v2269 = vmul.f32 %v1299, %v2117
        %v2270 = vmul.f32 %v1304, %v2119
        %v2271 = vmul.f32 %v1307, %v2121
        %v2272 = vmul.f32 %v1312, %v2123
        %v2273 = vmul.f32 %v1315, %v2125
        %v2274 = vmul.f32 %v1320, %v2127
        %v2275 = vmul.f32 %v1323, %v2129
        %v2276 = vmul.f32 %v1328, %v2131
        %v2277 = vmul.f32 %v1331, %v2133
        %v2278 = vmul.f32 %v1336, %v2135
        %v2279 = vmul.f32 %v1339, %v2137
        %v2280 = vmul.f32 %v1344, %v2139
        %v2281 = vmul.f32 %v1347, %v2141
        %v2282 = vmul.f32 %v1352, %v2143
        %v2283 = vmul.f32 %v1355, %v2145
        %v2284 = vmul.f32 %v1360, %v2147
        %v2285 = vmul.f32 %v1363, %v2149
        %v2286 = vmul.f32 %v1368, %v2151
        %v2287 = vmul.f32 %v1371, %v2153
        %v2288 = vmul.f32 %v1376, %v2155
        %v2289 = vmul.f32 %v1379, %v2157
        %v2290 = vmul.f32 %v1384, %v2159
        %v2291 = vmul.f32 %v1387, %v2161
        %v2292 = vmul.f32 %v1392, %v2163
        %v2293 = vmul.f32 %v1395, %v2165
        %v2294 = vld [vmem:[%s3] sm:$0xff]
        %v2295 = vld [vmem:[%s3 + $0x8] sm:$0xff]
        %v2296 = vld [vmem:[%s3 + $0x10] sm:$0xff]
        %v2297 = vld [vmem:[%s3 + $0x18] sm:$0xff]
        %v2298 = vld [vmem:[%s3 + $0x20] sm:$0xff]
        %v2299 = vld [vmem:[%s3 + $0x28] sm:$0xff]
        %v2300 = vld [vmem:[%s3 + $0x30] sm:$0xff]
        %v2301 = vld [vmem:[%s3 + $0x38] sm:$0xff]
        %v2302 = vld [vmem:[%s3 + $0x40] sm:$0xff]
        %v2303 = vld [vmem:[%s3 + $0x48] sm:$0xff]
        %v2304 = vld [vmem:[%s3 + $0x50] sm:$0xff]
        %v2305 = vld [vmem:[%s3 + $0x58] sm:$0xff]
        %v2306 = vld [vmem:[%s3 + $0x60] sm:$0xff]
        %v2307 = vld [vmem:[%s3 + $0x68] sm:$0xff]
        %v2308 = vld [vmem:[%s3 + $0x70] sm:$0xff]
        %v2309 = vld [vmem:[%s3 + $0x78] sm:$0xff]
        %2310 = vmatprep.subr.mxu0 0.0
        %2311 = vmatpush1.msra.mxu0 %v2166
        %2312 = vmatprep.subr.mxu0 0.0
        %2313 = vmatpush1.msra.mxu0 %v2167
        %2314 = vmatprep.subr.mxu0 0.0
        %2315 = vmatpush1.msra.mxu0 %v2168
        %2316 = vmatprep.subr.mxu0 0.0
        %2317 = vmatpush1.msra.mxu0 %v2169
        %2318 = vmatprep.subr.mxu0 0.0
        %2319 = vmatpush1.msra.mxu0 %v2170
        %2320 = vmatprep.subr.mxu0 0.0
        %2321 = vmatpush1.msra.mxu0 %v2171
        %2322 = vmatprep.subr.mxu0 0.0
        %2323 = vmatpush1.msra.mxu0 %v2172
        %2324 = vmatprep.subr.mxu0 0.0
        %2325 = vmatpush1.msra.mxu0 %v2173
        %2326 = vmatprep.subr.mxu0 0.0
        %2327 = vmatpush1.msra.mxu0 %v2174
        %2328 = vmatprep.subr.mxu0 0.0
        %2329 = vmatpush1.msra.mxu0 %v2175
        %2330 = vmatprep.subr.mxu0 0.0
        %2331 = vmatpush1.msra.mxu0 %v2176
        %2332 = vmatprep.subr.mxu0 0.0
        %2333 = vmatpush1.msra.mxu0 %v2177
        %2334 = vmatprep.subr.mxu0 0.0
        %2335 = vmatpush1.msra.mxu0 %v2178
        %2336 = vmatprep.subr.mxu0 0.0
        %2337 = vmatpush1.msra.mxu0 %v2179
        %2338 = vmatprep.subr.mxu0 0.0
        %2339 = vmatpush1.msra.mxu0 %v2180
        %2340 = vmatprep.subr.mxu0 0.0
        %2341 = vmatpush1.msra.mxu0 %v2181
        %2342 = vmatprep.subr.mxu0 0.0
        %2343 = vmatpush1.msra.mxu0 %v2182
        %2344 = vmatprep.subr.mxu0 0.0
        %2345 = vmatpush1.msra.mxu0 %v2183
        %2346 = vmatprep.subr.mxu0 0.0
        %2347 = vmatpush1.msra.mxu0 %v2184
        %2348 = vmatprep.subr.mxu0 0.0
        %2349 = vmatpush1.msra.mxu0 %v2185
        %2350 = vmatprep.subr.mxu0 0.0
        %2351 = vmatpush1.msra.mxu0 %v2186
        %2352 = vmatprep.subr.mxu0 0.0
        %2353 = vmatpush1.msra.mxu0 %v2187
        %2354 = vmatprep.subr.mxu0 0.0
        %2355 = vmatpush1.msra.mxu0 %v2188
        %2356 = vmatprep.subr.mxu0 0.0
        %2357 = vmatpush1.msra.mxu0 %v2189
        %2358 = vmatprep.subr.mxu0 0.0
        %2359 = vmatpush1.msra.mxu0 %v2190
        %2360 = vmatprep.subr.mxu0 0.0
        %2361 = vmatpush1.msra.mxu0 %v2191
        %2362 = vmatprep.subr.mxu0 0.0
        %2363 = vmatpush1.msra.mxu0 %v2192
        %2364 = vmatprep.subr.mxu0 0.0
        %2365 = vmatpush1.msra.mxu0 %v2193
        %2366 = vmatprep.subr.mxu0 0.0
        %2367 = vmatpush1.msra.mxu0 %v2194
        %2368 = vmatprep.subr.mxu0 0.0
        %2369 = vmatpush1.msra.mxu0 %v2195
        %2370 = vmatprep.subr.mxu0 0.0
        %2371 = vmatpush1.msra.mxu0 %v2196
        %2372 = vmatprep.subr.mxu0 0.0
        %2373 = vmatpush1.msra.mxu0 %v2197
        %2374 = vmatprep.mubr.f32.mxu0 %v2295
        %2375 = vmatmul.mubr.f32.gmra.mrb[0].mxu0 %v2294
        %v2376 = vpop.f32.mrb[0].mxu0
        %v2377 = vadd.f32 0.0, %v2376
        %v2378 = vpop.f32.mrb[0].mxu0
        %2379 = vmatprep.mubr.f32.mxu0 %v2303
        %2380 = vmatmul.mubr.f32.gmra.mrb[0].mxu0 %v2302
        %v2381 = vpop.f32.mrb[0].mxu0
        %v2382 = vadd.f32 0.0, %v2381
        %v2383 = vpop.f32.mrb[0].mxu0
        %2384 = vdwg.mxu0
        %2385 = vmatprep.subr.mxu0 0.0
        %2386 = vmatpush1.msra.mxu0 %v2198
        %2387 = vmatprep.subr.mxu0 0.0
        %2388 = vmatpush1.msra.mxu0 %v2199
        %2389 = vmatprep.subr.mxu0 0.0
        %2390 = vmatpush1.msra.mxu0 %v2200
        %2391 = vmatprep.subr.mxu0 0.0
        %2392 = vmatpush1.msra.mxu0 %v2201
        %2393 = vmatprep.subr.mxu0 0.0
        %2394 = vmatpush1.msra.mxu0 %v2202
        %2395 = vmatprep.subr.mxu0 0.0
        %2396 = vmatpush1.msra.mxu0 %v2203
        %2397 = vmatprep.subr.mxu0 0.0
        %2398 = vmatpush1.msra.mxu0 %v2204
        %2399 = vmatprep.subr.mxu0 0.0
        %2400 = vmatpush1.msra.mxu0 %v2205
        %2401 = vmatprep.subr.mxu0 0.0
        %2402 = vmatpush1.msra.mxu0 %v2206
        %2403 = vmatprep.subr.mxu0 0.0
        %2404 = vmatpush1.msra.mxu0 %v2207
        %2405 = vmatprep.subr.mxu0 0.0
        %2406 = vmatpush1.msra.mxu0 %v2208
        %2407 = vmatprep.subr.mxu0 0.0
        %2408 = vmatpush1.msra.mxu0 %v2209
        %2409 = vmatprep.subr.mxu0 0.0
        %2410 = vmatpush1.msra.mxu0 %v2210
        %2411 = vmatprep.subr.mxu0 0.0
        %2412 = vmatpush1.msra.mxu0 %v2211
        %2413 = vmatprep.subr.mxu0 0.0
        %2414 = vmatpush1.msra.mxu0 %v2212
        %2415 = vmatprep.subr.mxu0 0.0
        %2416 = vmatpush1.msra.mxu0 %v2213
        %2417 = vmatprep.subr.mxu0 0.0
        %2418 = vmatpush1.msra.mxu0 %v2214
        %2419 = vmatprep.subr.mxu0 0.0
        %2420 = vmatpush1.msra.mxu0 %v2215
        %2421 = vmatprep.subr.mxu0 0.0
        %2422 = vmatpush1.msra.mxu0 %v2216
        %2423 = vmatprep.subr.mxu0 0.0
        %2424 = vmatpush1.msra.mxu0 %v2217
        %2425 = vmatprep.subr.mxu0 0.0
        %2426 = vmatpush1.msra.mxu0 %v2218
        %2427 = vmatprep.subr.mxu0 0.0
        %2428 = vmatpush1.msra.mxu0 %v2219
        %2429 = vmatprep.subr.mxu0 0.0
        %2430 = vmatpush1.msra.mxu0 %v2220
        %2431 = vmatprep.subr.mxu0 0.0
        %2432 = vmatpush1.msra.mxu0 %v2221
        %2433 = vmatprep.subr.mxu0 0.0
        %2434 = vmatpush1.msra.mxu0 %v2222
        %2435 = vmatprep.subr.mxu0 0.0
        %2436 = vmatpush1.msra.mxu0 %v2223
        %2437 = vmatprep.subr.mxu0 0.0
        %2438 = vmatpush1.msra.mxu0 %v2224
        %2439 = vmatprep.subr.mxu0 0.0
        %2440 = vmatpush1.msra.mxu0 %v2225
        %2441 = vmatprep.subr.mxu0 0.0
        %2442 = vmatpush1.msra.mxu0 %v2226
        %2443 = vmatprep.subr.mxu0 0.0
        %2444 = vmatpush1.msra.mxu0 %v2227
        %2445 = vmatprep.subr.mxu0 0.0
        %2446 = vmatpush1.msra.mxu0 %v2228
        %2447 = vmatprep.subr.mxu0 0.0
        %2448 = vmatpush1.msra.mxu0 %v2229
        %2449 = vmatprep.mubr.f32.mxu0 %v2297
        %2450 = vmatmul.mubr.f32.gmra.mrb[0].mxu0 %v2296
        %v2451 = vpop.f32.mrb[0].mxu0
        %v2452 = vadd.f32 %v2377, %v2451
        %v2453 = vpop.f32.mrb[0].mxu0
        %2454 = vmatprep.mubr.f32.mxu0 %v2305
        %2455 = vmatmul.mubr.f32.gmra.mrb[0].mxu0 %v2304
        %v2456 = vpop.f32.mrb[0].mxu0
        %v2457 = vadd.f32 %v2382, %v2456
        %v2458 = vpop.f32.mrb[0].mxu0
        %2459 = vdwg.mxu0
        %2460 = vmatprep.subr.mxu0 0.0
        %2461 = vmatpush1.msra.mxu0 %v2230
        %2462 = vmatprep.subr.mxu0 0.0
        %2463 = vmatpush1.msra.mxu0 %v2231
        %2464 = vmatprep.subr.mxu0 0.0
        %2465 = vmatpush1.msra.mxu0 %v2232
        %2466 = vmatprep.subr.mxu0 0.0
        %2467 = vmatpush1.msra.mxu0 %v2233
        %2468 = vmatprep.subr.mxu0 0.0
        %2469 = vmatpush1.msra.mxu0 %v2234
        %2470 = vmatprep.subr.mxu0 0.0
        %2471 = vmatpush1.msra.mxu0 %v2235
        %2472 = vmatprep.subr.mxu0 0.0
        %2473 = vmatpush1.msra.mxu0 %v2236
        %2474 = vmatprep.subr.mxu0 0.0
        %2475 = vmatpush1.msra.mxu0 %v2237
        %2476 = vmatprep.subr.mxu0 0.0
        %2477 = vmatpush1.msra.mxu0 %v2238
        %2478 = vmatprep.subr.mxu0 0.0
        %2479 = vmatpush1.msra.mxu0 %v2239
        %2480 = vmatprep.subr.mxu0 0.0
        %2481 = vmatpush1.msra.mxu0 %v2240
        %2482 = vmatprep.subr.mxu0 0.0
        %2483 = vmatpush1.msra.mxu0 %v2241
        %2484 = vmatprep.subr.mxu0 0.0
        %2485 = vmatpush1.msra.mxu0 %v2242
        %2486 = vmatprep.subr.mxu0 0.0
        %2487 = vmatpush1.msra.mxu0 %v2243
        %2488 = vmatprep.subr.mxu0 0.0
        %2489 = vmatpush1.msra.mxu0 %v2244
        %2490 = vmatprep.subr.mxu0 0.0
        %2491 = vmatpush1.msra.mxu0 %v2245
        %2492 = vmatprep.subr.mxu0 0.0
        %2493 = vmatpush1.msra.mxu0 %v2246
        %2494 = vmatprep.subr.mxu0 0.0
        %2495 = vmatpush1.msra.mxu0 %v2247
        %2496 = vmatprep.subr.mxu0 0.0
        %2497 = vmatpush1.msra.mxu0 %v2248
        %2498 = vmatprep.subr.mxu0 0.0
        %2499 = vmatpush1.msra.mxu0 %v2249
        %2500 = vmatprep.subr.mxu0 0.0
        %2501 = vmatpush1.msra.mxu0 %v2250
        %2502 = vmatprep.subr.mxu0 0.0
        %2503 = vmatpush1.msra.mxu0 %v2251
        %2504 = vmatprep.subr.mxu0 0.0
        %2505 = vmatpush1.msra.mxu0 %v2252
        %2506 = vmatprep.subr.mxu0 0.0
        %2507 = vmatpush1.msra.mxu0 %v2253
        %2508 = vmatprep.subr.mxu0 0.0
        %2509 = vmatpush1.msra.mxu0 %v2254
        %2510 = vmatprep.subr.mxu0 0.0
        %2511 = vmatpush1.msra.mxu0 %v2255
        %2512 = vmatprep.subr.mxu0 0.0
        %2513 = vmatpush1.msra.mxu0 %v2256
        %2514 = vmatprep.subr.mxu0 0.0
        %2515 = vmatpush1.msra.mxu0 %v2257
        %2516 = vmatprep.subr.mxu0 0.0
        %2517 = vmatpush1.msra.mxu0 %v2258
        %2518 = vmatprep.subr.mxu0 0.0
        %2519 = vmatpush1.msra.mxu0 %v2259
        %2520 = vmatprep.subr.mxu0 0.0
        %2521 = vmatpush1.msra.mxu0 %v2260
        %2522 = vmatprep.subr.mxu0 0.0
        %2523 = vmatpush1.msra.mxu0 %v2261
        %2524 = vmatprep.mubr.f32.mxu0 %v2299
        %2525 = vmatmul.mubr.f32.gmra.mrb[0].mxu0 %v2298
        %v2526 = vpop.f32.mrb[0].mxu0
        %v2527 = vadd.f32 %v2452, %v2526
        %v2528 = vpop.f32.mrb[0].mxu0
        %2529 = vmatprep.mubr.f32.mxu0 %v2307
        %2530 = vmatmul.mubr.f32.gmra.mrb[0].mxu0 %v2306
        %v2531 = vpop.f32.mrb[0].mxu0
        %v2532 = vadd.f32 %v2457, %v2531
        %v2533 = vpop.f32.mrb[0].mxu0
        %2534 = vdwg.mxu0
        %2535 = vmatprep.subr.mxu0 0.0
        %2536 = vmatpush1.msra.mxu0 %v2262
        %2537 = vmatprep.subr.mxu0 0.0
        %2538 = vmatpush1.msra.mxu0 %v2263
        %2539 = vmatprep.subr.mxu0 0.0
        %2540 = vmatpush1.msra.mxu0 %v2264
        %2541 = vmatprep.subr.mxu0 0.0
        %2542 = vmatpush1.msra.mxu0 %v2265
        %2543 = vmatprep.subr.mxu0 0.0
        %2544 = vmatpush1.msra.mxu0 %v2266
        %2545 = vmatprep.subr.mxu0 0.0
        %2546 = vmatpush1.msra.mxu0 %v2267
        %2547 = vmatprep.subr.mxu0 0.0
        %2548 = vmatpush1.msra.mxu0 %v2268
        %2549 = vmatprep.subr.mxu0 0.0
        %2550 = vmatpush1.msra.mxu0 %v2269
        %2551 = vmatprep.subr.mxu0 0.0
        %2552 = vmatpush1.msra.mxu0 %v2270
        %2553 = vmatprep.subr.mxu0 0.0
        %2554 = vmatpush1.msra.mxu0 %v2271
        %2555 = vmatprep.subr.mxu0 0.0
        %2556 = vmatpush1.msra.mxu0 %v2272
        %2557 = vmatprep.subr.mxu0 0.0
        %2558 = vmatpush1.msra.mxu0 %v2273
        %2559 = vmatprep.subr.mxu0 0.0
        %2560 = vmatpush1.msra.mxu0 %v2274
        %2561 = vmatprep.subr.mxu0 0.0
        %2562 = vmatpush1.msra.mxu0 %v2275
        %2563 = vmatprep.subr.mxu0 0.0
        %2564 = vmatpush1.msra.mxu0 %v2276
        %2565 = vmatprep.subr.mxu0 0.0
        %2566 = vmatpush1.msra.mxu0 %v2277
        %2567 = vmatprep.subr.mxu0 0.0
        %2568 = vmatpush1.msra.mxu0 %v2278
        %2569 = vmatprep.subr.mxu0 0.0
        %2570 = vmatpush1.msra.mxu0 %v2279
        %2571 = vmatprep.subr.mxu0 0.0
        %2572 = vmatpush1.msra.mxu0 %v2280
        %2573 = vmatprep.subr.mxu0 0.0
        %2574 = vmatpush1.msra.mxu0 %v2281
        %2575 = vmatprep.subr.mxu0 0.0
        %2576 = vmatpush1.msra.mxu0 %v2282
        %2577 = vmatprep.subr.mxu0 0.0
        %2578 = vmatpush1.msra.mxu0 %v2283
        %2579 = vmatprep.subr.mxu0 0.0
        %2580 = vmatpush1.msra.mxu0 %v2284
        %2581 = vmatprep.subr.mxu0 0.0
        %2582 = vmatpush1.msra.mxu0 %v2285
        %2583 = vmatprep.subr.mxu0 0.0
        %2584 = vmatpush1.msra.mxu0 %v2286
        %2585 = vmatprep.subr.mxu0 0.0
        %2586 = vmatpush1.msra.mxu0 %v2287
        %2587 = vmatprep.subr.mxu0 0.0
        %2588 = vmatpush1.msra.mxu0 %v2288
        %2589 = vmatprep.subr.mxu0 0.0
        %2590 = vmatpush1.msra.mxu0 %v2289
        %2591 = vmatprep.subr.mxu0 0.0
        %2592 = vmatpush1.msra.mxu0 %v2290
        %2593 = vmatprep.subr.mxu0 0.0
        %2594 = vmatpush1.msra.mxu0 %v2291
        %2595 = vmatprep.subr.mxu0 0.0
        %2596 = vmatpush1.msra.mxu0 %v2292
        %2597 = vmatprep.subr.mxu0 0.0
        %2598 = vmatpush1.msra.mxu0 %v2293
        %2599 = vmatprep.mubr.f32.mxu0 %v2301
        %2600 = vmatmul.mubr.f32.gmra.mrb[0].mxu0 %v2300
        %v2601 = vpop.f32.mrb[0].mxu0
        %v2602 = vadd.f32 %v2527, %v2601
        %v2603 = vpop.f32.mrb[0].mxu0
        %2604 = vmatprep.mubr.f32.mxu0 %v2309
        %2605 = vmatmul.mubr.f32.gmra.mrb[0].mxu0 %v2308
        %v2606 = vpop.f32.mrb[0].mxu0
        %v2607 = vadd.f32 %v2532, %v2606
        %v2608 = vpop.f32.mrb[0].mxu0
        %2609 = vdwg.mxu0
        %vm2610 = vcmask 261120
        %2611 = vst.msk [vmem:[%s191] sm:$0xff] %vm2610, %v2602
        %2612 = vst.msk [vmem:[%s191 + $0x8] sm:$0xff] %vm2610, %v2607
        %s2613 = sand.u32 %s115, 1
        %s2614 = scalar_lea.sflag [#allocation3], %s2613
        %s2615 = sand.u32 %s115, 1
        %s2616 = smul.addr %s2615, 16
        %s2617 = scalar_lea.vmem [#allocation2], %s2616
        // Predicated region
        $region37: #{_forward.1} parent=35 // pred_check
          %p2618 = pneg %p125
        $region38: #{_forward.1} parent=35 // pred_check_branch
          %2620 = sbr.rel (%p2618) target = $region40
        $region39: #{_forward.1} parent=35 // pred_region
          %s2621 = smul.u32 2, %s18
          %s2623 = ssub.s32 256, 256
          %2624 = vsyncadd %s2614, %s2623
          %s2625 = smul.addr %s2621, 128
          %s2626 = scalar_lea.hbm %s4, %s2625
          %s2627 = sshll.u32 %s2617, 4
          %s2628 = int_to_ptr.vmem [resolvable:$true] %s2627
          %2633 = dma.vmem_to_hbm [thread:$0]  %s2628, 256, %s2626, %s2614, 128, 128, 8
        $region40: #{_forward.1} parent=35 // pred_fallthru
          _
      $region36: #{_forward.1} parent=5 // pred_fallthru
        _
      %p2634 = scmp.le.s32.totalorder 2, %s13
      // Predicated region
      $region41: #{_forward.1} parent=5 // pred_check
        %p2635 = pneg %p2634
      $region42: #{_forward.1} parent=5 // pred_check_branch
        %2637 = sbr.rel (%p2635) target = $region44
      $region43: #{_forward.1} parent=5 // pred_region
        %s2638 = ssub.s32 %s13, 2
        // Predicated region
        $region45: #{_forward.1} parent=43 // pred_check
          %p2639 = pneg %p131
        $region46: #{_forward.1} parent=43 // pred_check_branch
          %2641 = sbr.rel (%p2639) target = $region48
        $region47: #{_forward.1} parent=43 // pred_region
          %s2642 = sand.u32 %s116, 1
          %s2643 = scalar_lea.sflag [#allocation3], %s2642
          %s2644 = sand.u32 %s116, 1
          %s2645 = smul.addr %s2644, 16
          %s2646 = scalar_lea.vmem [#allocation2], %s2645
          %2647 = dma.done %s2643, 256
        $region48: #{_forward.1} parent=43 // pred_fallthru
          _
      $region44: #{_forward.1} parent=5 // pred_fallthru
        _
    $region6: #{_forward.1} parent=1 // loop_footer
      %s17 = sadd.s32 1, %s13
    $region7: #{_forward.1} parent=1 // loop_footer_branch
      %12 = sbr.rel target = $region3
    $region8: #{_forward.1} parent=1 // loop_exit
      _
    %2648 = vsyncpa [#allocation3], 1
    %s2649 = scalar_lea.sflag [#allocation3], 1
    %2650 = vsyncpa %s2649, 1

</llo_original>
